<compile_context>
chip_gen: v5e
topology: v5e:2x2
jax: 0.10.0
libtpu: 0.0.40
codegen_flags: <defaults>
</compile_context>

<pallas_src>
import functools
import math

import jax
import jax.numpy as jnp
from jax.experimental import pallas as pl
from jax.experimental.pallas import tpu as pltpu

LN_EPS = 1e-5          # PyTorch LayerNorm / nn.Transformer default
NEG_INF = -1e30        # mask fill value (finite for numerical safety)


# ----------------------------------------------------------------------------
# helpers
# ----------------------------------------------------------------------------
def _pick_row_tile(m, cap=512):
    """Largest divisor of m that is <= cap (full block when m is small)."""
    if m <= cap:
        return m
    for t in range(cap, 0, -1):
        if m % t == 0:
            return t
    return m


# ----------------------------------------------------------------------------
# Pallas kernels
# ----------------------------------------------------------------------------
def _linear_kernel(x_ref, w_ref, b_ref, o_ref, *, act):
    y = jnp.dot(x_ref[...], w_ref[...], preferred_element_type=jnp.float32)
    y = y + b_ref[...]
    if act == "relu":
        y = jnp.maximum(y, 0.0)
    elif act == "leaky_relu":
        y = jnp.where(y > 0.0, y, 0.01 * y)
    o_ref[...] = y.astype(o_ref.dtype)


def p_linear(x, w, b, act="none"):
    """x: (M, K), w: (K, N), b: (1, N) -> (M, N) with optional activation."""
    M, K = x.shape
    N = w.shape[1]
    tm = _pick_row_tile(M)
    return pl.pallas_call(
        functools.partial(_linear_kernel, act=act),
        out_shape=jax.ShapeDtypeStruct((M, N), x.dtype),
        grid=(M // tm,),
        in_specs=[
            pl.BlockSpec((tm, K), lambda i: (i, 0)),
            pl.BlockSpec((K, N), lambda i: (0, 0)),
            pl.BlockSpec((1, N), lambda i: (0, 0)),
        ],
        out_specs=pl.BlockSpec((tm, N), lambda i: (i, 0)),
        compiler_params=pltpu.CompilerParams(dimension_semantics=("parallel",)),
        cost_estimate=pl.CostEstimate(
            flops=2 * M * K * N,
            transcendentals=0,
            bytes_accessed=4 * (M * K + K * N + N + M * N),
        ),
    )(x, w, b)


def _ln_kernel(x_ref, g_ref, b_ref, o_ref, *, eps):
    x = x_ref[...].astype(jnp.float32)
    mu = jnp.mean(x, axis=-1, keepdims=True)
    xc = x - mu
    var = jnp.mean(xc * xc, axis=-1, keepdims=True)
    y = xc * jax.lax.rsqrt(var + eps)
    o_ref[...] = (y * g_ref[...] + b_ref[...]).astype(o_ref.dtype)


def p_layernorm(x, g, b):
    M, N = x.shape
    tm = _pick_row_tile(M)
    return pl.pallas_call(
        functools.partial(_ln_kernel, eps=LN_EPS),
        out_shape=jax.ShapeDtypeStruct((M, N), x.dtype),
        grid=(M // tm,),
        in_specs=[
            pl.BlockSpec((tm, N), lambda i: (i, 0)),
            pl.BlockSpec((1, N), lambda i: (0, 0)),
            pl.BlockSpec((1, N), lambda i: (0, 0)),
        ],
        out_specs=pl.BlockSpec((tm, N), lambda i: (i, 0)),
        compiler_params=pltpu.CompilerParams(dimension_semantics=("parallel",)),
    )(x, g, b)


def _add_ln_kernel(x_ref, r_ref, g_ref, b_ref, o_ref, *, eps):
    # Fused residual add + LayerNorm (post-norm transformer sub-layer).
    x = x_ref[...].astype(jnp.float32) + r_ref[...].astype(jnp.float32)
    mu = jnp.mean(x, axis=-1, keepdims=True)
    xc = x - mu
    var = jnp.mean(xc * xc, axis=-1, keepdims=True)
    y = xc * jax.lax.rsqrt(var + eps)
    o_ref[...] = (y * g_ref[...] + b_ref[...]).astype(o_ref.dtype)


def p_add_layernorm(x, r, g, b):
    M, N = x.shape
    tm = _pick_row_tile(M)
    return pl.pallas_call(
        functools.partial(_add_ln_kernel, eps=LN_EPS),
        out_shape=jax.ShapeDtypeStruct((M, N), x.dtype),
        grid=(M // tm,),
        in_specs=[
            pl.BlockSpec((tm, N), lambda i: (i, 0)),
            pl.BlockSpec((tm, N), lambda i: (i, 0)),
            pl.BlockSpec((1, N), lambda i: (0, 0)),
            pl.BlockSpec((1, N), lambda i: (0, 0)),
        ],
        out_specs=pl.BlockSpec((tm, N), lambda i: (i, 0)),
        compiler_params=pltpu.CompilerParams(dimension_semantics=("parallel",)),
    )(x, r, g, b)


def _attn_kernel(q_ref, k_ref, v_ref, o_ref, *, scale, causal):
    q = q_ref[0].astype(jnp.float32)          # (S, Dh)
    k = k_ref[0].astype(jnp.float32)          # (S, Dh)
    v = v_ref[0].astype(jnp.float32)          # (S, Dh)
    # q @ k.T via dot_general (contract last dims) — avoids an XLU transpose.
    s = jax.lax.dot_general(q, k, (((1,), (1,)), ((), ())),
                            preferred_element_type=jnp.float32) * scale
    if causal:
        S = s.shape[0]
        row = jax.lax.broadcasted_iota(jnp.int32, (S, S), 0)
        col = jax.lax.broadcasted_iota(jnp.int32, (S, S), 1)
        s = jnp.where(col <= row, s, jnp.float32(NEG_INF))
    m = jnp.max(s, axis=-1, keepdims=True)
    p = jnp.exp(s - m)
    denom = jnp.sum(p, axis=-1, keepdims=True)
    o = jnp.dot(p, v, preferred_element_type=jnp.float32) / denom
    o_ref[...] = o[None, :, :].astype(o_ref.dtype)


def p_attention(q, k, v, causal=True):
    """q, k, v: (B*H, S, Dh) -> (B*H, S, Dh); grid parallel over batch*heads."""
    BH, S, Dh = q.shape
    scale = 1.0 / math.sqrt(Dh)
    return pl.pallas_call(
        functools.partial(_attn_kernel, scale=scale, causal=causal),
        out_shape=jax.ShapeDtypeStruct((BH, S, Dh), q.dtype),
        grid=(BH,),
        in_specs=[pl.BlockSpec((1, S, Dh), lambda i: (i, 0, 0)) for _ in range(3)],
        out_specs=pl.BlockSpec((1, S, Dh), lambda i: (i, 0, 0)),
        compiler_params=pltpu.CompilerParams(dimension_semantics=("parallel",)),
        cost_estimate=pl.CostEstimate(
            flops=4 * BH * S * S * Dh,
            transcendentals=BH * S * S,
            bytes_accessed=4 * 4 * BH * S * Dh,
        ),
    )(q, k, v)


def _pe_add_kernel(x_ref, pe_ref, o_ref):
    # Direct store of x + broadcast(pe); no temporaries, no concatenate.
    o_ref[...] = x_ref[...] + pe_ref[...]


def p_pe_add(x, pe_b):
    """x: (B, S, D), pe_b: (B, 1, D) (already sliced to B rows)."""
    B, S, D = x.shape
    return pl.pallas_call(
        _pe_add_kernel,
        out_shape=jax.ShapeDtypeStruct((B, S, D), x.dtype),
        grid=(B,),
        in_specs=[
            pl.BlockSpec((1, S, D), lambda b: (b, 0, 0)),
            pl.BlockSpec((1, 1, D), lambda b: (b, 0, 0)),
        ],
        out_specs=pl.BlockSpec((1, S, D), lambda b: (b, 0, 0)),
        compiler_params=pltpu.CompilerParams(dimension_semantics=("parallel",)),
    )(x, pe_b)


# ----------------------------------------------------------------------------
# pure-JAX reference ops (same signatures; used only for verification)
# ----------------------------------------------------------------------------
def _ref_linear(x, w, b, act="none"):
    y = jnp.dot(x, w) + b
    if act == "relu":
        y = jnp.maximum(y, 0.0)
    elif act == "leaky_relu":
        y = jnp.where(y > 0.0, y, 0.01 * y)
    return y


def _ref_layernorm(x, g, b):
    x = x.astype(jnp.float32)
    mu = jnp.mean(x, axis=-1, keepdims=True)
    xc = x - mu
    var = jnp.mean(xc * xc, axis=-1, keepdims=True)
    return xc * jax.lax.rsqrt(var + LN_EPS) * g + b


def _ref_add_layernorm(x, r, g, b):
    return _ref_layernorm(x + r, g, b)


def _ref_attention(q, k, v, causal=True):
    scale = 1.0 / math.sqrt(q.shape[-1])
    s = jnp.einsum("bqd,bkd->bqk", q, k) * scale
    if causal:
        S = q.shape[1]
        row = jax.lax.broadcasted_iota(jnp.int32, (S, S), 0)
        col = jax.lax.broadcasted_iota(jnp.int32, (S, S), 1)
        s = jnp.where((col <= row)[None, :, :], s, jnp.float32(NEG_INF))
    m = jnp.max(s, axis=-1, keepdims=True)
    p = jnp.exp(s - m)
    denom = jnp.sum(p, axis=-1, keepdims=True)
    return jnp.einsum("bqk,bkd->bqd", p, v) / denom


def _ref_pe_add(x, pe_b):
    return x + pe_b


PALLAS_OPS = dict(linear=p_linear, layernorm=p_layernorm,
                  add_layernorm=p_add_layernorm, attention=p_attention,
                  pe_add=p_pe_add)
REF_OPS = dict(linear=_ref_linear, layernorm=_ref_layernorm,
               add_layernorm=_ref_add_layernorm, attention=_ref_attention,
               pe_add=_ref_pe_add)


# ----------------------------------------------------------------------------
# model building blocks (composition identical for Pallas and reference ops)
# ----------------------------------------------------------------------------
def float_embedder(x2d, p, ops):
    h = ops["linear"](x2d, p["w1"], p["b1"], "relu")
    h = ops["linear"](h, p["w2"], p["b2"], "relu")
    h = ops["linear"](h, p["w3"], p["b3"], "none")
    h = ops["layernorm"](h, p["ln_g"], p["ln_b"])
    # TODO(synk): FloatEmbedder dropout is identity in eval mode.
    return h


def pos_encode(x, pe_table, ops):
    # Faithful to the original PositionalEncoder.forward: pe[:x.size(0)] is a
    # per-*batch* row (batch_first inputs) broadcast over the sequence axis.
    B, S, D = x.shape
    pe_b = pe_table[:B].reshape(B, 1, D)   # only the B needed rows are DMA'd
    return ops["pe_add"](x, pe_b)
    # TODO(synk): PositionalEncoder dropout is identity in eval mode.


def mha(xq, xk, xv, p, nhead, ops, causal=True):
    B, S, D = xq.shape
    Dh = D // nhead
    q = ops["linear"](xq.reshape(B * S, D), p["wq"], p["bq"], "none")
    k = ops["linear"](xk.reshape(B * S, D), p["wk"], p["bk"], "none")
    v = ops["linear"](xv.reshape(B * S, D), p["wv"], p["bv"], "none")

    def split(t):
        return t.reshape(B, S, nhead, Dh).transpose(0, 2, 1, 3).reshape(B * nhead, S, Dh)

    o = ops["attention"](split(q), split(k), split(v), causal)
    o = o.reshape(B, nhead, S, Dh).transpose(0, 2, 1, 3).reshape(B * S, D)
    o = ops["linear"](o, p["wo"], p["bo"], "none")
    return o.reshape(B, S, D)


def encoder_layer(x, p, nhead, ops, act):
    B, S, D = x.shape
    sa = mha(x, x, x, p["self_attn"], nhead, ops, causal=True)
    x2 = ops["add_layernorm"](x.reshape(B * S, D), sa.reshape(B * S, D),
                              p["ln1_g"], p["ln1_b"])
    ff = ops["linear"](x2, p["lin1_w"], p["lin1_b"], act)
    ff = ops["linear"](ff, p["lin2_w"], p["lin2_b"], "none")
    x3 = ops["add_layernorm"](x2, ff, p["ln2_g"], p["ln2_b"])
    return x3.reshape(B, S, D)


def decoder_layer(y, mem, p, nhead, ops, act):
    B, S, D = y.shape
    sa = mha(y, y, y, p["self_attn"], nhead, ops, causal=True)
    y2 = ops["add_layernorm"](y.reshape(B * S, D), sa.reshape(B * S, D),
                              p["ln1_g"], p["ln1_b"])
    y2_3d = y2.reshape(B, S, D)
    # memory_mask is the same causal mask (memory_is_causal=True).
    ca = mha(y2_3d, mem, mem, p["cross_attn"], nhead, ops, causal=True)
    y3 = ops["add_layernorm"](y2, ca.reshape(B * S, D), p["ln2_g"], p["ln2_b"])
    ff = ops["linear"](y3, p["lin1_w"], p["lin1_b"], act)
    ff = ops["linear"](ff, p["lin2_w"], p["lin2_b"], "none")
    y4 = ops["add_layernorm"](y3, ff, p["ln3_g"], p["ln3_b"])
    return y4.reshape(B, S, D)


def projector(x2d, p, ops):
    h = ops["linear"](x2d, p["w1"], p["b1"], "leaky_relu")
    h = ops["linear"](h, p["w2"], p["b2"], "none")
    h = ops["layernorm"](h, p["ln_g"], p["ln_b"])
    return h


def forward(params, states, actions, *, nhead, activation, ops):
    """TransformerModelEOS.forward (eval mode)."""
    if states.ndim != actions.ndim:
        raise ValueError("states and actions must have the same number of dims")
    if states.ndim == 1:
        states, actions = states[None, None, :], actions[None, None, :]
    elif states.ndim == 2:
        states, actions = states[None], actions[None]
    if states.shape[1] != actions.shape[1]:
        raise ValueError("The number of states and actions must be equal")

    B, S, _ = states.shape
    es = float_embedder(states.reshape(B * S, states.shape[-1]),
                        params["state_embedder"], ops)
    ea = float_embedder(actions.reshape(B * S, actions.shape[-1]),
                        params["action_embedder"], ops)
    D = es.shape[-1]

    src = pos_encode(es.reshape(B, S, D), params["pe"], ops)
    tgt = pos_encode(ea.reshape(B, S, D), params["pe"], ops)

    mem = src
    for lp in params["encoder_layers"]:
        mem = encoder_layer(mem, lp, nhead, ops, activation)
    mem = ops["layernorm"](mem.reshape(B * S, D),
                           params["enc_norm_g"], params["enc_norm_b"]).reshape(B, S, D)

    out = tgt
    for lp in params["decoder_layers"]:
        out = decoder_layer(out, mem, lp, nhead, ops, activation)
    out2 = ops["layernorm"](out.reshape(B * S, D),
                            params["dec_norm_g"], params["dec_norm_b"])

    proj = projector(out2, params["projector"], ops)      # (B*S, 2*action_dim)
    A2 = proj.shape[-1]
    return proj.reshape(B, S, A2 // 2, 2)


# ----------------------------------------------------------------------------
# parameter construction
# ----------------------------------------------------------------------------
def _linear_params(key, fan_in, fan_out):
    kw, kb = jax.random.split(key)
    lim = 1.0 / math.sqrt(fan_in)
    w = jax.random.uniform(kw, (fan_in, fan_out), jnp.float32, -lim, lim)
    b = jax.random.uniform(kb, (1, fan_out), jnp.float32, -lim, lim)
    return w, b


def _ln_params(n):
    return jnp.ones((1, n), jnp.float32), jnp.zeros((1, n), jnp.float32)


def _embedder_params(key, in_dim, embed_dim):
    k1, k2, k3 = jax.random.split(key, 3)
    w1, b1 = _linear_params(k1, in_dim, embed_dim // 4)
    w2, b2 = _linear_params(k2, embed_dim // 4, embed_dim // 2)
    w3, b3 = _linear_params(k3, embed_dim // 2, embed_dim)
    g, b = _ln_params(embed_dim)
    return dict(w1=w1, b1=b1, w2=w2, b2=b2, w3=w3, b3=b3, ln_g=g, ln_b=b)


def _attn_params(key, d_model):
    ks = jax.random.split(key, 4)
    wq, bq = _linear_params(ks[0], d_model, d_model)
    wk, bk = _linear_params(ks[1], d_model, d_model)
    wv, bv = _linear_params(ks[2], d_model, d_model)
    wo, bo = _linear_params(ks[3], d_model, d_model)
    return dict(wq=wq, bq=bq, wk=wk, bk=bk, wv=wv, bv=bv, wo=wo, bo=bo)


def _encoder_layer_params(key, d_model, d_ff):
    k1, k2, k3 = jax.random.split(key, 3)
    g1, bb1 = _ln_params(d_model)
    g2, bb2 = _ln_params(d_model)
    w1, b1 = _linear_params(k2, d_model, d_ff)
    w2, b2 = _linear_params(k3, d_ff, d_model)
    return dict(self_attn=_attn_params(k1, d_model),
                ln1_g=g1, ln1_b=bb1, ln2_g=g2, ln2_b=bb2,
                lin1_w=w1, lin1_b=b1, lin2_w=w2, lin2_b=b2)


def _decoder_layer_params(key, d_model, d_ff):
    k1, k2, k3, k4 = jax.random.split(key, 4)
    g1, bb1 = _ln_params(d_model)
    g2, bb2 = _ln_params(d_model)
    g3, bb3 = _ln_params(d_model)
    w1, b1 = _linear_params(k3, d_model, d_ff)
    w2, b2 = _linear_params(k4, d_ff, d_model)
    return dict(self_attn=_attn_params(k1, d_model),
                cross_attn=_attn_params(k2, d_model),
                ln1_g=g1, ln1_b=bb1, ln2_g=g2, ln2_b=bb2, ln3_g=g3, ln3_b=bb3,
                lin1_w=w1, lin1_b=b1, lin2_w=w2, lin2_b=b2)


def sinusoidal_pe(max_len, d_model):
    # Identical to the PyTorch PositionalEncoder table (interleaved sin/cos).
    pos = jnp.arange(max_len, dtype=jnp.float32)[:, None]
    div = jnp.exp(jnp.arange(0, d_model, 2, dtype=jnp.float32)
                  * (-math.log(10000.0) / d_model))
    ang = pos * div                                     # (max_len, d_model/2)
    return jnp.stack([jnp.sin(ang), jnp.cos(ang)], axis=-1).reshape(max_len, d_model)


def init_params(key, state_dim, action_dim, d_model, n_enc, n_dec, d_ff, max_len):
    keys = jax.random.split(key, 4 + n_enc + n_dec)
    enc_g, enc_b = _ln_params(d_model)
    dec_g, dec_b = _ln_params(d_model)
    pw1, pb1 = _linear_params(keys[2], d_model, d_model // 2)
    pw2, pb2 = _linear_params(keys[3], d_model // 2, 2 * action_dim)
    pg, pb = _ln_params(2 * action_dim)
    return dict(
        state_embedder=_embedder_params(keys[0], state_dim, d_model),
        action_embedder=_embedder_params(keys[1], action_dim, d_model),
        pe=sinusoidal_pe(max_len, d_model),
        encoder_layers=[_encoder_layer_params(keys[4 + i], d_model, d_ff)
                        for i in range(n_enc)],
        decoder_layers=[_decoder_layer_params(keys[4 + n_enc + i], d_model, d_ff)
                        for i in range(n_dec)],
        enc_norm_g=enc_g, enc_norm_b=enc_b,
        dec_norm_g=dec_g, dec_norm_b=dec_b,
        projector=dict(w1=pw1, b1=pb1, w2=pw2, b2=pb2, ln_g=pg, ln_b=pb),
    )


# ----------------------------------------------------------------------------
# demo / self-check
# ----------------------------------------------------------------------------
if __name__ == "__main__":
    # Use full-precision f32 matmuls so the Pallas (MXU) and XLA reference
    # paths agree tightly.
    jax.config.update("jax_default_matmul_precision", "highest")

    # Small hyper-parameters consistent with the module.
    STATE_DIM, ACTION_DIM = 8, 4
    D_MODEL, NHEAD = 32, 2
    N_ENC, N_DEC = 2, 2
    D_FF = 64
    MAX_LEN = 16
    B, S = 2, 8

    key = jax.random.PRNGKey(0)
    kp, ks, ka = jax.random.split(key, 3)
    params = init_params(kp, STATE_DIM, ACTION_DIM, D_MODEL, N_ENC, N_DEC,
                         D_FF, MAX_LEN)
    states = jax.random.normal(ks, (B, S, STATE_DIM), dtype=jnp.float32)
    actions = jax.random.normal(ka, (B, S, ACTION_DIM), dtype=jnp.float32)

    fwd_pallas = jax.jit(functools.partial(forward, nhead=NHEAD,
                                           activation="relu", ops=PALLAS_OPS))
    fwd_ref = jax.jit(functools.partial(forward, nhead=NHEAD,
                                        activation="relu", ops=REF_OPS))

    out = jax.block_until_ready(fwd_pallas(params, states, actions))
    ref = jax.block_until_ready(fwd_ref(params, states, actions))

    assert out.shape == (B, S, ACTION_DIM, 2), out.shape
    assert bool(jnp.all(jnp.isfinite(out))), "non-finite values in output"
    err = float(jnp.max(jnp.abs(out - ref)))
    assert err < 1e-2, f"Pallas vs reference mismatch: {err}"

    print("KERNEL_OK")
</pallas_src>

<mosaic_0001>
module attributes {stable_mosaic.version = 11 : i64} {
  func.func @_linear_kernel(%arg0: i32, %arg1: memref<16x4xf32, #tpu.memory_space<vmem>>, %arg2: memref<4x8xf32, #tpu.memory_space<vmem>>, %arg3: memref<1x8xf32, #tpu.memory_space<vmem>>, %arg4: memref<16x8xf32, #tpu.memory_space<vmem>>) attributes {dimension_semantics = [#tpu.dimension_semantics<parallel>], iteration_bounds = array<i64: 1>, scalar_prefetch = 0 : i64, scratch_operands = 0 : i64, tpu.core_type = #tpu.core_type<tc>, window_params = [{transform_indices = @transform_0, window_bounds = array<i64: 16, 4>}, {pipeline_mode = #tpu.pipeline_mode<synchronous>, transform_indices = @transform_1, window_bounds = array<i64: 4, 8>}, {pipeline_mode = #tpu.pipeline_mode<synchronous>, transform_indices = @transform_2, window_bounds = array<i64: 1, 8>}, {transform_indices = @transform_3, window_bounds = array<i64: 16, 8>}]} {
    %c0 = arith.constant 0 : index
    %c0_0 = arith.constant 0 : index
    %0 = vector.load %arg1[%c0, %c0_0] : memref<16x4xf32, #tpu.memory_space<vmem>>, vector<16x4xf32>
    %c0_1 = arith.constant 0 : index
    %c0_2 = arith.constant 0 : index
    %1 = vector.load %arg2[%c0_1, %c0_2] : memref<4x8xf32, #tpu.memory_space<vmem>>, vector<4x8xf32>
    %cst = arith.constant dense<0.000000e+00> : vector<16x8xf32>
    %2 = tpu.matmul %0, %1, %cst {dimension_numbers = #tpu.dot_dimension_numbers<[1], [0], [0], [1], [0, 0, 1, 1], [], []>, precision = #tpu.contract_precision<fp32>} : vector<16x4xf32>, vector<4x8xf32>, vector<16x8xf32> -> vector<16x8xf32>
    %c0_3 = arith.constant 0 : index
    %c0_4 = arith.constant 0 : index
    %3 = vector.load %arg3[%c0_3, %c0_4] : memref<1x8xf32, #tpu.memory_space<vmem>>, vector<1x8xf32>
    %4 = vector.broadcast %3 : vector<1x8xf32> to vector<16x8xf32>
    %5 = arith.addf %2, %4 : vector<16x8xf32>
    %cst_5 = arith.constant 0.000000e+00 : f32
    %6 = vector.broadcast %cst_5 : f32 to vector<16x8xf32>
    %7 = arith.maximumf %5, %6 : vector<16x8xf32>
    %c0_6 = arith.constant 0 : index
    %c0_7 = arith.constant 0 : index
    %8 = vector.load %arg4[%c0_6, %c0_7] : memref<16x8xf32, #tpu.memory_space<vmem>>, vector<16x8xf32>
    tpu.vector_store %arg4[%c0_6, %c0_7], %7 {strides = array<i32>} : memref<16x8xf32, #tpu.memory_space<vmem>>, vector<16x8xf32>,
    return
  }
  func.func @transform_0(%arg0: i32) -> (i32, i32) {
    %c0_i32 = arith.constant 0 : i32
    %c0_i32_0 = arith.constant 0 : i32
    return %arg0, %c0_i32 : i32, i32
  }
  func.func @transform_1(%arg0: i32) -> (i32, i32) {
    %c0_i32 = arith.constant 0 : i32
    %c0_i32_0 = arith.constant 0 : i32
    %c0_i32_1 = arith.constant 0 : i32
    return %c0_i32, %c0_i32_0 : i32, i32
  }
  func.func @transform_2(%arg0: i32) -> (i32, i32) {
    %c0_i32 = arith.constant 0 : i32
    %c0_i32_0 = arith.constant 0 : i32
    %c0_i32_1 = arith.constant 0 : i32
    return %c0_i32, %c0_i32_0 : i32, i32
  }
  func.func @transform_3(%arg0: i32) -> (i32, i32) {
    %c0_i32 = arith.constant 0 : i32
    %c0_i32_0 = arith.constant 0 : i32
    return %arg0, %c0_i32 : i32, i32
  }
}

module attributes {stable_mosaic.version = 11 : i64} {
  func.func @_linear_kernel(%arg0: i32, %arg1: memref<16x8xf32, #tpu.memory_space<vmem>>, %arg2: memref<8x16xf32, #tpu.memory_space<vmem>>, %arg3: memref<1x16xf32, #tpu.memory_space<vmem>>, %arg4: memref<16x16xf32, #tpu.memory_space<vmem>>) attributes {dimension_semantics = [#tpu.dimension_semantics<parallel>], iteration_bounds = array<i64: 1>, scalar_prefetch = 0 : i64, scratch_operands = 0 : i64, tpu.core_type = #tpu.core_type<tc>, window_params = [{transform_indices = @transform_0, window_bounds = array<i64: 16, 8>}, {pipeline_mode = #tpu.pipeline_mode<synchronous>, transform_indices = @transform_1, window_bounds = array<i64: 8, 16>}, {pipeline_mode = #tpu.pipeline_mode<synchronous>, transform_indices = @transform_2, window_bounds = array<i64: 1, 16>}, {transform_indices = @transform_3, window_bounds = array<i64: 16, 16>}]} {
    %c0 = arith.constant 0 : index
    %c0_0 = arith.constant 0 : index
    %0 = vector.load %arg1[%c0, %c0_0] : memref<16x8xf32, #tpu.memory_space<vmem>>, vector<16x8xf32>
    %c0_1 = arith.constant 0 : index
    %c0_2 = arith.constant 0 : index
    %1 = vector.load %arg2[%c0_1, %c0_2] : memref<8x16xf32, #tpu.memory_space<vmem>>, vector<8x16xf32>
    %cst = arith.constant dense<0.000000e+00> : vector<16x16xf32>
    %2 = tpu.matmul %0, %1, %cst {dimension_numbers = #tpu.dot_dimension_numbers<[1], [0], [0], [1], [0, 0, 1, 1], [], []>, precision = #tpu.contract_precision<fp32>} : vector<16x8xf32>, vector<8x16xf32>, vector<16x16xf32> -> vector<16x16xf32>
    %c0_3 = arith.constant 0 : index
    %c0_4 = arith.constant 0 : index
    %3 = vector.load %arg3[%c0_3, %c0_4] : memref<1x16xf32, #tpu.memory_space<vmem>>, vector<1x16xf32>
    %4 = vector.broadcast %3 : vector<1x16xf32> to vector<16x16xf32>
    %5 = arith.addf %2, %4 : vector<16x16xf32>
    %cst_5 = arith.constant 0.000000e+00 : f32
    %6 = vector.broadcast %cst_5 : f32 to vector<16x16xf32>
    %7 = arith.maximumf %5, %6 : vector<16x16xf32>
    %c0_6 = arith.constant 0 : index
    %c0_7 = arith.constant 0 : index
    %8 = vector.load %arg4[%c0_6, %c0_7] : memref<16x16xf32, #tpu.memory_space<vmem>>, vector<16x16xf32>
    tpu.vector_store %arg4[%c0_6, %c0_7], %7 {strides = array<i32>} : memref<16x16xf32, #tpu.memory_space<vmem>>, vector<16x16xf32>,
    return
  }
  func.func @transform_0(%arg0: i32) -> (i32, i32) {
    %c0_i32 = arith.constant 0 : i32
    %c0_i32_0 = arith.constant 0 : i32
    return %arg0, %c0_i32 : i32, i32
  }
  func.func @transform_1(%arg0: i32) -> (i32, i32) {
    %c0_i32 = arith.constant 0 : i32
    %c0_i32_0 = arith.constant 0 : i32
    %c0_i32_1 = arith.constant 0 : i32
    return %c0_i32, %c0_i32_0 : i32, i32
  }
  func.func @transform_2(%arg0: i32) -> (i32, i32) {
    %c0_i32 = arith.constant 0 : i32
    %c0_i32_0 = arith.constant 0 : i32
    %c0_i32_1 = arith.constant 0 : i32
    return %c0_i32, %c0_i32_0 : i32, i32
  }
  func.func @transform_3(%arg0: i32) -> (i32, i32) {
    %c0_i32 = arith.constant 0 : i32
    %c0_i32_0 = arith.constant 0 : i32
    return %arg0, %c0_i32 : i32, i32
  }
}

module attributes {stable_mosaic.version = 11 : i64} {
  func.func @_linear_kernel(%arg0: i32, %arg1: memref<16x16xf32, #tpu.memory_space<vmem>>, %arg2: memref<16x32xf32, #tpu.memory_space<vmem>>, %arg3: memref<1x32xf32, #tpu.memory_space<vmem>>, %arg4: memref<16x32xf32, #tpu.memory_space<vmem>>) attributes {dimension_semantics = [#tpu.dimension_semantics<parallel>], iteration_bounds = array<i64: 1>, scalar_prefetch = 0 : i64, scratch_operands = 0 : i64, tpu.core_type = #tpu.core_type<tc>, window_params = [{transform_indices = @transform_0, window_bounds = array<i64: 16, 16>}, {pipeline_mode = #tpu.pipeline_mode<synchronous>, transform_indices = @transform_1, window_bounds = array<i64: 16, 32>}, {pipeline_mode = #tpu.pipeline_mode<synchronous>, transform_indices = @transform_2, window_bounds = array<i64: 1, 32>}, {transform_indices = @transform_3, window_bounds = array<i64: 16, 32>}]} {
    %c0 = arith.constant 0 : index
    %c0_0 = arith.constant 0 : index
    %0 = vector.load %arg1[%c0, %c0_0] : memref<16x16xf32, #tpu.memory_space<vmem>>, vector<16x16xf32>
    %c0_1 = arith.constant 0 : index
    %c0_2 = arith.constant 0 : index
    %1 = vector.load %arg2[%c0_1, %c0_2] : memref<16x32xf32, #tpu.memory_space<vmem>>, vector<16x32xf32>
    %cst = arith.constant dense<0.000000e+00> : vector<16x32xf32>
    %2 = tpu.matmul %0, %1, %cst {dimension_numbers = #tpu.dot_dimension_numbers<[1], [0], [0], [1], [0, 0, 1, 1], [], []>, precision = #tpu.contract_precision<fp32>} : vector<16x16xf32>, vector<16x32xf32>, vector<16x32xf32> -> vector<16x32xf32>
    %c0_3 = arith.constant 0 : index
    %c0_4 = arith.constant 0 : index
    %3 = vector.load %arg3[%c0_3, %c0_4] : memref<1x32xf32, #tpu.memory_space<vmem>>, vector<1x32xf32>
    %4 = vector.broadcast %3 : vector<1x32xf32> to vector<16x32xf32>
    %5 = arith.addf %2, %4 : vector<16x32xf32>
    %c0_5 = arith.constant 0 : index
    %c0_6 = arith.constant 0 : index
    %6 = vector.load %arg4[%c0_5, %c0_6] : memref<16x32xf32, #tpu.memory_space<vmem>>, vector<16x32xf32>
    tpu.vector_store %arg4[%c0_5, %c0_6], %5 {strides = array<i32>} : memref<16x32xf32, #tpu.memory_space<vmem>>, vector<16x32xf32>,
    return
  }
  func.func @transform_0(%arg0: i32) -> (i32, i32) {
    %c0_i32 = arith.constant 0 : i32
    %c0_i32_0 = arith.constant 0 : i32
    return %arg0, %c0_i32 : i32, i32
  }
  func.func @transform_1(%arg0: i32) -> (i32, i32) {
    %c0_i32 = arith.constant 0 : i32
    %c0_i32_0 = arith.constant 0 : i32
    %c0_i32_1 = arith.constant 0 : i32
    return %c0_i32, %c0_i32_0 : i32, i32
  }
  func.func @transform_2(%arg0: i32) -> (i32, i32) {
    %c0_i32 = arith.constant 0 : i32
    %c0_i32_0 = arith.constant 0 : i32
    %c0_i32_1 = arith.constant 0 : i32
    return %c0_i32, %c0_i32_0 : i32, i32
  }
  func.func @transform_3(%arg0: i32) -> (i32, i32) {
    %c0_i32 = arith.constant 0 : i32
    %c0_i32_0 = arith.constant 0 : i32
    return %arg0, %c0_i32 : i32, i32
  }
}

module attributes {stable_mosaic.version = 11 : i64} {
  func.func @_ln_kernel(%arg0: i32, %arg1: memref<16x32xf32, #tpu.memory_space<vmem>>, %arg2: memref<1x32xf32, #tpu.memory_space<vmem>>, %arg3: memref<1x32xf32, #tpu.memory_space<vmem>>, %arg4: memref<16x32xf32, #tpu.memory_space<vmem>>) attributes {dimension_semantics = [#tpu.dimension_semantics<parallel>], iteration_bounds = array<i64: 1>, scalar_prefetch = 0 : i64, scratch_operands = 0 : i64, tpu.core_type = #tpu.core_type<tc>, window_params = [{transform_indices = @transform_0, window_bounds = array<i64: 16, 32>}, {pipeline_mode = #tpu.pipeline_mode<synchronous>, transform_indices = @transform_1, window_bounds = array<i64: 1, 32>}, {pipeline_mode = #tpu.pipeline_mode<synchronous>, transform_indices = @transform_2, window_bounds = array<i64: 1, 32>}, {transform_indices = @transform_3, window_bounds = array<i64: 16, 32>}]} {
    %c0 = arith.constant 0 : index
    %c0_0 = arith.constant 0 : index
    %0 = vector.load %arg1[%c0, %c0_0] : memref<16x32xf32, #tpu.memory_space<vmem>>, vector<16x32xf32>
    %cst = arith.constant dense<0.000000e+00> : vector<16xf32>
    %1 = vector.multi_reduction <add>, %0, %cst [1] : vector<16x32xf32> to vector<16xf32>
    %2 = vector.shape_cast %1 : vector<16xf32> to vector<16x1xf32>
    %cst_1 = arith.constant 3.200000e+01 : f32
    %3 = vector.broadcast %cst_1 : f32 to vector<16x1xf32>
    %4 = arith.divf %2, %3 : vector<16x1xf32>
    %5 = vector.broadcast %4 : vector<16x1xf32> to vector<16x32xf32>
    %6 = arith.subf %0, %5 : vector<16x32xf32>
    %7 = arith.mulf %6, %6 : vector<16x32xf32>
    %cst_2 = arith.constant dense<0.000000e+00> : vector<16xf32>
    %8 = vector.multi_reduction <add>, %7, %cst_2 [1] : vector<16x32xf32> to vector<16xf32>
    %9 = vector.shape_cast %8 : vector<16xf32> to vector<16x1xf32>
    %cst_3 = arith.constant 3.200000e+01 : f32
    %10 = vector.broadcast %cst_3 : f32 to vector<16x1xf32>
    %11 = arith.divf %9, %10 : vector<16x1xf32>
    %cst_4 = arith.constant 9.99999974E-6 : f32
    %12 = vector.broadcast %cst_4 : f32 to vector<16x1xf32>
    %13 = arith.addf %11, %12 : vector<16x1xf32>
    %14 = math.rsqrt %13 : vector<16x1xf32>
    %15 = vector.broadcast %14 : vector<16x1xf32> to vector<16x32xf32>
    %16 = arith.mulf %6, %15 : vector<16x32xf32>
    %c0_5 = arith.constant 0 : index
    %c0_6 = arith.constant 0 : index
    %17 = vector.load %arg2[%c0_5, %c0_6] : memref<1x32xf32, #tpu.memory_space<vmem>>, vector<1x32xf32>
    %18 = vector.broadcast %17 : vector<1x32xf32> to vector<16x32xf32>
    %19 = arith.mulf %16, %18 : vector<16x32xf32>
    %c0_7 = arith.constant 0 : index
    %c0_8 = arith.constant 0 : index
    %20 = vector.load %arg3[%c0_7, %c0_8] : memref<1x32xf32, #tpu.memory_space<vmem>>, vector<1x32xf32>
    %21 = vector.broadcast %20 : vector<1x32xf32> to vector<16x32xf32>
    %22 = arith.addf %19, %21 : vector<16x32xf32>
    %c0_9 = arith.constant 0 : index
    %c0_10 = arith.constant 0 : index
    %23 = vector.load %arg4[%c0_9, %c0_10] : memref<16x32xf32, #tpu.memory_space<vmem>>, vector<16x32xf32>
    tpu.vector_store %arg4[%c0_9, %c0_10], %22 {strides = array<i32>} : memref<16x32xf32, #tpu.memory_space<vmem>>, vector<16x32xf32>,
    return
  }
  func.func @transform_0(%arg0: i32) -> (i32, i32) {
    %c0_i32 = arith.constant 0 : i32
    %c0_i32_0 = arith.constant 0 : i32
    return %arg0, %c0_i32 : i32, i32
  }
  func.func @transform_1(%arg0: i32) -> (i32, i32) {
    %c0_i32 = arith.constant 0 : i32
    %c0_i32_0 = arith.constant 0 : i32
    %c0_i32_1 = arith.constant 0 : i32
    return %c0_i32, %c0_i32_0 : i32, i32
  }
  func.func @transform_2(%arg0: i32) -> (i32, i32) {
    %c0_i32 = arith.constant 0 : i32
    %c0_i32_0 = arith.constant 0 : i32
    %c0_i32_1 = arith.constant 0 : i32
    return %c0_i32, %c0_i32_0 : i32, i32
  }
  func.func @transform_3(%arg0: i32) -> (i32, i32) {
    %c0_i32 = arith.constant 0 : i32
    %c0_i32_0 = arith.constant 0 : i32
    return %arg0, %c0_i32 : i32, i32
  }
}

module attributes {stable_mosaic.version = 11 : i64} {
  func.func @_pe_add_kernel(%arg0: i32, %arg1: memref<1x8x32xf32, #tpu.memory_space<vmem>>, %arg2: memref<1x1x32xf32, #tpu.memory_space<vmem>>, %arg3: memref<1x8x32xf32, #tpu.memory_space<vmem>>) attributes {dimension_semantics = [#tpu.dimension_semantics<parallel>], iteration_bounds = array<i64: 2>, scalar_prefetch = 0 : i64, scratch_operands = 0 : i64, tpu.core_type = #tpu.core_type<tc>, window_params = [{transform_indices = @transform_0, window_bounds = array<i64: 1, 8, 32>}, {transform_indices = @transform_1, window_bounds = array<i64: 1, 1, 32>}, {transform_indices = @transform_2, window_bounds = array<i64: 1, 8, 32>}]} {
    %c0 = arith.constant 0 : index
    %c0_0 = arith.constant 0 : index
    %c0_1 = arith.constant 0 : index
    %0 = vector.load %arg1[%c0, %c0_0, %c0_1] : memref<1x8x32xf32, #tpu.memory_space<vmem>>, vector<1x8x32xf32>
    %c0_2 = arith.constant 0 : index
    %c0_3 = arith.constant 0 : index
    %c0_4 = arith.constant 0 : index
    %1 = vector.load %arg2[%c0_2, %c0_3, %c0_4] : memref<1x1x32xf32, #tpu.memory_space<vmem>>, vector<1x1x32xf32>
    %2 = vector.broadcast %1 : vector<1x1x32xf32> to vector<1x8x32xf32>
    %3 = arith.addf %0, %2 : vector<1x8x32xf32>
    %c0_5 = arith.constant 0 : index
    %c0_6 = arith.constant 0 : index
    %c0_7 = arith.constant 0 : index
    %4 = vector.load %arg3[%c0_5, %c0_6, %c0_7] : memref<1x8x32xf32, #tpu.memory_space<vmem>>, vector<1x8x32xf32>
    tpu.vector_store %arg3[%c0_5, %c0_6, %c0_7], %3 {strides = array<i32>} : memref<1x8x32xf32, #tpu.memory_space<vmem>>, vector<1x8x32xf32>,
    return
  }
  func.func @transform_0(%arg0: i32) -> (i32, i32, i32) {
    %c0_i32 = arith.constant 0 : i32
    %c0_i32_0 = arith.constant 0 : i32
    %c0_i32_1 = arith.constant 0 : i32
    return %arg0, %c0_i32, %c0_i32_0 : i32, i32, i32
  }
  func.func @transform_1(%arg0: i32) -> (i32, i32, i32) {
    %c0_i32 = arith.constant 0 : i32
    %c0_i32_0 = arith.constant 0 : i32
    %c0_i32_1 = arith.constant 0 : i32
    return %arg0, %c0_i32, %c0_i32_0 : i32, i32, i32
  }
  func.func @transform_2(%arg0: i32) -> (i32, i32, i32) {
    %c0_i32 = arith.constant 0 : i32
    %c0_i32_0 = arith.constant 0 : i32
    %c0_i32_1 = arith.constant 0 : i32
    return %arg0, %c0_i32, %c0_i32_0 : i32, i32, i32
  }
}

module attributes {stable_mosaic.version = 11 : i64} {
  func.func @_linear_kernel(%arg0: i32, %arg1: memref<16x32xf32, #tpu.memory_space<vmem>>, %arg2: memref<32x32xf32, #tpu.memory_space<vmem>>, %arg3: memref<1x32xf32, #tpu.memory_space<vmem>>, %arg4: memref<16x32xf32, #tpu.memory_space<vmem>>) attributes {dimension_semantics = [#tpu.dimension_semantics<parallel>], iteration_bounds = array<i64: 1>, scalar_prefetch = 0 : i64, scratch_operands = 0 : i64, tpu.core_type = #tpu.core_type<tc>, window_params = [{transform_indices = @transform_0, window_bounds = array<i64: 16, 32>}, {pipeline_mode = #tpu.pipeline_mode<synchronous>, transform_indices = @transform_1, window_bounds = array<i64: 32, 32>}, {pipeline_mode = #tpu.pipeline_mode<synchronous>, transform_indices = @transform_2, window_bounds = array<i64: 1, 32>}, {transform_indices = @transform_3, window_bounds = array<i64: 16, 32>}]} {
    %c0 = arith.constant 0 : index
    %c0_0 = arith.constant 0 : index
    %0 = vector.load %arg1[%c0, %c0_0] : memref<16x32xf32, #tpu.memory_space<vmem>>, vector<16x32xf32>
    %c0_1 = arith.constant 0 : index
    %c0_2 = arith.constant 0 : index
    %1 = vector.load %arg2[%c0_1, %c0_2] : memref<32x32xf32, #tpu.memory_space<vmem>>, vector<32x32xf32>
    %cst = arith.constant dense<0.000000e+00> : vector<16x32xf32>
    %2 = tpu.matmul %0, %1, %cst {dimension_numbers = #tpu.dot_dimension_numbers<[1], [0], [0], [1], [0, 0, 1, 1], [], []>, precision = #tpu.contract_precision<fp32>} : vector<16x32xf32>, vector<32x32xf32>, vector<16x32xf32> -> vector<16x32xf32>
    %c0_3 = arith.constant 0 : index
    %c0_4 = arith.constant 0 : index
    %3 = vector.load %arg3[%c0_3, %c0_4] : memref<1x32xf32, #tpu.memory_space<vmem>>, vector<1x32xf32>
    %4 = vector.broadcast %3 : vector<1x32xf32> to vector<16x32xf32>
    %5 = arith.addf %2, %4 : vector<16x32xf32>
    %c0_5 = arith.constant 0 : index
    %c0_6 = arith.constant 0 : index
    %6 = vector.load %arg4[%c0_5, %c0_6] : memref<16x32xf32, #tpu.memory_space<vmem>>, vector<16x32xf32>
    tpu.vector_store %arg4[%c0_5, %c0_6], %5 {strides = array<i32>} : memref<16x32xf32, #tpu.memory_space<vmem>>, vector<16x32xf32>,
    return
  }
  func.func @transform_0(%arg0: i32) -> (i32, i32) {
    %c0_i32 = arith.constant 0 : i32
    %c0_i32_0 = arith.constant 0 : i32
    return %arg0, %c0_i32 : i32, i32
  }
  func.func @transform_1(%arg0: i32) -> (i32, i32) {
    %c0_i32 = arith.constant 0 : i32
    %c0_i32_0 = arith.constant 0 : i32
    %c0_i32_1 = arith.constant 0 : i32
    return %c0_i32, %c0_i32_0 : i32, i32
  }
  func.func @transform_2(%arg0: i32) -> (i32, i32) {
    %c0_i32 = arith.constant 0 : i32
    %c0_i32_0 = arith.constant 0 : i32
    %c0_i32_1 = arith.constant 0 : i32
    return %c0_i32, %c0_i32_0 : i32, i32
  }
  func.func @transform_3(%arg0: i32) -> (i32, i32) {
    %c0_i32 = arith.constant 0 : i32
    %c0_i32_0 = arith.constant 0 : i32
    return %arg0, %c0_i32 : i32, i32
  }
}

module attributes {stable_mosaic.version = 11 : i64} {
  func.func @_attn_kernel(%arg0: i32, %arg1: memref<1x8x16xf32, #tpu.memory_space<vmem>>, %arg2: memref<1x8x16xf32, #tpu.memory_space<vmem>>, %arg3: memref<1x8x16xf32, #tpu.memory_space<vmem>>, %arg4: memref<1x8x16xf32, #tpu.memory_space<vmem>>) attributes {dimension_semantics = [#tpu.dimension_semantics<parallel>], iteration_bounds = array<i64: 4>, scalar_prefetch = 0 : i64, scratch_operands = 0 : i64, tpu.core_type = #tpu.core_type<tc>, window_params = [{transform_indices = @transform_0, window_bounds = array<i64: 1, 8, 16>}, {transform_indices = @transform_1, window_bounds = array<i64: 1, 8, 16>}, {transform_indices = @transform_2, window_bounds = array<i64: 1, 8, 16>}, {transform_indices = @transform_3, window_bounds = array<i64: 1, 8, 16>}]} {
    %c0 = arith.constant 0 : index
    %c0_0 = arith.constant 0 : index
    %c0_1 = arith.constant 0 : index
    %0 = vector.load %arg1[%c0, %c0_0, %c0_1] : memref<1x8x16xf32, #tpu.memory_space<vmem>>, vector<1x8x16xf32>
    %1 = vector.shape_cast %0 : vector<1x8x16xf32> to vector<8x16xf32>
    %c0_2 = arith.constant 0 : index
    %c0_3 = arith.constant 0 : index
    %c0_4 = arith.constant 0 : index
    %2 = vector.load %arg2[%c0_2, %c0_3, %c0_4] : memref<1x8x16xf32, #tpu.memory_space<vmem>>, vector<1x8x16xf32>
    %3 = vector.shape_cast %2 : vector<1x8x16xf32> to vector<8x16xf32>
    %c0_5 = arith.constant 0 : index
    %c0_6 = arith.constant 0 : index
    %c0_7 = arith.constant 0 : index
    %4 = vector.load %arg3[%c0_5, %c0_6, %c0_7] : memref<1x8x16xf32, #tpu.memory_space<vmem>>, vector<1x8x16xf32>
    %5 = vector.shape_cast %4 : vector<1x8x16xf32> to vector<8x16xf32>
    %cst = arith.constant dense<0.000000e+00> : vector<8x8xf32>
    %6 = tpu.matmul %1, %3, %cst {dimension_numbers = #tpu.dot_dimension_numbers<[1], [1], [0], [0], [0, 0, 1, 0], [], []>, precision = #tpu.contract_precision<fp32>} : vector<8x16xf32>, vector<8x16xf32>, vector<8x8xf32> -> vector<8x8xf32>
    %cst_8 = arith.constant 2.500000e-01 : f32
    %7 = vector.broadcast %cst_8 : f32 to vector<8x8xf32>
    %8 = arith.mulf %6, %7 : vector<8x8xf32>
    %9 = tpu.iota {dimensions = array<i32: 0>} : vector<8x8xi32>
    %10 = tpu.iota {dimensions = array<i32: 1>} : vector<8x8xi32>
    %11 = arith.cmpi sle, %10, %9 : vector<8x8xi32>
    %cst_9 = arith.constant -1.000000e+30 : f32
    %12 = vector.broadcast %cst_9 : f32 to vector<8x8xf32>
    %13 = arith.select %11, %8, %12 : vector<8x8xi1>, vector<8x8xf32>
    %cst_10 = arith.constant dense<0xFF800000> : vector<8xf32>
    %14 = vector.multi_reduction <maximumf>, %13, %cst_10 [1] : vector<8x8xf32> to vector<8xf32>
    %15 = vector.shape_cast %14 : vector<8xf32> to vector<8x1xf32>
    %16 = vector.broadcast %15 : vector<8x1xf32> to vector<8x8xf32>
    %17 = arith.subf %13, %16 : vector<8x8xf32>
    %18 = math.exp %17 : vector<8x8xf32>
    %cst_11 = arith.constant dense<0.000000e+00> : vector<8xf32>
    %19 = vector.multi_reduction <add>, %18, %cst_11 [1] : vector<8x8xf32> to vector<8xf32>
    %20 = vector.shape_cast %19 : vector<8xf32> to vector<8x1xf32>
    %cst_12 = arith.constant dense<0.000000e+00> : vector<8x16xf32>
    %21 = tpu.matmul %18, %5, %cst_12 {dimension_numbers = #tpu.dot_dimension_numbers<[1], [0], [0], [1], [0, 0, 1, 1], [], []>, precision = #tpu.contract_precision<fp32>} : vector<8x8xf32>, vector<8x16xf32>, vector<8x16xf32> -> vector<8x16xf32>
    %22 = vector.broadcast %20 : vector<8x1xf32> to vector<8x16xf32>
    %23 = arith.divf %21, %22 : vector<8x16xf32>
    %24 = vector.shape_cast %23 : vector<8x16xf32> to vector<1x8x16xf32>
    %c0_13 = arith.constant 0 : index
    %c0_14 = arith.constant 0 : index
    %c0_15 = arith.constant 0 : index
    %25 = vector.load %arg4[%c0_13, %c0_14, %c0_15] : memref<1x8x16xf32, #tpu.memory_space<vmem>>, vector<1x8x16xf32>
    tpu.vector_store %arg4[%c0_13, %c0_14, %c0_15], %24 {strides = array<i32>} : memref<1x8x16xf32, #tpu.memory_space<vmem>>, vector<1x8x16xf32>,
    return
  }
  func.func @transform_0(%arg0: i32) -> (i32, i32, i32) {
    %c0_i32 = arith.constant 0 : i32
    %c0_i32_0 = arith.constant 0 : i32
    %c0_i32_1 = arith.constant 0 : i32
    return %arg0, %c0_i32, %c0_i32_0 : i32, i32, i32
  }
  func.func @transform_1(%arg0: i32) -> (i32, i32, i32) {
    %c0_i32 = arith.constant 0 : i32
    %c0_i32_0 = arith.constant 0 : i32
    %c0_i32_1 = arith.constant 0 : i32
    return %arg0, %c0_i32, %c0_i32_0 : i32, i32, i32
  }
  func.func @transform_2(%arg0: i32) -> (i32, i32, i32) {
    %c0_i32 = arith.constant 0 : i32
    %c0_i32_0 = arith.constant 0 : i32
    %c0_i32_1 = arith.constant 0 : i32
    return %arg0, %c0_i32, %c0_i32_0 : i32, i32, i32
  }
  func.func @transform_3(%arg0: i32) -> (i32, i32, i32) {
    %c0_i32 = arith.constant 0 : i32
    %c0_i32_0 = arith.constant 0 : i32
    %c0_i32_1 = arith.constant 0 : i32
    return %arg0, %c0_i32, %c0_i32_0 : i32, i32, i32
  }
}

module attributes {stable_mosaic.version = 11 : i64} {
  func.func @_add_ln_kernel(%arg0: i32, %arg1: memref<16x32xf32, #tpu.memory_space<vmem>>, %arg2: memref<16x32xf32, #tpu.memory_space<vmem>>, %arg3: memref<1x32xf32, #tpu.memory_space<vmem>>, %arg4: memref<1x32xf32, #tpu.memory_space<vmem>>, %arg5: memref<16x32xf32, #tpu.memory_space<vmem>>) attributes {dimension_semantics = [#tpu.dimension_semantics<parallel>], iteration_bounds = array<i64: 1>, scalar_prefetch = 0 : i64, scratch_operands = 0 : i64, tpu.core_type = #tpu.core_type<tc>, window_params = [{transform_indices = @transform_0, window_bounds = array<i64: 16, 32>}, {transform_indices = @transform_1, window_bounds = array<i64: 16, 32>}, {pipeline_mode = #tpu.pipeline_mode<synchronous>, transform_indices = @transform_2, window_bounds = array<i64: 1, 32>}, {pipeline_mode = #tpu.pipeline_mode<synchronous>, transform_indices = @transform_3, window_bounds = array<i64: 1, 32>}, {transform_indices = @transform_4, window_bounds = array<i64: 16, 32>}]} {
    %c0 = arith.constant 0 : index
    %c0_0 = arith.constant 0 : index
    %0 = vector.load %arg1[%c0, %c0_0] : memref<16x32xf32, #tpu.memory_space<vmem>>, vector<16x32xf32>
    %c0_1 = arith.constant 0 : index
    %c0_2 = arith.constant 0 : index
    %1 = vector.load %arg2[%c0_1, %c0_2] : memref<16x32xf32, #tpu.memory_space<vmem>>, vector<16x32xf32>
    %2 = arith.addf %0, %1 : vector<16x32xf32>
    %cst = arith.constant dense<0.000000e+00> : vector<16xf32>
    %3 = vector.multi_reduction <add>, %2, %cst [1] : vector<16x32xf32> to vector<16xf32>
    %4 = vector.shape_cast %3 : vector<16xf32> to vector<16x1xf32>
    %cst_3 = arith.constant 3.200000e+01 : f32
    %5 = vector.broadcast %cst_3 : f32 to vector<16x1xf32>
    %6 = arith.divf %4, %5 : vector<16x1xf32>
    %7 = vector.broadcast %6 : vector<16x1xf32> to vector<16x32xf32>
    %8 = arith.subf %2, %7 : vector<16x32xf32>
    %9 = arith.mulf %8, %8 : vector<16x32xf32>
    %cst_4 = arith.constant dense<0.000000e+00> : vector<16xf32>
    %10 = vector.multi_reduction <add>, %9, %cst_4 [1] : vector<16x32xf32> to vector<16xf32>
    %11 = vector.shape_cast %10 : vector<16xf32> to vector<16x1xf32>
    %cst_5 = arith.constant 3.200000e+01 : f32
    %12 = vector.broadcast %cst_5 : f32 to vector<16x1xf32>
    %13 = arith.divf %11, %12 : vector<16x1xf32>
    %cst_6 = arith.constant 9.99999974E-6 : f32
    %14 = vector.broadcast %cst_6 : f32 to vector<16x1xf32>
    %15 = arith.addf %13, %14 : vector<16x1xf32>
    %16 = math.rsqrt %15 : vector<16x1xf32>
    %17 = vector.broadcast %16 : vector<16x1xf32> to vector<16x32xf32>
    %18 = arith.mulf %8, %17 : vector<16x32xf32>
    %c0_7 = arith.constant 0 : index
    %c0_8 = arith.constant 0 : index
    %19 = vector.load %arg3[%c0_7, %c0_8] : memref<1x32xf32, #tpu.memory_space<vmem>>, vector<1x32xf32>
    %20 = vector.broadcast %19 : vector<1x32xf32> to vector<16x32xf32>
    %21 = arith.mulf %18, %20 : vector<16x32xf32>
    %c0_9 = arith.constant 0 : index
    %c0_10 = arith.constant 0 : index
    %22 = vector.load %arg4[%c0_9, %c0_10] : memref<1x32xf32, #tpu.memory_space<vmem>>, vector<1x32xf32>
    %23 = vector.broadcast %22 : vector<1x32xf32> to vector<16x32xf32>
    %24 = arith.addf %21, %23 : vector<16x32xf32>
    %c0_11 = arith.constant 0 : index
    %c0_12 = arith.constant 0 : index
    %25 = vector.load %arg5[%c0_11, %c0_12] : memref<16x32xf32, #tpu.memory_space<vmem>>, vector<16x32xf32>
    tpu.vector_store %arg5[%c0_11, %c0_12], %24 {strides = array<i32>} : memref<16x32xf32, #tpu.memory_space<vmem>>, vector<16x32xf32>,
    return
  }
  func.func @transform_0(%arg0: i32) -> (i32, i32) {
    %c0_i32 = arith.constant 0 : i32
    %c0_i32_0 = arith.constant 0 : i32
    return %arg0, %c0_i32 : i32, i32
  }
  func.func @transform_1(%arg0: i32) -> (i32, i32) {
    %c0_i32 = arith.constant 0 : i32
    %c0_i32_0 = arith.constant 0 : i32
    return %arg0, %c0_i32 : i32, i32
  }
  func.func @transform_2(%arg0: i32) -> (i32, i32) {
    %c0_i32 = arith.constant 0 : i32
    %c0_i32_0 = arith.constant 0 : i32
    %c0_i32_1 = arith.constant 0 : i32
    return %c0_i32, %c0_i32_0 : i32, i32
  }
  func.func @transform_3(%arg0: i32) -> (i32, i32) {
    %c0_i32 = arith.constant 0 : i32
    %c0_i32_0 = arith.constant 0 : i32
    %c0_i32_1 = arith.constant 0 : i32
    return %c0_i32, %c0_i32_0 : i32, i32
  }
  func.func @transform_4(%arg0: i32) -> (i32, i32) {
    %c0_i32 = arith.constant 0 : i32
    %c0_i32_0 = arith.constant 0 : i32
    return %arg0, %c0_i32 : i32, i32
  }
}

module attributes {stable_mosaic.version = 11 : i64} {
  func.func @_linear_kernel(%arg0: i32, %arg1: memref<16x32xf32, #tpu.memory_space<vmem>>, %arg2: memref<32x64xf32, #tpu.memory_space<vmem>>, %arg3: memref<1x64xf32, #tpu.memory_space<vmem>>, %arg4: memref<16x64xf32, #tpu.memory_space<vmem>>) attributes {dimension_semantics = [#tpu.dimension_semantics<parallel>], iteration_bounds = array<i64: 1>, scalar_prefetch = 0 : i64, scratch_operands = 0 : i64, tpu.core_type = #tpu.core_type<tc>, window_params = [{transform_indices = @transform_0, window_bounds = array<i64: 16, 32>}, {pipeline_mode = #tpu.pipeline_mode<synchronous>, transform_indices = @transform_1, window_bounds = array<i64: 32, 64>}, {pipeline_mode = #tpu.pipeline_mode<synchronous>, transform_indices = @transform_2, window_bounds = array<i64: 1, 64>}, {transform_indices = @transform_3, window_bounds = array<i64: 16, 64>}]} {
    %c0 = arith.constant 0 : index
    %c0_0 = arith.constant 0 : index
    %0 = vector.load %arg1[%c0, %c0_0] : memref<16x32xf32, #tpu.memory_space<vmem>>, vector<16x32xf32>
    %c0_1 = arith.constant 0 : index
    %c0_2 = arith.constant 0 : index
    %1 = vector.load %arg2[%c0_1, %c0_2] : memref<32x64xf32, #tpu.memory_space<vmem>>, vector<32x64xf32>
    %cst = arith.constant dense<0.000000e+00> : vector<16x64xf32>
    %2 = tpu.matmul %0, %1, %cst {dimension_numbers = #tpu.dot_dimension_numbers<[1], [0], [0], [1], [0, 0, 1, 1], [], []>, precision = #tpu.contract_precision<fp32>} : vector<16x32xf32>, vector<32x64xf32>, vector<16x64xf32> -> vector<16x64xf32>
    %c0_3 = arith.constant 0 : index
    %c0_4 = arith.constant 0 : index
    %3 = vector.load %arg3[%c0_3, %c0_4] : memref<1x64xf32, #tpu.memory_space<vmem>>, vector<1x64xf32>
    %4 = vector.broadcast %3 : vector<1x64xf32> to vector<16x64xf32>
    %5 = arith.addf %2, %4 : vector<16x64xf32>
    %cst_5 = arith.constant 0.000000e+00 : f32
    %6 = vector.broadcast %cst_5 : f32 to vector<16x64xf32>
    %7 = arith.maximumf %5, %6 : vector<16x64xf32>
    %c0_6 = arith.constant 0 : index
    %c0_7 = arith.constant 0 : index
    %8 = vector.load %arg4[%c0_6, %c0_7] : memref<16x64xf32, #tpu.memory_space<vmem>>, vector<16x64xf32>
    tpu.vector_store %arg4[%c0_6, %c0_7], %7 {strides = array<i32>} : memref<16x64xf32, #tpu.memory_space<vmem>>, vector<16x64xf32>,
    return
  }
  func.func @transform_0(%arg0: i32) -> (i32, i32) {
    %c0_i32 = arith.constant 0 : i32
    %c0_i32_0 = arith.constant 0 : i32
    return %arg0, %c0_i32 : i32, i32
  }
  func.func @transform_1(%arg0: i32) -> (i32, i32) {
    %c0_i32 = arith.constant 0 : i32
    %c0_i32_0 = arith.constant 0 : i32
    %c0_i32_1 = arith.constant 0 : i32
    return %c0_i32, %c0_i32_0 : i32, i32
  }
  func.func @transform_2(%arg0: i32) -> (i32, i32) {
    %c0_i32 = arith.constant 0 : i32
    %c0_i32_0 = arith.constant 0 : i32
    %c0_i32_1 = arith.constant 0 : i32
    return %c0_i32, %c0_i32_0 : i32, i32
  }
  func.func @transform_3(%arg0: i32) -> (i32, i32) {
    %c0_i32 = arith.constant 0 : i32
    %c0_i32_0 = arith.constant 0 : i32
    return %arg0, %c0_i32 : i32, i32
  }
}

module attributes {stable_mosaic.version = 11 : i64} {
  func.func @_linear_kernel(%arg0: i32, %arg1: memref<16x8xf32, #tpu.memory_space<vmem>>, %arg2: memref<8x8xf32, #tpu.memory_space<vmem>>, %arg3: memref<1x8xf32, #tpu.memory_space<vmem>>, %arg4: memref<16x8xf32, #tpu.memory_space<vmem>>) attributes {dimension_semantics = [#tpu.dimension_semantics<parallel>], iteration_bounds = array<i64: 1>, scalar_prefetch = 0 : i64, scratch_operands = 0 : i64, tpu.core_type = #tpu.core_type<tc>, window_params = [{transform_indices = @transform_0, window_bounds = array<i64: 16, 8>}, {pipeline_mode = #tpu.pipeline_mode<synchronous>, transform_indices = @transform_1, window_bounds = array<i64: 8, 8>}, {pipeline_mode = #tpu.pipeline_mode<synchronous>, transform_indices = @transform_2, window_bounds = array<i64: 1, 8>}, {transform_indices = @transform_3, window_bounds = array<i64: 16, 8>}]} {
    %c0 = arith.constant 0 : index
    %c0_0 = arith.constant 0 : index
    %0 = vector.load %arg1[%c0, %c0_0] : memref<16x8xf32, #tpu.memory_space<vmem>>, vector<16x8xf32>
    %c0_1 = arith.constant 0 : index
    %c0_2 = arith.constant 0 : index
    %1 = vector.load %arg2[%c0_1, %c0_2] : memref<8x8xf32, #tpu.memory_space<vmem>>, vector<8x8xf32>
    %cst = arith.constant dense<0.000000e+00> : vector<16x8xf32>
    %2 = tpu.matmul %0, %1, %cst {dimension_numbers = #tpu.dot_dimension_numbers<[1], [0], [0], [1], [0, 0, 1, 1], [], []>, precision = #tpu.contract_precision<fp32>} : vector<16x8xf32>, vector<8x8xf32>, vector<16x8xf32> -> vector<16x8xf32>
    %c0_3 = arith.constant 0 : index
    %c0_4 = arith.constant 0 : index
    %3 = vector.load %arg3[%c0_3, %c0_4] : memref<1x8xf32, #tpu.memory_space<vmem>>, vector<1x8xf32>
    %4 = vector.broadcast %3 : vector<1x8xf32> to vector<16x8xf32>
    %5 = arith.addf %2, %4 : vector<16x8xf32>
    %cst_5 = arith.constant 0.000000e+00 : f32
    %6 = vector.broadcast %cst_5 : f32 to vector<16x8xf32>
    %7 = arith.maximumf %5, %6 : vector<16x8xf32>
    %c0_6 = arith.constant 0 : index
    %c0_7 = arith.constant 0 : index
    %8 = vector.load %arg4[%c0_6, %c0_7] : memref<16x8xf32, #tpu.memory_space<vmem>>, vector<16x8xf32>
    tpu.vector_store %arg4[%c0_6, %c0_7], %7 {strides = array<i32>} : memref<16x8xf32, #tpu.memory_space<vmem>>, vector<16x8xf32>,
    return
  }
  func.func @transform_0(%arg0: i32) -> (i32, i32) {
    %c0_i32 = arith.constant 0 : i32
    %c0_i32_0 = arith.constant 0 : i32
    return %arg0, %c0_i32 : i32, i32
  }
  func.func @transform_1(%arg0: i32) -> (i32, i32) {
    %c0_i32 = arith.constant 0 : i32
    %c0_i32_0 = arith.constant 0 : i32
    %c0_i32_1 = arith.constant 0 : i32
    return %c0_i32, %c0_i32_0 : i32, i32
  }
  func.func @transform_2(%arg0: i32) -> (i32, i32) {
    %c0_i32 = arith.constant 0 : i32
    %c0_i32_0 = arith.constant 0 : i32
    %c0_i32_1 = arith.constant 0 : i32
    return %c0_i32, %c0_i32_0 : i32, i32
  }
  func.func @transform_3(%arg0: i32) -> (i32, i32) {
    %c0_i32 = arith.constant 0 : i32
    %c0_i32_0 = arith.constant 0 : i32
    return %arg0, %c0_i32 : i32, i32
  }
}

module attributes {stable_mosaic.version = 11 : i64} {
  func.func @_linear_kernel(%arg0: i32, %arg1: memref<16x64xf32, #tpu.memory_space<vmem>>, %arg2: memref<64x32xf32, #tpu.memory_space<vmem>>, %arg3: memref<1x32xf32, #tpu.memory_space<vmem>>, %arg4: memref<16x32xf32, #tpu.memory_space<vmem>>) attributes {dimension_semantics = [#tpu.dimension_semantics<parallel>], iteration_bounds = array<i64: 1>, scalar_prefetch = 0 : i64, scratch_operands = 0 : i64, tpu.core_type = #tpu.core_type<tc>, window_params = [{transform_indices = @transform_0, window_bounds = array<i64: 16, 64>}, {pipeline_mode = #tpu.pipeline_mode<synchronous>, transform_indices = @transform_1, window_bounds = array<i64: 64, 32>}, {pipeline_mode = #tpu.pipeline_mode<synchronous>, transform_indices = @transform_2, window_bounds = array<i64: 1, 32>}, {transform_indices = @transform_3, window_bounds = array<i64: 16, 32>}]} {
    %c0 = arith.constant 0 : index
    %c0_0 = arith.constant 0 : index
    %0 = vector.load %arg1[%c0, %c0_0] : memref<16x64xf32, #tpu.memory_space<vmem>>, vector<16x64xf32>
    %c0_1 = arith.constant 0 : index
    %c0_2 = arith.constant 0 : index
    %1 = vector.load %arg2[%c0_1, %c0_2] : memref<64x32xf32, #tpu.memory_space<vmem>>, vector<64x32xf32>
    %cst = arith.constant dense<0.000000e+00> : vector<16x32xf32>
    %2 = tpu.matmul %0, %1, %cst {dimension_numbers = #tpu.dot_dimension_numbers<[1], [0], [0], [1], [0, 0, 1, 1], [], []>, precision = #tpu.contract_precision<fp32>} : vector<16x64xf32>, vector<64x32xf32>, vector<16x32xf32> -> vector<16x32xf32>
    %c0_3 = arith.constant 0 : index
    %c0_4 = arith.constant 0 : index
    %3 = vector.load %arg3[%c0_3, %c0_4] : memref<1x32xf32, #tpu.memory_space<vmem>>, vector<1x32xf32>
    %4 = vector.broadcast %3 : vector<1x32xf32> to vector<16x32xf32>
    %5 = arith.addf %2, %4 : vector<16x32xf32>
    %c0_5 = arith.constant 0 : index
    %c0_6 = arith.constant 0 : index
    %6 = vector.load %arg4[%c0_5, %c0_6] : memref<16x32xf32, #tpu.memory_space<vmem>>, vector<16x32xf32>
    tpu.vector_store %arg4[%c0_5, %c0_6], %5 {strides = array<i32>} : memref<16x32xf32, #tpu.memory_space<vmem>>, vector<16x32xf32>,
    return
  }
  func.func @transform_0(%arg0: i32) -> (i32, i32) {
    %c0_i32 = arith.constant 0 : i32
    %c0_i32_0 = arith.constant 0 : i32
    return %arg0, %c0_i32 : i32, i32
  }
  func.func @transform_1(%arg0: i32) -> (i32, i32) {
    %c0_i32 = arith.constant 0 : i32
    %c0_i32_0 = arith.constant 0 : i32
    %c0_i32_1 = arith.constant 0 : i32
    return %c0_i32, %c0_i32_0 : i32, i32
  }
  func.func @transform_2(%arg0: i32) -> (i32, i32) {
    %c0_i32 = arith.constant 0 : i32
    %c0_i32_0 = arith.constant 0 : i32
    %c0_i32_1 = arith.constant 0 : i32
    return %c0_i32, %c0_i32_0 : i32, i32
  }
  func.func @transform_3(%arg0: i32) -> (i32, i32) {
    %c0_i32 = arith.constant 0 : i32
    %c0_i32_0 = arith.constant 0 : i32
    return %arg0, %c0_i32 : i32, i32
  }
}

module attributes {stable_mosaic.version = 11 : i64} {
  func.func @_linear_kernel(%arg0: i32, %arg1: memref<16x32xf32, #tpu.memory_space<vmem>>, %arg2: memref<32x16xf32, #tpu.memory_space<vmem>>, %arg3: memref<1x16xf32, #tpu.memory_space<vmem>>, %arg4: memref<16x16xf32, #tpu.memory_space<vmem>>) attributes {dimension_semantics = [#tpu.dimension_semantics<parallel>], iteration_bounds = array<i64: 1>, scalar_prefetch = 0 : i64, scratch_operands = 0 : i64, tpu.core_type = #tpu.core_type<tc>, window_params = [{transform_indices = @transform_0, window_bounds = array<i64: 16, 32>}, {pipeline_mode = #tpu.pipeline_mode<synchronous>, transform_indices = @transform_1, window_bounds = array<i64: 32, 16>}, {pipeline_mode = #tpu.pipeline_mode<synchronous>, transform_indices = @transform_2, window_bounds = array<i64: 1, 16>}, {transform_indices = @transform_3, window_bounds = array<i64: 16, 16>}]} {
    %c0 = arith.constant 0 : index
    %c0_0 = arith.constant 0 : index
    %0 = vector.load %arg1[%c0, %c0_0] : memref<16x32xf32, #tpu.memory_space<vmem>>, vector<16x32xf32>
    %c0_1 = arith.constant 0 : index
    %c0_2 = arith.constant 0 : index
    %1 = vector.load %arg2[%c0_1, %c0_2] : memref<32x16xf32, #tpu.memory_space<vmem>>, vector<32x16xf32>
    %cst = arith.constant dense<0.000000e+00> : vector<16x16xf32>
    %2 = tpu.matmul %0, %1, %cst {dimension_numbers = #tpu.dot_dimension_numbers<[1], [0], [0], [1], [0, 0, 1, 1], [], []>, precision = #tpu.contract_precision<fp32>} : vector<16x32xf32>, vector<32x16xf32>, vector<16x16xf32> -> vector<16x16xf32>
    %c0_3 = arith.constant 0 : index
    %c0_4 = arith.constant 0 : index
    %3 = vector.load %arg3[%c0_3, %c0_4] : memref<1x16xf32, #tpu.memory_space<vmem>>, vector<1x16xf32>
    %4 = vector.broadcast %3 : vector<1x16xf32> to vector<16x16xf32>
    %5 = arith.addf %2, %4 : vector<16x16xf32>
    %cst_5 = arith.constant 0.000000e+00 : f32
    %6 = vector.broadcast %cst_5 : f32 to vector<16x16xf32>
    %7 = arith.cmpf ogt, %5, %6 : vector<16x16xf32>
    %cst_6 = arith.constant 0.00999999977 : f32
    %8 = vector.broadcast %cst_6 : f32 to vector<16x16xf32>
    %9 = arith.mulf %8, %5 : vector<16x16xf32>
    %10 = arith.select %7, %5, %9 : vector<16x16xi1>, vector<16x16xf32>
    %c0_7 = arith.constant 0 : index
    %c0_8 = arith.constant 0 : index
    %11 = vector.load %arg4[%c0_7, %c0_8] : memref<16x16xf32, #tpu.memory_space<vmem>>, vector<16x16xf32>
    tpu.vector_store %arg4[%c0_7, %c0_8], %10 {strides = array<i32>} : memref<16x16xf32, #tpu.memory_space<vmem>>, vector<16x16xf32>,
    return
  }
  func.func @transform_0(%arg0: i32) -> (i32, i32) {
    %c0_i32 = arith.constant 0 : i32
    %c0_i32_0 = arith.constant 0 : i32
    return %arg0, %c0_i32 : i32, i32
  }
  func.func @transform_1(%arg0: i32) -> (i32, i32) {
    %c0_i32 = arith.constant 0 : i32
    %c0_i32_0 = arith.constant 0 : i32
    %c0_i32_1 = arith.constant 0 : i32
    return %c0_i32, %c0_i32_0 : i32, i32
  }
  func.func @transform_2(%arg0: i32) -> (i32, i32) {
    %c0_i32 = arith.constant 0 : i32
    %c0_i32_0 = arith.constant 0 : i32
    %c0_i32_1 = arith.constant 0 : i32
    return %c0_i32, %c0_i32_0 : i32, i32
  }
  func.func @transform_3(%arg0: i32) -> (i32, i32) {
    %c0_i32 = arith.constant 0 : i32
    %c0_i32_0 = arith.constant 0 : i32
    return %arg0, %c0_i32 : i32, i32
  }
}

module attributes {stable_mosaic.version = 11 : i64} {
  func.func @_linear_kernel(%arg0: i32, %arg1: memref<16x16xf32, #tpu.memory_space<vmem>>, %arg2: memref<16x8xf32, #tpu.memory_space<vmem>>, %arg3: memref<1x8xf32, #tpu.memory_space<vmem>>, %arg4: memref<16x8xf32, #tpu.memory_space<vmem>>) attributes {dimension_semantics = [#tpu.dimension_semantics<parallel>], iteration_bounds = array<i64: 1>, scalar_prefetch = 0 : i64, scratch_operands = 0 : i64, tpu.core_type = #tpu.core_type<tc>, window_params = [{transform_indices = @transform_0, window_bounds = array<i64: 16, 16>}, {pipeline_mode = #tpu.pipeline_mode<synchronous>, transform_indices = @transform_1, window_bounds = array<i64: 16, 8>}, {pipeline_mode = #tpu.pipeline_mode<synchronous>, transform_indices = @transform_2, window_bounds = array<i64: 1, 8>}, {transform_indices = @transform_3, window_bounds = array<i64: 16, 8>}]} {
    %c0 = arith.constant 0 : index
    %c0_0 = arith.constant 0 : index
    %0 = vector.load %arg1[%c0, %c0_0] : memref<16x16xf32, #tpu.memory_space<vmem>>, vector<16x16xf32>
    %c0_1 = arith.constant 0 : index
    %c0_2 = arith.constant 0 : index
    %1 = vector.load %arg2[%c0_1, %c0_2] : memref<16x8xf32, #tpu.memory_space<vmem>>, vector<16x8xf32>
    %cst = arith.constant dense<0.000000e+00> : vector<16x8xf32>
    %2 = tpu.matmul %0, %1, %cst {dimension_numbers = #tpu.dot_dimension_numbers<[1], [0], [0], [1], [0, 0, 1, 1], [], []>, precision = #tpu.contract_precision<fp32>} : vector<16x16xf32>, vector<16x8xf32>, vector<16x8xf32> -> vector<16x8xf32>
    %c0_3 = arith.constant 0 : index
    %c0_4 = arith.constant 0 : index
    %3 = vector.load %arg3[%c0_3, %c0_4] : memref<1x8xf32, #tpu.memory_space<vmem>>, vector<1x8xf32>
    %4 = vector.broadcast %3 : vector<1x8xf32> to vector<16x8xf32>
    %5 = arith.addf %2, %4 : vector<16x8xf32>
    %c0_5 = arith.constant 0 : index
    %c0_6 = arith.constant 0 : index
    %6 = vector.load %arg4[%c0_5, %c0_6] : memref<16x8xf32, #tpu.memory_space<vmem>>, vector<16x8xf32>
    tpu.vector_store %arg4[%c0_5, %c0_6], %5 {strides = array<i32>} : memref<16x8xf32, #tpu.memory_space<vmem>>, vector<16x8xf32>,
    return
  }
  func.func @transform_0(%arg0: i32) -> (i32, i32) {
    %c0_i32 = arith.constant 0 : i32
    %c0_i32_0 = arith.constant 0 : i32
    return %arg0, %c0_i32 : i32, i32
  }
  func.func @transform_1(%arg0: i32) -> (i32, i32) {
    %c0_i32 = arith.constant 0 : i32
    %c0_i32_0 = arith.constant 0 : i32
    %c0_i32_1 = arith.constant 0 : i32
    return %c0_i32, %c0_i32_0 : i32, i32
  }
  func.func @transform_2(%arg0: i32) -> (i32, i32) {
    %c0_i32 = arith.constant 0 : i32
    %c0_i32_0 = arith.constant 0 : i32
    %c0_i32_1 = arith.constant 0 : i32
    return %c0_i32, %c0_i32_0 : i32, i32
  }
  func.func @transform_3(%arg0: i32) -> (i32, i32) {
    %c0_i32 = arith.constant 0 : i32
    %c0_i32_0 = arith.constant 0 : i32
    return %arg0, %c0_i32 : i32, i32
  }
}

module attributes {stable_mosaic.version = 11 : i64} {
  func.func @_ln_kernel(%arg0: i32, %arg1: memref<16x8xf32, #tpu.memory_space<vmem>>, %arg2: memref<1x8xf32, #tpu.memory_space<vmem>>, %arg3: memref<1x8xf32, #tpu.memory_space<vmem>>, %arg4: memref<16x8xf32, #tpu.memory_space<vmem>>) attributes {dimension_semantics = [#tpu.dimension_semantics<parallel>], iteration_bounds = array<i64: 1>, scalar_prefetch = 0 : i64, scratch_operands = 0 : i64, tpu.core_type = #tpu.core_type<tc>, window_params = [{transform_indices = @transform_0, window_bounds = array<i64: 16, 8>}, {pipeline_mode = #tpu.pipeline_mode<synchronous>, transform_indices = @transform_1, window_bounds = array<i64: 1, 8>}, {pipeline_mode = #tpu.pipeline_mode<synchronous>, transform_indices = @transform_2, window_bounds = array<i64: 1, 8>}, {transform_indices = @transform_3, window_bounds = array<i64: 16, 8>}]} {
    %c0 = arith.constant 0 : index
    %c0_0 = arith.constant 0 : index
    %0 = vector.load %arg1[%c0, %c0_0] : memref<16x8xf32, #tpu.memory_space<vmem>>, vector<16x8xf32>
    %cst = arith.constant dense<0.000000e+00> : vector<16xf32>
    %1 = vector.multi_reduction <add>, %0, %cst [1] : vector<16x8xf32> to vector<16xf32>
    %2 = vector.shape_cast %1 : vector<16xf32> to vector<16x1xf32>
    %cst_1 = arith.constant 8.000000e+00 : f32
    %3 = vector.broadcast %cst_1 : f32 to vector<16x1xf32>
    %4 = arith.divf %2, %3 : vector<16x1xf32>
    %5 = vector.broadcast %4 : vector<16x1xf32> to vector<16x8xf32>
    %6 = arith.subf %0, %5 : vector<16x8xf32>
    %7 = arith.mulf %6, %6 : vector<16x8xf32>
    %cst_2 = arith.constant dense<0.000000e+00> : vector<16xf32>
    %8 = vector.multi_reduction <add>, %7, %cst_2 [1] : vector<16x8xf32> to vector<16xf32>
    %9 = vector.shape_cast %8 : vector<16xf32> to vector<16x1xf32>
    %cst_3 = arith.constant 8.000000e+00 : f32
    %10 = vector.broadcast %cst_3 : f32 to vector<16x1xf32>
    %11 = arith.divf %9, %10 : vector<16x1xf32>
    %cst_4 = arith.constant 9.99999974E-6 : f32
    %12 = vector.broadcast %cst_4 : f32 to vector<16x1xf32>
    %13 = arith.addf %11, %12 : vector<16x1xf32>
    %14 = math.rsqrt %13 : vector<16x1xf32>
    %15 = vector.broadcast %14 : vector<16x1xf32> to vector<16x8xf32>
    %16 = arith.mulf %6, %15 : vector<16x8xf32>
    %c0_5 = arith.constant 0 : index
    %c0_6 = arith.constant 0 : index
    %17 = vector.load %arg2[%c0_5, %c0_6] : memref<1x8xf32, #tpu.memory_space<vmem>>, vector<1x8xf32>
    %18 = vector.broadcast %17 : vector<1x8xf32> to vector<16x8xf32>
    %19 = arith.mulf %16, %18 : vector<16x8xf32>
    %c0_7 = arith.constant 0 : index
    %c0_8 = arith.constant 0 : index
    %20 = vector.load %arg3[%c0_7, %c0_8] : memref<1x8xf32, #tpu.memory_space<vmem>>, vector<1x8xf32>
    %21 = vector.broadcast %20 : vector<1x8xf32> to vector<16x8xf32>
    %22 = arith.addf %19, %21 : vector<16x8xf32>
    %c0_9 = arith.constant 0 : index
    %c0_10 = arith.constant 0 : index
    %23 = vector.load %arg4[%c0_9, %c0_10] : memref<16x8xf32, #tpu.memory_space<vmem>>, vector<16x8xf32>
    tpu.vector_store %arg4[%c0_9, %c0_10], %22 {strides = array<i32>} : memref<16x8xf32, #tpu.memory_space<vmem>>, vector<16x8xf32>,
    return
  }
  func.func @transform_0(%arg0: i32) -> (i32, i32) {
    %c0_i32 = arith.constant 0 : i32
    %c0_i32_0 = arith.constant 0 : i32
    return %arg0, %c0_i32 : i32, i32
  }
  func.func @transform_1(%arg0: i32) -> (i32, i32) {
    %c0_i32 = arith.constant 0 : i32
    %c0_i32_0 = arith.constant 0 : i32
    %c0_i32_1 = arith.constant 0 : i32
    return %c0_i32, %c0_i32_0 : i32, i32
  }
  func.func @transform_2(%arg0: i32) -> (i32, i32) {
    %c0_i32 = arith.constant 0 : i32
    %c0_i32_0 = arith.constant 0 : i32
    %c0_i32_1 = arith.constant 0 : i32
    return %c0_i32, %c0_i32_0 : i32, i32
  }
  func.func @transform_3(%arg0: i32) -> (i32, i32) {
    %c0_i32 = arith.constant 0 : i32
    %c0_i32_0 = arith.constant 0 : i32
    return %arg0, %c0_i32 : i32, i32
  }
}

</mosaic_0001>

<llo_original>
// kernel: forward.67
$region0: #{forward.67}
  #allocation0 [shape = 'u32[]', space=smem, size = 0x4, offset = 0x4, fixed_abs, tag = 'smem constant byte address 0x4 - core index']
  #allocation1 [shape = 'u32[72,128]{1,0:T(1,128)}', space=vmem, size = 0x9000, scoped, tag = 'internal scratch']
  %s0 = inlined_call_operand.vmem [shape: f32[16,4], index: 0, kind: input, shape index: {}]
  %s1 = inlined_call_operand.vmem [shape: f32[4,8], index: 1, kind: input, shape index: {}]
  %s2 = inlined_call_operand.vmem [shape: f32[1,8], index: 2, kind: input, shape index: {}]
  %s3 = inlined_call_operand.vmem [shape: f32[16,8], index: 3, kind: output, shape index: {}]
  %s4 = sld [smem:[#allocation0]]
  $region22: #{forward.67} parent=0
    _
  %s6 = ssub.s32 1, %s4
  %s7 = scalar_select 0, %s6, %s4
  // Predicated region
  $region2: #{forward.67} parent=0 // pred_check
    _
  $region3: #{forward.67} parent=0 // pred_check_branch
    %9 = sbr.rel (0) target = $region5
  $region4: #{forward.67} parent=0 // pred_region
    _
  $region5: #{forward.67} parent=0 // pred_fallthru
    _
  // Predicated region
  $region6: #{forward.67} parent=0 // pred_check
    _
  $region7: #{forward.67} parent=0 // pred_check_branch
    %11 = sbr.rel (0) target = $region9
  $region8: #{forward.67} parent=0 // pred_region
    _
  $region9: #{forward.67} parent=0 // pred_fallthru
    _
  // Predicated region
  $region10: #{forward.67} parent=0 // pred_check
    _
  $region11: #{forward.67} parent=0 // pred_check_branch
    %13 = sbr.rel (0) target = $region13
  $region12: #{forward.67} parent=0 // pred_region
    _
  $region13: #{forward.67} parent=0 // pred_fallthru
    _
  %v14 = vld [vmem:[%s0] sm:$0xff]
  %v15 = vld [vmem:[%s0 + $0x8] sm:$0xff]
  %v16 = vld [vmem:[%s1] sm:$0xf]
  %v17 = vld [vmem:[%s2] sm:$0x1]
  %v19 = vperm.slane %v17, 0
  %vm21 = vcmask 31744
  %v23 = vsel %vm21, %v14, 0
  %v26 = vsel %vm21, %v15, 0
  %vm28 = vcmask 1043456
  %v30 = vsel %vm28, %v16, 0
  %32 = vmatpush.msra.mxu0 0.0
  %33 = vmatpush.msra.mxu0 0.0
  %34 = vmatpush.msra.mxu0 0.0
  %35 = vmatpush.msra.mxu0 0.0
  %36 = vmatpush.msra.mxu0 0.0
  %37 = vmatpush.msra.mxu0 0.0
  %38 = vmatpush.msra.mxu0 0.0
  %39 = vmatpush.msra.mxu0 0.0
  %40 = vmatpush.msra.mxu0 0.0
  %41 = vmatpush.msra.mxu0 0.0
  %42 = vmatpush.msra.mxu0 0.0
  %43 = vmatpush.msra.mxu0 0.0
  %44 = vmatpush.msra.mxu0 0.0
  %45 = vmatpush.msra.mxu0 0.0
  %46 = vmatpush.msra.mxu0 0.0
  %v47 = vand.u32 %v30, 4294901760
  %48 = vmatpush.msra.mxu0 %v47
  %v49 = vand.u32 %v23, 4294901760
  %v50 = vsub.f32 %v23, %v49
  %v51 = vand.u32 %v50, 4294901760
  %v52 = vsub.f32 %v50, %v51
  %v53 = vand.u32 %v52, 4294901760
  %54 = vmatmul.f32.gmra.mxu0 %v53
  %v55 = vpop.f32.mrf.mxu0
  %v56 = vadd.f32 %v19, %v55
  %v57 = vand.u32 %v26, 4294901760
  %v58 = vsub.f32 %v26, %v57
  %v59 = vand.u32 %v58, 4294901760
  %v60 = vsub.f32 %v58, %v59
  %v61 = vand.u32 %v60, 4294901760
  %62 = vmatmul.f32.gmra.mxu0 %v61
  %v63 = vpop.f32.mrf.mxu0
  %v64 = vadd.f32 %v19, %v63
  %65 = vdwg.mxu0
  %66 = vmatpush.msra.mxu0 0.0
  %67 = vmatpush.msra.mxu0 0.0
  %68 = vmatpush.msra.mxu0 0.0
  %69 = vmatpush.msra.mxu0 0.0
  %70 = vmatpush.msra.mxu0 0.0
  %71 = vmatpush.msra.mxu0 0.0
  %72 = vmatpush.msra.mxu0 0.0
  %73 = vmatpush.msra.mxu0 0.0
  %74 = vmatpush.msra.mxu0 0.0
  %75 = vmatpush.msra.mxu0 0.0
  %76 = vmatpush.msra.mxu0 0.0
  %77 = vmatpush.msra.mxu0 0.0
  %78 = vmatpush.msra.mxu0 0.0
  %79 = vmatpush.msra.mxu0 0.0
  %80 = vmatpush.msra.mxu0 0.0
  %v81 = vand.u32 %v30, 4294901760
  %v82 = vsub.f32 %v30, %v81
  %v83 = vand.u32 %v82, 4294901760
  %v84 = vsub.f32 %v82, %v83
  %v85 = vand.u32 %v84, 4294901760
  %86 = vmatpush.msra.mxu0 %v85
  %v87 = vand.u32 %v23, 4294901760
  %88 = vmatmul.f32.gmra.mxu0 %v87
  %v89 = vpop.f32.mrf.mxu0
  %v90 = vadd.f32 %v56, %v89
  %v91 = vand.u32 %v26, 4294901760
  %92 = vmatmul.f32.gmra.mxu0 %v91
  %v93 = vpop.f32.mrf.mxu0
  %v94 = vadd.f32 %v64, %v93
  %95 = vdwg.mxu0
  %96 = vmatpush.msra.mxu0 0.0
  %97 = vmatpush.msra.mxu0 0.0
  %98 = vmatpush.msra.mxu0 0.0
  %99 = vmatpush.msra.mxu0 0.0
  %100 = vmatpush.msra.mxu0 0.0
  %101 = vmatpush.msra.mxu0 0.0
  %102 = vmatpush.msra.mxu0 0.0
  %103 = vmatpush.msra.mxu0 0.0
  %104 = vmatpush.msra.mxu0 0.0
  %105 = vmatpush.msra.mxu0 0.0
  %106 = vmatpush.msra.mxu0 0.0
  %107 = vmatpush.msra.mxu0 0.0
  %108 = vmatpush.msra.mxu0 0.0
  %109 = vmatpush.msra.mxu0 0.0
  %110 = vmatpush.msra.mxu0 0.0
  %v111 = vand.u32 %v30, 4294901760
  %v112 = vsub.f32 %v30, %v111
  %113 = vmatpush.msra.mxu0 %v112
  %v114 = vand.u32 %v23, 4294901760
  %v115 = vsub.f32 %v23, %v114
  %116 = vmatmul.f32.gmra.mxu0 %v115
  %v117 = vpop.f32.mrf.mxu0
  %v118 = vadd.f32 %v90, %v117
  %v119 = vand.u32 %v26, 4294901760
  %v120 = vsub.f32 %v26, %v119
  %121 = vmatmul.f32.gmra.mxu0 %v120
  %v122 = vpop.f32.mrf.mxu0
  %v123 = vadd.f32 %v94, %v122
  %124 = vdwg.mxu0
  %125 = vmatpush.msra.mxu0 0.0
  %126 = vmatpush.msra.mxu0 0.0
  %127 = vmatpush.msra.mxu0 0.0
  %128 = vmatpush.msra.mxu0 0.0
  %129 = vmatpush.msra.mxu0 0.0
  %130 = vmatpush.msra.mxu0 0.0
  %131 = vmatpush.msra.mxu0 0.0
  %132 = vmatpush.msra.mxu0 0.0
  %133 = vmatpush.msra.mxu0 0.0
  %134 = vmatpush.msra.mxu0 0.0
  %135 = vmatpush.msra.mxu0 0.0
  %136 = vmatpush.msra.mxu0 0.0
  %137 = vmatpush.msra.mxu0 0.0
  %138 = vmatpush.msra.mxu0 0.0
  %139 = vmatpush.msra.mxu0 0.0
  %v140 = vand.u32 %v30, 4294901760
  %141 = vmatpush.msra.mxu0 %v140
  %v142 = vand.u32 %v23, 4294901760
  %v143 = vsub.f32 %v23, %v142
  %v144 = vand.u32 %v143, 4294901760
  %145 = vmatmul.f32.gmra.mxu0 %v144
  %v146 = vpop.f32.mrf.mxu0
  %v147 = vadd.f32 %v118, %v146
  %v148 = vand.u32 %v26, 4294901760
  %v149 = vsub.f32 %v26, %v148
  %v150 = vand.u32 %v149, 4294901760
  %151 = vmatmul.f32.gmra.mxu0 %v150
  %v152 = vpop.f32.mrf.mxu0
  %v153 = vadd.f32 %v123, %v152
  %154 = vdwg.mxu0
  %155 = vmatpush.msra.mxu0 0.0
  %156 = vmatpush.msra.mxu0 0.0
  %157 = vmatpush.msra.mxu0 0.0
  %158 = vmatpush.msra.mxu0 0.0
  %159 = vmatpush.msra.mxu0 0.0
  %160 = vmatpush.msra.mxu0 0.0
  %161 = vmatpush.msra.mxu0 0.0
  %162 = vmatpush.msra.mxu0 0.0
  %163 = vmatpush.msra.mxu0 0.0
  %164 = vmatpush.msra.mxu0 0.0
  %165 = vmatpush.msra.mxu0 0.0
  %166 = vmatpush.msra.mxu0 0.0
  %167 = vmatpush.msra.mxu0 0.0
  %168 = vmatpush.msra.mxu0 0.0
  %169 = vmatpush.msra.mxu0 0.0
  %v170 = vand.u32 %v30, 4294901760
  %v171 = vsub.f32 %v30, %v170
  %v172 = vand.u32 %v171, 4294901760
  %173 = vmatpush.msra.mxu0 %v172
  %v174 = vand.u32 %v23, 4294901760
  %175 = vmatmul.f32.gmra.mxu0 %v174
  %v176 = vpop.f32.mrf.mxu0
  %v177 = vadd.f32 %v147, %v176
  %v178 = vand.u32 %v26, 4294901760
  %179 = vmatmul.f32.gmra.mxu0 %v178
  %v180 = vpop.f32.mrf.mxu0
  %v181 = vadd.f32 %v153, %v180
  %182 = vdwg.mxu0
  %183 = vmatpush.msra.mxu0 0.0
  %184 = vmatpush.msra.mxu0 0.0
  %185 = vmatpush.msra.mxu0 0.0
  %186 = vmatpush.msra.mxu0 0.0
  %187 = vmatpush.msra.mxu0 0.0
  %188 = vmatpush.msra.mxu0 0.0
  %189 = vmatpush.msra.mxu0 0.0
  %190 = vmatpush.msra.mxu0 0.0
  %191 = vmatpush.msra.mxu0 0.0
  %192 = vmatpush.msra.mxu0 0.0
  %193 = vmatpush.msra.mxu0 0.0
  %194 = vmatpush.msra.mxu0 0.0
  %195 = vmatpush.msra.mxu0 0.0
  %196 = vmatpush.msra.mxu0 0.0
  %197 = vmatpush.msra.mxu0 0.0
  %v198 = vand.u32 %v30, 4294901760
  %199 = vmatpush.msra.mxu0 %v198
  %v200 = vand.u32 %v23, 4294901760
  %201 = vmatmul.f32.gmra.mxu0 %v200
  %v202 = vpop.f32.mrf.mxu0
  %v203 = vadd.f32 %v177, %v202
  %v204 = vand.u32 %v26, 4294901760
  %205 = vmatmul.f32.gmra.mxu0 %v204
  %v206 = vpop.f32.mrf.mxu0
  %v207 = vadd.f32 %v181, %v206
  %208 = vdwg.mxu0
  %v209 = vmax.f32 %v203, 0.0
  %v210 = vmax.f32 %v207, 0.0
  %vm211 = vcmask 64512
  %212 = vst.msk [vmem:[%s3] sm:$0xff] %vm211, %v209
  %213 = vst.msk [vmem:[%s3 + $0x8] sm:$0xff] %vm211, %v210
  // Predicated region
  $region14: #{forward.67} parent=0 // pred_check
    _
  $region15: #{forward.67} parent=0 // pred_check_branch
    %215 = sbr.rel (0) target = $region17
  $region16: #{forward.67} parent=0 // pred_region
    _
  $region17: #{forward.67} parent=0 // pred_fallthru
    _
  // Predicated region
  $region18: #{forward.67} parent=0 // pred_check
    _
  $region19: #{forward.67} parent=0 // pred_check_branch
    %217 = sbr.rel (0) target = $region21
  $region20: #{forward.67} parent=0 // pred_region
    _
  $region21: #{forward.67} parent=0 // pred_fallthru
    _

// kernel: forward.69
$region0: #{forward.69}
  #allocation0 [shape = 'u32[]', space=smem, size = 0x4, offset = 0x4, fixed_abs, tag = 'smem constant byte address 0x4 - core index']
  #allocation1 [shape = 'u32[72,128]{1,0:T(1,128)}', space=vmem, size = 0x9000, scoped, tag = 'internal scratch']
  %s0 = inlined_call_operand.vmem [shape: f32[16,16], index: 0, kind: input, shape index: {}]
  %s1 = inlined_call_operand.vmem [shape: f32[16,32], index: 1, kind: input, shape index: {}]
  %s2 = inlined_call_operand.vmem [shape: f32[1,32], index: 2, kind: input, shape index: {}]
  %s3 = inlined_call_operand.vmem [shape: f32[16,32], index: 3, kind: output, shape index: {}]
  %s4 = sld [smem:[#allocation0]]
  $region22: #{forward.69} parent=0
    _
  %s6 = ssub.s32 1, %s4
  %s7 = scalar_select 0, %s6, %s4
  // Predicated region
  $region2: #{forward.69} parent=0 // pred_check
    _
  $region3: #{forward.69} parent=0 // pred_check_branch
    %9 = sbr.rel (0) target = $region5
  $region4: #{forward.69} parent=0 // pred_region
    _
  $region5: #{forward.69} parent=0 // pred_fallthru
    _
  // Predicated region
  $region6: #{forward.69} parent=0 // pred_check
    _
  $region7: #{forward.69} parent=0 // pred_check_branch
    %11 = sbr.rel (0) target = $region9
  $region8: #{forward.69} parent=0 // pred_region
    _
  $region9: #{forward.69} parent=0 // pred_fallthru
    _
  // Predicated region
  $region10: #{forward.69} parent=0 // pred_check
    _
  $region11: #{forward.69} parent=0 // pred_check_branch
    %13 = sbr.rel (0) target = $region13
  $region12: #{forward.69} parent=0 // pred_region
    _
  $region13: #{forward.69} parent=0 // pred_fallthru
    _
  %v14 = vld [vmem:[%s0] sm:$0xff]
  %v15 = vld [vmem:[%s0 + $0x8] sm:$0xff]
  %v16 = vld [vmem:[%s1] sm:$0xff]
  %v17 = vld [vmem:[%s1 + $0x8] sm:$0xff]
  %v18 = vld [vmem:[%s2] sm:$0x1]
  %v20 = vperm.slane %v18, 0
  %vm22 = vcmask 130048
  %v24 = vsel %vm22, %v14, 0
  %v27 = vsel %vm22, %v15, 0
  %29 = vmatpush.msra.mxu0 0.0
  %30 = vmatpush.msra.mxu0 0.0
  %31 = vmatpush.msra.mxu0 0.0
  %32 = vmatpush.msra.mxu0 0.0
  %33 = vmatpush.msra.mxu0 0.0
  %34 = vmatpush.msra.mxu0 0.0
  %35 = vmatpush.msra.mxu0 0.0
  %36 = vmatpush.msra.mxu0 0.0
  %37 = vmatpush.msra.mxu0 0.0
  %38 = vmatpush.msra.mxu0 0.0
  %39 = vmatpush.msra.mxu0 0.0
  %40 = vmatpush.msra.mxu0 0.0
  %41 = vmatpush.msra.mxu0 0.0
  %42 = vmatpush.msra.mxu0 0.0
  %v43 = vand.u32 %v17, 4294901760
  %44 = vmatpush.msra.mxu0 %v43
  %v45 = vand.u32 %v16, 4294901760
  %46 = vmatpush.msra.mxu0 %v45
  %v47 = vand.u32 %v24, 4294901760
  %v48 = vsub.f32 %v24, %v47
  %v49 = vand.u32 %v48, 4294901760
  %v50 = vsub.f32 %v48, %v49
  %v51 = vand.u32 %v50, 4294901760
  %52 = vmatmul.f32.gmra.mxu0 %v51
  %v53 = vpop.f32.mrf.mxu0
  %v54 = vadd.f32 %v20, %v53
  %v55 = vand.u32 %v27, 4294901760
  %v56 = vsub.f32 %v27, %v55
  %v57 = vand.u32 %v56, 4294901760
  %v58 = vsub.f32 %v56, %v57
  %v59 = vand.u32 %v58, 4294901760
  %60 = vmatmul.f32.gmra.mxu0 %v59
  %v61 = vpop.f32.mrf.mxu0
  %v62 = vadd.f32 %v20, %v61
  %63 = vdwg.mxu0
  %64 = vmatpush.msra.mxu0 0.0
  %65 = vmatpush.msra.mxu0 0.0
  %66 = vmatpush.msra.mxu0 0.0
  %67 = vmatpush.msra.mxu0 0.0
  %68 = vmatpush.msra.mxu0 0.0
  %69 = vmatpush.msra.mxu0 0.0
  %70 = vmatpush.msra.mxu0 0.0
  %71 = vmatpush.msra.mxu0 0.0
  %72 = vmatpush.msra.mxu0 0.0
  %73 = vmatpush.msra.mxu0 0.0
  %74 = vmatpush.msra.mxu0 0.0
  %75 = vmatpush.msra.mxu0 0.0
  %76 = vmatpush.msra.mxu0 0.0
  %77 = vmatpush.msra.mxu0 0.0
  %v78 = vand.u32 %v17, 4294901760
  %v79 = vsub.f32 %v17, %v78
  %v80 = vand.u32 %v79, 4294901760
  %v81 = vsub.f32 %v79, %v80
  %v82 = vand.u32 %v81, 4294901760
  %83 = vmatpush.msra.mxu0 %v82
  %v84 = vand.u32 %v16, 4294901760
  %v85 = vsub.f32 %v16, %v84
  %v86 = vand.u32 %v85, 4294901760
  %v87 = vsub.f32 %v85, %v86
  %v88 = vand.u32 %v87, 4294901760
  %89 = vmatpush.msra.mxu0 %v88
  %v90 = vand.u32 %v24, 4294901760
  %91 = vmatmul.f32.gmra.mxu0 %v90
  %v92 = vpop.f32.mrf.mxu0
  %v93 = vadd.f32 %v54, %v92
  %v94 = vand.u32 %v27, 4294901760
  %95 = vmatmul.f32.gmra.mxu0 %v94
  %v96 = vpop.f32.mrf.mxu0
  %v97 = vadd.f32 %v62, %v96
  %98 = vdwg.mxu0
  %99 = vmatpush.msra.mxu0 0.0
  %100 = vmatpush.msra.mxu0 0.0
  %101 = vmatpush.msra.mxu0 0.0
  %102 = vmatpush.msra.mxu0 0.0
  %103 = vmatpush.msra.mxu0 0.0
  %104 = vmatpush.msra.mxu0 0.0
  %105 = vmatpush.msra.mxu0 0.0
  %106 = vmatpush.msra.mxu0 0.0
  %107 = vmatpush.msra.mxu0 0.0
  %108 = vmatpush.msra.mxu0 0.0
  %109 = vmatpush.msra.mxu0 0.0
  %110 = vmatpush.msra.mxu0 0.0
  %111 = vmatpush.msra.mxu0 0.0
  %112 = vmatpush.msra.mxu0 0.0
  %v113 = vand.u32 %v17, 4294901760
  %v114 = vsub.f32 %v17, %v113
  %115 = vmatpush.msra.mxu0 %v114
  %v116 = vand.u32 %v16, 4294901760
  %v117 = vsub.f32 %v16, %v116
  %118 = vmatpush.msra.mxu0 %v117
  %v119 = vand.u32 %v24, 4294901760
  %v120 = vsub.f32 %v24, %v119
  %121 = vmatmul.f32.gmra.mxu0 %v120
  %v122 = vpop.f32.mrf.mxu0
  %v123 = vadd.f32 %v93, %v122
  %v124 = vand.u32 %v27, 4294901760
  %v125 = vsub.f32 %v27, %v124
  %126 = vmatmul.f32.gmra.mxu0 %v125
  %v127 = vpop.f32.mrf.mxu0
  %v128 = vadd.f32 %v97, %v127
  %129 = vdwg.mxu0
  %130 = vmatpush.msra.mxu0 0.0
  %131 = vmatpush.msra.mxu0 0.0
  %132 = vmatpush.msra.mxu0 0.0
  %133 = vmatpush.msra.mxu0 0.0
  %134 = vmatpush.msra.mxu0 0.0
  %135 = vmatpush.msra.mxu0 0.0
  %136 = vmatpush.msra.mxu0 0.0
  %137 = vmatpush.msra.mxu0 0.0
  %138 = vmatpush.msra.mxu0 0.0
  %139 = vmatpush.msra.mxu0 0.0
  %140 = vmatpush.msra.mxu0 0.0
  %141 = vmatpush.msra.mxu0 0.0
  %142 = vmatpush.msra.mxu0 0.0
  %143 = vmatpush.msra.mxu0 0.0
  %v144 = vand.u32 %v17, 4294901760
  %145 = vmatpush.msra.mxu0 %v144
  %v146 = vand.u32 %v16, 4294901760
  %147 = vmatpush.msra.mxu0 %v146
  %v148 = vand.u32 %v24, 4294901760
  %v149 = vsub.f32 %v24, %v148
  %v150 = vand.u32 %v149, 4294901760
  %151 = vmatmul.f32.gmra.mxu0 %v150
  %v152 = vpop.f32.mrf.mxu0
  %v153 = vadd.f32 %v123, %v152
  %v154 = vand.u32 %v27, 4294901760
  %v155 = vsub.f32 %v27, %v154
  %v156 = vand.u32 %v155, 4294901760
  %157 = vmatmul.f32.gmra.mxu0 %v156
  %v158 = vpop.f32.mrf.mxu0
  %v159 = vadd.f32 %v128, %v158
  %160 = vdwg.mxu0
  %161 = vmatpush.msra.mxu0 0.0
  %162 = vmatpush.msra.mxu0 0.0
  %163 = vmatpush.msra.mxu0 0.0
  %164 = vmatpush.msra.mxu0 0.0
  %165 = vmatpush.msra.mxu0 0.0
  %166 = vmatpush.msra.mxu0 0.0
  %167 = vmatpush.msra.mxu0 0.0
  %168 = vmatpush.msra.mxu0 0.0
  %169 = vmatpush.msra.mxu0 0.0
  %170 = vmatpush.msra.mxu0 0.0
  %171 = vmatpush.msra.mxu0 0.0
  %172 = vmatpush.msra.mxu0 0.0
  %173 = vmatpush.msra.mxu0 0.0
  %174 = vmatpush.msra.mxu0 0.0
  %v175 = vand.u32 %v17, 4294901760
  %v176 = vsub.f32 %v17, %v175
  %v177 = vand.u32 %v176, 4294901760
  %178 = vmatpush.msra.mxu0 %v177
  %v179 = vand.u32 %v16, 4294901760
  %v180 = vsub.f32 %v16, %v179
  %v181 = vand.u32 %v180, 4294901760
  %182 = vmatpush.msra.mxu0 %v181
  %v183 = vand.u32 %v24, 4294901760
  %184 = vmatmul.f32.gmra.mxu0 %v183
  %v185 = vpop.f32.mrf.mxu0
  %v186 = vadd.f32 %v153, %v185
  %v187 = vand.u32 %v27, 4294901760
  %188 = vmatmul.f32.gmra.mxu0 %v187
  %v189 = vpop.f32.mrf.mxu0
  %v190 = vadd.f32 %v159, %v189
  %191 = vdwg.mxu0
  %192 = vmatpush.msra.mxu0 0.0
  %193 = vmatpush.msra.mxu0 0.0
  %194 = vmatpush.msra.mxu0 0.0
  %195 = vmatpush.msra.mxu0 0.0
  %196 = vmatpush.msra.mxu0 0.0
  %197 = vmatpush.msra.mxu0 0.0
  %198 = vmatpush.msra.mxu0 0.0
  %199 = vmatpush.msra.mxu0 0.0
  %200 = vmatpush.msra.mxu0 0.0
  %201 = vmatpush.msra.mxu0 0.0
  %202 = vmatpush.msra.mxu0 0.0
  %203 = vmatpush.msra.mxu0 0.0
  %204 = vmatpush.msra.mxu0 0.0
  %205 = vmatpush.msra.mxu0 0.0
  %v206 = vand.u32 %v17, 4294901760
  %207 = vmatpush.msra.mxu0 %v206
  %v208 = vand.u32 %v16, 4294901760
  %209 = vmatpush.msra.mxu0 %v208
  %v210 = vand.u32 %v24, 4294901760
  %211 = vmatmul.f32.gmra.mxu0 %v210
  %v212 = vpop.f32.mrf.mxu0
  %v213 = vadd.f32 %v186, %v212
  %v214 = vand.u32 %v27, 4294901760
  %215 = vmatmul.f32.gmra.mxu0 %v214
  %v216 = vpop.f32.mrf.mxu0
  %v217 = vadd.f32 %v190, %v216
  %218 = vdwg.mxu0
  %vm219 = vcmask 261120
  %220 = vst.msk [vmem:[%s3] sm:$0xff] %vm219, %v213
  %221 = vst.msk [vmem:[%s3 + $0x8] sm:$0xff] %vm219, %v217
  // Predicated region
  $region14: #{forward.69} parent=0 // pred_check
    _
  $region15: #{forward.69} parent=0 // pred_check_branch
    %223 = sbr.rel (0) target = $region17
  $region16: #{forward.69} parent=0 // pred_region
    _
  $region17: #{forward.69} parent=0 // pred_fallthru
    _
  // Predicated region
  $region18: #{forward.69} parent=0 // pred_check
    _
  $region19: #{forward.69} parent=0 // pred_check_branch
    %225 = sbr.rel (0) target = $region21
  $region20: #{forward.69} parent=0 // pred_region
    _
  $region21: #{forward.69} parent=0 // pred_fallthru
    _

// kernel: forward.68
$region0: #{forward.68}
  #allocation0 [shape = 'u32[]', space=smem, size = 0x4, offset = 0x4, fixed_abs, tag = 'smem constant byte address 0x4 - core index']
  #allocation1 [shape = 'u32[72,128]{1,0:T(1,128)}', space=vmem, size = 0x9000, scoped, tag = 'internal scratch']
  %s0 = inlined_call_operand.vmem [shape: f32[16,8], index: 0, kind: input, shape index: {}]
  %s1 = inlined_call_operand.vmem [shape: f32[8,16], index: 1, kind: input, shape index: {}]
  %s2 = inlined_call_operand.vmem [shape: f32[1,16], index: 2, kind: input, shape index: {}]
  %s3 = inlined_call_operand.vmem [shape: f32[16,16], index: 3, kind: output, shape index: {}]
  %s4 = sld [smem:[#allocation0]]
  $region22: #{forward.68} parent=0
    _
  %s6 = ssub.s32 1, %s4
  %s7 = scalar_select 0, %s6, %s4
  // Predicated region
  $region2: #{forward.68} parent=0 // pred_check
    _
  $region3: #{forward.68} parent=0 // pred_check_branch
    %9 = sbr.rel (0) target = $region5
  $region4: #{forward.68} parent=0 // pred_region
    _
  $region5: #{forward.68} parent=0 // pred_fallthru
    _
  // Predicated region
  $region6: #{forward.68} parent=0 // pred_check
    _
  $region7: #{forward.68} parent=0 // pred_check_branch
    %11 = sbr.rel (0) target = $region9
  $region8: #{forward.68} parent=0 // pred_region
    _
  $region9: #{forward.68} parent=0 // pred_fallthru
    _
  // Predicated region
  $region10: #{forward.68} parent=0 // pred_check
    _
  $region11: #{forward.68} parent=0 // pred_check_branch
    %13 = sbr.rel (0) target = $region13
  $region12: #{forward.68} parent=0 // pred_region
    _
  $region13: #{forward.68} parent=0 // pred_fallthru
    _
  %v14 = vld [vmem:[%s0] sm:$0xff]
  %v15 = vld [vmem:[%s0 + $0x8] sm:$0xff]
  %v16 = vld [vmem:[%s1] sm:$0xff]
  %v17 = vld [vmem:[%s2] sm:$0x1]
  %v19 = vperm.slane %v17, 0
  %vm21 = vcmask 64512
  %v23 = vsel %vm21, %v14, 0
  %v26 = vsel %vm21, %v15, 0
  %28 = vmatpush.msra.mxu0 0.0
  %29 = vmatpush.msra.mxu0 0.0
  %30 = vmatpush.msra.mxu0 0.0
  %31 = vmatpush.msra.mxu0 0.0
  %32 = vmatpush.msra.mxu0 0.0
  %33 = vmatpush.msra.mxu0 0.0
  %34 = vmatpush.msra.mxu0 0.0
  %35 = vmatpush.msra.mxu0 0.0
  %36 = vmatpush.msra.mxu0 0.0
  %37 = vmatpush.msra.mxu0 0.0
  %38 = vmatpush.msra.mxu0 0.0
  %39 = vmatpush.msra.mxu0 0.0
  %40 = vmatpush.msra.mxu0 0.0
  %41 = vmatpush.msra.mxu0 0.0
  %42 = vmatpush.msra.mxu0 0.0
  %v43 = vand.u32 %v16, 4294901760
  %44 = vmatpush.msra.mxu0 %v43
  %v45 = vand.u32 %v23, 4294901760
  %v46 = vsub.f32 %v23, %v45
  %v47 = vand.u32 %v46, 4294901760
  %v48 = vsub.f32 %v46, %v47
  %v49 = vand.u32 %v48, 4294901760
  %50 = vmatmul.f32.gmra.mxu0 %v49
  %v51 = vpop.f32.mrf.mxu0
  %v52 = vadd.f32 %v19, %v51
  %v53 = vand.u32 %v26, 4294901760
  %v54 = vsub.f32 %v26, %v53
  %v55 = vand.u32 %v54, 4294901760
  %v56 = vsub.f32 %v54, %v55
  %v57 = vand.u32 %v56, 4294901760
  %58 = vmatmul.f32.gmra.mxu0 %v57
  %v59 = vpop.f32.mrf.mxu0
  %v60 = vadd.f32 %v19, %v59
  %61 = vdwg.mxu0
  %62 = vmatpush.msra.mxu0 0.0
  %63 = vmatpush.msra.mxu0 0.0
  %64 = vmatpush.msra.mxu0 0.0
  %65 = vmatpush.msra.mxu0 0.0
  %66 = vmatpush.msra.mxu0 0.0
  %67 = vmatpush.msra.mxu0 0.0
  %68 = vmatpush.msra.mxu0 0.0
  %69 = vmatpush.msra.mxu0 0.0
  %70 = vmatpush.msra.mxu0 0.0
  %71 = vmatpush.msra.mxu0 0.0
  %72 = vmatpush.msra.mxu0 0.0
  %73 = vmatpush.msra.mxu0 0.0
  %74 = vmatpush.msra.mxu0 0.0
  %75 = vmatpush.msra.mxu0 0.0
  %76 = vmatpush.msra.mxu0 0.0
  %v77 = vand.u32 %v16, 4294901760
  %v78 = vsub.f32 %v16, %v77
  %v79 = vand.u32 %v78, 4294901760
  %v80 = vsub.f32 %v78, %v79
  %v81 = vand.u32 %v80, 4294901760
  %82 = vmatpush.msra.mxu0 %v81
  %v83 = vand.u32 %v23, 4294901760
  %84 = vmatmul.f32.gmra.mxu0 %v83
  %v85 = vpop.f32.mrf.mxu0
  %v86 = vadd.f32 %v52, %v85
  %v87 = vand.u32 %v26, 4294901760
  %88 = vmatmul.f32.gmra.mxu0 %v87
  %v89 = vpop.f32.mrf.mxu0
  %v90 = vadd.f32 %v60, %v89
  %91 = vdwg.mxu0
  %92 = vmatpush.msra.mxu0 0.0
  %93 = vmatpush.msra.mxu0 0.0
  %94 = vmatpush.msra.mxu0 0.0
  %95 = vmatpush.msra.mxu0 0.0
  %96 = vmatpush.msra.mxu0 0.0
  %97 = vmatpush.msra.mxu0 0.0
  %98 = vmatpush.msra.mxu0 0.0
  %99 = vmatpush.msra.mxu0 0.0
  %100 = vmatpush.msra.mxu0 0.0
  %101 = vmatpush.msra.mxu0 0.0
  %102 = vmatpush.msra.mxu0 0.0
  %103 = vmatpush.msra.mxu0 0.0
  %104 = vmatpush.msra.mxu0 0.0
  %105 = vmatpush.msra.mxu0 0.0
  %106 = vmatpush.msra.mxu0 0.0
  %v107 = vand.u32 %v16, 4294901760
  %v108 = vsub.f32 %v16, %v107
  %109 = vmatpush.msra.mxu0 %v108
  %v110 = vand.u32 %v23, 4294901760
  %v111 = vsub.f32 %v23, %v110
  %112 = vmatmul.f32.gmra.mxu0 %v111
  %v113 = vpop.f32.mrf.mxu0
  %v114 = vadd.f32 %v86, %v113
  %v115 = vand.u32 %v26, 4294901760
  %v116 = vsub.f32 %v26, %v115
  %117 = vmatmul.f32.gmra.mxu0 %v116
  %v118 = vpop.f32.mrf.mxu0
  %v119 = vadd.f32 %v90, %v118
  %120 = vdwg.mxu0
  %121 = vmatpush.msra.mxu0 0.0
  %122 = vmatpush.msra.mxu0 0.0
  %123 = vmatpush.msra.mxu0 0.0
  %124 = vmatpush.msra.mxu0 0.0
  %125 = vmatpush.msra.mxu0 0.0
  %126 = vmatpush.msra.mxu0 0.0
  %127 = vmatpush.msra.mxu0 0.0
  %128 = vmatpush.msra.mxu0 0.0
  %129 = vmatpush.msra.mxu0 0.0
  %130 = vmatpush.msra.mxu0 0.0
  %131 = vmatpush.msra.mxu0 0.0
  %132 = vmatpush.msra.mxu0 0.0
  %133 = vmatpush.msra.mxu0 0.0
  %134 = vmatpush.msra.mxu0 0.0
  %135 = vmatpush.msra.mxu0 0.0
  %v136 = vand.u32 %v16, 4294901760
  %137 = vmatpush.msra.mxu0 %v136
  %v138 = vand.u32 %v23, 4294901760
  %v139 = vsub.f32 %v23, %v138
  %v140 = vand.u32 %v139, 4294901760
  %141 = vmatmul.f32.gmra.mxu0 %v140
  %v142 = vpop.f32.mrf.mxu0
  %v143 = vadd.f32 %v114, %v142
  %v144 = vand.u32 %v26, 4294901760
  %v145 = vsub.f32 %v26, %v144
  %v146 = vand.u32 %v145, 4294901760
  %147 = vmatmul.f32.gmra.mxu0 %v146
  %v148 = vpop.f32.mrf.mxu0
  %v149 = vadd.f32 %v119, %v148
  %150 = vdwg.mxu0
  %151 = vmatpush.msra.mxu0 0.0
  %152 = vmatpush.msra.mxu0 0.0
  %153 = vmatpush.msra.mxu0 0.0
  %154 = vmatpush.msra.mxu0 0.0
  %155 = vmatpush.msra.mxu0 0.0
  %156 = vmatpush.msra.mxu0 0.0
  %157 = vmatpush.msra.mxu0 0.0
  %158 = vmatpush.msra.mxu0 0.0
  %159 = vmatpush.msra.mxu0 0.0
  %160 = vmatpush.msra.mxu0 0.0
  %161 = vmatpush.msra.mxu0 0.0
  %162 = vmatpush.msra.mxu0 0.0
  %163 = vmatpush.msra.mxu0 0.0
  %164 = vmatpush.msra.mxu0 0.0
  %165 = vmatpush.msra.mxu0 0.0
  %v166 = vand.u32 %v16, 4294901760
  %v167 = vsub.f32 %v16, %v166
  %v168 = vand.u32 %v167, 4294901760
  %169 = vmatpush.msra.mxu0 %v168
  %v170 = vand.u32 %v23, 4294901760
  %171 = vmatmul.f32.gmra.mxu0 %v170
  %v172 = vpop.f32.mrf.mxu0
  %v173 = vadd.f32 %v143, %v172
  %v174 = vand.u32 %v26, 4294901760
  %175 = vmatmul.f32.gmra.mxu0 %v174
  %v176 = vpop.f32.mrf.mxu0
  %v177 = vadd.f32 %v149, %v176
  %178 = vdwg.mxu0
  %179 = vmatpush.msra.mxu0 0.0
  %180 = vmatpush.msra.mxu0 0.0
  %181 = vmatpush.msra.mxu0 0.0
  %182 = vmatpush.msra.mxu0 0.0
  %183 = vmatpush.msra.mxu0 0.0
  %184 = vmatpush.msra.mxu0 0.0
  %185 = vmatpush.msra.mxu0 0.0
  %186 = vmatpush.msra.mxu0 0.0
  %187 = vmatpush.msra.mxu0 0.0
  %188 = vmatpush.msra.mxu0 0.0
  %189 = vmatpush.msra.mxu0 0.0
  %190 = vmatpush.msra.mxu0 0.0
  %191 = vmatpush.msra.mxu0 0.0
  %192 = vmatpush.msra.mxu0 0.0
  %193 = vmatpush.msra.mxu0 0.0
  %v194 = vand.u32 %v16, 4294901760
  %195 = vmatpush.msra.mxu0 %v194
  %v196 = vand.u32 %v23, 4294901760
  %197 = vmatmul.f32.gmra.mxu0 %v196
  %v198 = vpop.f32.mrf.mxu0
  %v199 = vadd.f32 %v173, %v198
  %v200 = vand.u32 %v26, 4294901760
  %201 = vmatmul.f32.gmra.mxu0 %v200
  %v202 = vpop.f32.mrf.mxu0
  %v203 = vadd.f32 %v177, %v202
  %204 = vdwg.mxu0
  %v205 = vmax.f32 %v199, 0.0
  %v206 = vmax.f32 %v203, 0.0
  %vm207 = vcmask 130048
  %208 = vst.msk [vmem:[%s3] sm:$0xff] %vm207, %v205
  %209 = vst.msk [vmem:[%s3 + $0x8] sm:$0xff] %vm207, %v206
  // Predicated region
  $region14: #{forward.68} parent=0 // pred_check
    _
  $region15: #{forward.68} parent=0 // pred_check_branch
    %211 = sbr.rel (0) target = $region17
  $region16: #{forward.68} parent=0 // pred_region
    _
  $region17: #{forward.68} parent=0 // pred_fallthru
    _
  // Predicated region
  $region18: #{forward.68} parent=0 // pred_check
    _
  $region19: #{forward.68} parent=0 // pred_check_branch
    %213 = sbr.rel (0) target = $region21
  $region20: #{forward.68} parent=0 // pred_region
    _
  $region21: #{forward.68} parent=0 // pred_fallthru
    _

// kernel: forward.70
$region0: #{forward.70}
  #allocation0 [shape = 'u32[]', space=smem, size = 0x4, offset = 0x4, fixed_abs, tag = 'smem constant byte address 0x4 - core index']
  #allocation1 [shape = 'u32[72,128]{1,0:T(1,128)}', space=vmem, size = 0x9000, scoped, tag = 'internal scratch']
  %s0 = inlined_call_operand.vmem [shape: f32[16,32], index: 0, kind: input, shape index: {}]
  %s1 = inlined_call_operand.vmem [shape: f32[1,32], index: 1, kind: input, shape index: {}]
  %s2 = inlined_call_operand.vmem [shape: f32[1,32], index: 2, kind: input, shape index: {}]
  %s3 = inlined_call_operand.vmem [shape: f32[16,32], index: 3, kind: output, shape index: {}]
  %s4 = sld [smem:[#allocation0]]
  $region22: #{forward.70} parent=0
    _
  %s6 = ssub.s32 1, %s4
  %s7 = scalar_select 0, %s6, %s4
  // Predicated region
  $region2: #{forward.70} parent=0 // pred_check
    _
  $region3: #{forward.70} parent=0 // pred_check_branch
    %9 = sbr.rel (0) target = $region5
  $region4: #{forward.70} parent=0 // pred_region
    _
  $region5: #{forward.70} parent=0 // pred_fallthru
    _
  // Predicated region
  $region6: #{forward.70} parent=0 // pred_check
    _
  $region7: #{forward.70} parent=0 // pred_check_branch
    %11 = sbr.rel (0) target = $region9
  $region8: #{forward.70} parent=0 // pred_region
    _
  $region9: #{forward.70} parent=0 // pred_fallthru
    _
  // Predicated region
  $region10: #{forward.70} parent=0 // pred_check
    _
  $region11: #{forward.70} parent=0 // pred_check_branch
    %13 = sbr.rel (0) target = $region13
  $region12: #{forward.70} parent=0 // pred_region
    _
  $region13: #{forward.70} parent=0 // pred_fallthru
    _
  %v14 = vld [vmem:[%s0] sm:$0xff]
  %v15 = vld [vmem:[%s0 + $0x8] sm:$0xff]
  %vm16 = vcmask 261120
  %v17 = vsel %vm16, %v14, 0.0
  %18 = vadd.xlane.f32.xlu0 %v17
  %v19 = vpop.xlane.xlu0 %18
  %v20 = vsel %vm16, %v15, 0.0
  %21 = vadd.xlane.f32.xlu0 %v20
  %v22 = vpop.xlane.xlu0 %21
  %v23 = vrcp.pop 32.0
  %v24 = vmul.f32 32.0, %v23
  %v25 = vsub.f32 1.0, %v24
  %v26 = vmul.f32 %v23, %v25
  %v27 = vadd.f32 %v23, %v26
  %vm28 = vweird.f32 %v23
  %v29 = vsel %vm28, %v23, %v27
  %v30 = vmul.f32 %v19, %v29
  %v31 = vmul.f32 %v22, %v29
  %v32 = vsub.f32 %v14, %v30
  %v33 = vsub.f32 %v15, %v31
  %v34 = vmul.f32 %v32, %v32
  %v35 = vmul.f32 %v33, %v33
  %v36 = vsel %vm16, %v34, 0.0
  %37 = vadd.xlane.f32.xlu0 %v36
  %v38 = vpop.xlane.xlu0 %37
  %v39 = vsel %vm16, %v35, 0.0
  %40 = vadd.xlane.f32.xlu0 %v39
  %v41 = vpop.xlane.xlu0 %40
  %v42 = vmul.f32 %v38, %v29
  %v43 = vmul.f32 %v41, %v29
  %v44 = vadd.f32 %v42, 1e-05
  %v45 = vadd.f32 %v43, 1e-05
  %v46 = vrsqrt.pop %v44
  %v47 = vmul.f32 %v46, %v44
  %v48 = vmul.f32 %v47, %v46
  %v49 = vmul.f32 0.5, %v48
  %v50 = vsub.f32 1.5, %v49
  %v51 = vmul.f32 %v46, %v50
  %vm52 = vweird.f32 %v44
  %vm53 = vweird.f32 %v46
  %vm54 = vmor %vm52, %vm53
  %v55 = vsel %vm54, %v46, %v51
  %v56 = vrsqrt.pop %v45
  %v57 = vmul.f32 %v56, %v45
  %v58 = vmul.f32 %v57, %v56
  %v59 = vmul.f32 0.5, %v58
  %v60 = vsub.f32 1.5, %v59
  %v61 = vmul.f32 %v56, %v60
  %vm62 = vweird.f32 %v45
  %vm63 = vweird.f32 %v56
  %vm64 = vmor %vm62, %vm63
  %v65 = vsel %vm64, %v56, %v61
  %v66 = vmul.f32 %v32, %v55
  %v67 = vmul.f32 %v33, %v65
  %v68 = vld [vmem:[%s1] sm:$0x1]
  %v70 = vperm.slane %v68, 0
  %v72 = vmul.f32 %v66, %v70
  %v73 = vmul.f32 %v67, %v70
  %v74 = vld [vmem:[%s2] sm:$0x1]
  %v76 = vperm.slane %v74, 0
  %v78 = vadd.f32 %v72, %v76
  %v79 = vadd.f32 %v73, %v76
  %80 = vst.msk [vmem:[%s3] sm:$0xff] %vm16, %v78
  %81 = vst.msk [vmem:[%s3 + $0x8] sm:$0xff] %vm16, %v79
  // Predicated region
  $region14: #{forward.70} parent=0 // pred_check
    _
  $region15: #{forward.70} parent=0 // pred_check_branch
    %83 = sbr.rel (0) target = $region17
  $region16: #{forward.70} parent=0 // pred_region
    _
  $region17: #{forward.70} parent=0 // pred_fallthru
    _
  // Predicated region
  $region18: #{forward.70} parent=0 // pred_check
    _
  $region19: #{forward.70} parent=0 // pred_check_branch
    %85 = sbr.rel (0) target = $region21
  $region20: #{forward.70} parent=0 // pred_region
    _
  $region21: #{forward.70} parent=0 // pred_fallthru
    _

// kernel: forward.72
$region0: #{forward.72}
  #allocation0 [shape = 'u32[]', space=smem, size = 0x4, offset = 0x4, fixed_abs, tag = 'smem constant byte address 0x4 - core index']
  #allocation1 [shape = 'u32[72,128]{1,0:T(1,128)}', space=vmem, size = 0x9000, scoped, tag = 'internal scratch']
  %s0 = inlined_call_operand.vmem [shape: f32[2,8,32], index: 0, kind: input, shape index: {}]
  %s1 = inlined_call_operand.vmem [shape: f32[2,1,32], index: 1, kind: input, shape index: {}]
  %s2 = inlined_call_operand.vmem [shape: f32[2,8,32], index: 2, kind: output, shape index: {}]
  %s3 = sld [smem:[#allocation0]]
  $region41: #{forward.72} parent=0
    _
  %s5 = ssub.s32 1, %s3
  %s6 = scalar_select 0, %s5, %s3
  loop: start=0, step=1, limit=4
  $region2: #{forward.72} parent=0 // loop_pre_header
    _
  $region3: #{forward.72} parent=0 // loop_header
    %s8 = sphi 0, %s12
    %p9 = scmp.ge.s32.totalorder %s8, 4
    %s18 = sphi 0, %s20
    %s21 = sphi 0, %s18
    %s22 = sphi 0, %s21
    %s38 = sphi 0, %s22
    %s44 = sphi 0, %s46
    %s47 = sphi 0, %s44
    %s48 = sphi 0, %s47
    %s64 = sphi 0, %s48
    %s70 = sphi 0, %s72
    %s73 = sphi 0, %s70
    %s74 = sphi 0, %s73
    %s90 = sphi 0, %s74
  $region4: #{forward.72} parent=0 // loop_header_branch
    %11 = sbr.rel (%p9) target = $region8
  $region5: #{forward.72} parent=0 // loop_body
    %s13 = ssub.s32 %s8, 1
    %s14 = ssub.s32 %s8, 2
    %s15 = sadd.s32 %s8, 1
    %s16 = ssub.s32 %s8, %s15
    %p17 = scmp.eq.s32.totalorder %s16, 0
    %s19 = sadd.s32 %s18, 1
    %s20 = scalar_select %p17, %s18, %s19
    %p23 = pneg %p17
    %p24 = scmp.eq.s32.totalorder %s8, 1
    %p25 = por %p23, %p24
    %p26 = scmp.ne.s32.totalorder %s18, %s21
    %p27 = scmp.eq.s32.totalorder %s8, 0
    %p28 = por %p26, %p27
    %p29 = scmp.ne.s32.totalorder %s18, %s21
    %p30 = scmp.eq.s32.totalorder %s13, 1
    %p31 = por %p29, %p30
    %p32 = scmp.ne.s32.totalorder %s21, %s22
    %p33 = scmp.eq.s32.totalorder %s13, 0
    %p34 = por %p32, %p33
    %p35 = scmp.ne.s32.totalorder %s21, %s22
    %p36 = scmp.eq.s32.totalorder %s14, 1
    %p37 = por %p35, %p36
    %p39 = scmp.ne.s32.totalorder %s22, %s38
    %p40 = scmp.eq.s32.totalorder %s14, 0
    %p41 = por %p39, %p40
    %s42 = ssub.s32 %s8, %s15
    %p43 = scmp.eq.s32.totalorder %s42, 0
    %s45 = sadd.s32 %s44, 1
    %s46 = scalar_select %p43, %s44, %s45
    %p49 = pneg %p43
    %p50 = scmp.eq.s32.totalorder %s8, 1
    %p51 = por %p49, %p50
    %p52 = scmp.ne.s32.totalorder %s44, %s47
    %p53 = scmp.eq.s32.totalorder %s8, 0
    %p54 = por %p52, %p53
    %p55 = scmp.ne.s32.totalorder %s44, %s47
    %p56 = scmp.eq.s32.totalorder %s13, 1
    %p57 = por %p55, %p56
    %p58 = scmp.ne.s32.totalorder %s47, %s48
    %p59 = scmp.eq.s32.totalorder %s13, 0
    %p60 = por %p58, %p59
    %p61 = scmp.ne.s32.totalorder %s47, %s48
    %p62 = scmp.eq.s32.totalorder %s14, 1
    %p63 = por %p61, %p62
    %p65 = scmp.ne.s32.totalorder %s48, %s64
    %p66 = scmp.eq.s32.totalorder %s14, 0
    %p67 = por %p65, %p66
    %s68 = ssub.s32 %s8, %s15
    %p69 = scmp.eq.s32.totalorder %s68, 0
    %s71 = sadd.s32 %s70, 1
    %s72 = scalar_select %p69, %s70, %s71
    %p75 = pneg %p69
    %p76 = scmp.eq.s32.totalorder %s8, 1
    %p77 = por %p75, %p76
    %p78 = scmp.ne.s32.totalorder %s70, %s73
    %p79 = scmp.eq.s32.totalorder %s8, 0
    %p80 = por %p78, %p79
    %p81 = scmp.ne.s32.totalorder %s70, %s73
    %p82 = scmp.eq.s32.totalorder %s13, 1
    %p83 = por %p81, %p82
    %p84 = scmp.ne.s32.totalorder %s73, %s74
    %p85 = scmp.eq.s32.totalorder %s13, 0
    %p86 = por %p84, %p85
    %p87 = scmp.ne.s32.totalorder %s73, %s74
    %p88 = scmp.eq.s32.totalorder %s14, 1
    %p89 = por %p87, %p88
    %p91 = scmp.ne.s32.totalorder %s74, %s90
    %p92 = scmp.eq.s32.totalorder %s14, 0
    %p93 = por %p91, %p92
    %p94 = scmp.le.s32.totalorder 1, %s8
    %p95 = scmp.lt.s32.totalorder %s8, 3
    %p96 = pnand %p94, %p95
    %p97 = pneg %p96
    // Predicated region
    $region9: #{forward.72} parent=5 // pred_check
      _
    $region10: #{forward.72} parent=5 // pred_check_branch
      %99 = sbr.rel (%p96) target = $region12
    $region11: #{forward.72} parent=5 // pred_region
      %s100 = ssub.s32 %s8, 1
    $region12: #{forward.72} parent=5 // pred_fallthru
      _
    %p101 = scmp.lt.s32.totalorder %s8, 2
    // Predicated region
    $region13: #{forward.72} parent=5 // pred_check
      %p102 = pneg %p101
    $region14: #{forward.72} parent=5 // pred_check_branch
      %104 = sbr.rel (%p102) target = $region16
    $region15: #{forward.72} parent=5 // pred_region
      // Predicated region
      $region17: #{forward.72} parent=15 // pred_check
        %p105 = pneg %p28
      $region18: #{forward.72} parent=15 // pred_check_branch
        %107 = sbr.rel (%p105) target = $region20
      $region19: #{forward.72} parent=15 // pred_region
        %p108 = scmp.lt.s32.totalorder %s8, 1
        %s109 = scalar_select %p108, %s8, 1
        %s110 = smul.addr %s109, 8
        %s111 = scalar_lea.vmem %s0, %s110
      $region20: #{forward.72} parent=15 // pred_fallthru
        _
      // Predicated region
      $region21: #{forward.72} parent=15 // pred_check
        %p112 = pneg %p54
      $region22: #{forward.72} parent=15 // pred_check_branch
        %114 = sbr.rel (%p112) target = $region24
      $region23: #{forward.72} parent=15 // pred_region
        %p115 = scmp.lt.s32.totalorder %s8, 1
        %s116 = scalar_select %p115, %s8, 1
        %s117 = scalar_lea.vmem %s1, %s116
      $region24: #{forward.72} parent=15 // pred_fallthru
        _
    $region16: #{forward.72} parent=5 // pred_fallthru
      _
    %p118 = scmp.le.s32.totalorder 1, %s8
    %p119 = scmp.lt.s32.totalorder %s8, 3
    %p120 = pnand %p118, %p119
    %p121 = pneg %p120
    // Predicated region
    $region25: #{forward.72} parent=5 // pred_check
      _
    $region26: #{forward.72} parent=5 // pred_check_branch
      %123 = sbr.rel (%p120) target = $region28
    $region27: #{forward.72} parent=5 // pred_region
      %s124 = ssub.s32 %s8, 1
      %p125 = scmp.lt.s32.totalorder %s13, 1
      %s126 = scalar_select %p125, %s13, 1
      %s127 = smul.addr %s126, 8
      %s128 = scalar_lea.vmem %s0, %s127
      %p129 = pneg %p34
      %p130 = pneg %p31
      %p131 = scmp.lt.s32.totalorder %s13, 1
      %s132 = scalar_select %p131, %s13, 1
      %s133 = scalar_lea.vmem %s1, %s132
      %p134 = pneg %p60
      %p135 = pneg %p57
      %p136 = pneg %p86
      %p137 = pneg %p83
      %p138 = scmp.lt.s32.totalorder %s13, 1
      %s139 = scalar_select %p138, %s13, 1
      %s140 = smul.addr %s139, 8
      %s141 = scalar_lea.vmem %s2, %s140
      %p142 = scmp.lt.s32.totalorder %s13, 1
      %s143 = scalar_select %p142, %s13, 1
      %s144 = smul.addr %s143, 8
      %s145 = scalar_lea.vmem %s0, %s144
      %p146 = scmp.lt.s32.totalorder %s13, 1
      %s147 = scalar_select %p146, %s13, 1
      %s148 = scalar_lea.vmem %s1, %s147
      %p149 = scmp.lt.s32.totalorder %s13, 1
      %s150 = scalar_select %p149, %s13, 1
      %s151 = smul.addr %s150, 8
      %s152 = scalar_lea.vmem %s2, %s151
      %v153 = vld [vmem:[%s145] sm:$0xff]
      %v154 = vld [vmem:[%s148] sm:$0x1]
      %v156 = vperm.slane %v154, 0
      %v158 = vadd.f32 %v153, %v156
      %vm159 = vcmask 261120
      %160 = vst.msk [vmem:[%s152] sm:$0xff] %vm159, %v158
      %p161 = scmp.lt.s32.totalorder %s13, 1
      %s162 = scalar_select %p161, %s13, 1
      %s163 = smul.addr %s162, 8
      %s164 = scalar_lea.vmem %s2, %s163
      // Predicated region
      $region29: #{forward.72} parent=27 // pred_check
        %p165 = pneg %p83
      $region30: #{forward.72} parent=27 // pred_check_branch
        %167 = sbr.rel (%p165) target = $region32
      $region31: #{forward.72} parent=27 // pred_region
        _
      $region32: #{forward.72} parent=27 // pred_fallthru
        _
    $region28: #{forward.72} parent=5 // pred_fallthru
      _
    %p168 = scmp.le.s32.totalorder 2, %s8
    // Predicated region
    $region33: #{forward.72} parent=5 // pred_check
      %p169 = pneg %p168
    $region34: #{forward.72} parent=5 // pred_check_branch
      %171 = sbr.rel (%p169) target = $region36
    $region35: #{forward.72} parent=5 // pred_region
      %s172 = ssub.s32 %s8, 2
      // Predicated region
      $region37: #{forward.72} parent=35 // pred_check
        %p173 = pneg %p89
      $region38: #{forward.72} parent=35 // pred_check_branch
        %175 = sbr.rel (%p173) target = $region40
      $region39: #{forward.72} parent=35 // pred_region
        %p176 = scmp.lt.s32.totalorder %s14, 1
        %s177 = scalar_select %p176, %s14, 1
        %s178 = smul.addr %s177, 8
        %s179 = scalar_lea.vmem %s2, %s178
      $region40: #{forward.72} parent=35 // pred_fallthru
        _
    $region36: #{forward.72} parent=5 // pred_fallthru
      _
  $region6: #{forward.72} parent=0 // loop_footer
    %s12 = sadd.s32 1, %s8
  $region7: #{forward.72} parent=0 // loop_footer_branch
    %7 = sbr.rel target = $region3
  $region8: #{forward.72} parent=0 // loop_exit
    _

// kernel: forward.92
$region0: #{forward.92}
  #allocation0 [shape = 'u32[]', space=smem, size = 0x4, offset = 0x4, fixed_abs, tag = 'smem constant byte address 0x4 - core index']
  #allocation1 [shape = 'u32[72,128]{1,0:T(1,128)}', space=vmem, size = 0x9000, scoped, tag = 'internal scratch']
  %s0 = inlined_call_operand.vmem [shape: f32[16,32], index: 0, kind: input, shape index: {}]
  %s1 = inlined_call_operand.vmem [shape: f32[32,32], index: 1, kind: input, shape index: {}]
  %s2 = inlined_call_operand.vmem [shape: f32[1,32], index: 2, kind: input, shape index: {}]
  %s3 = inlined_call_operand.vmem [shape: f32[16,32], index: 3, kind: output, shape index: {}]
  %s4 = sld [smem:[#allocation0]]
  $region22: #{forward.92} parent=0
    _
  %s6 = ssub.s32 1, %s4
  %s7 = scalar_select 0, %s6, %s4
  // Predicated region
  $region2: #{forward.92} parent=0 // pred_check
    _
  $region3: #{forward.92} parent=0 // pred_check_branch
    %9 = sbr.rel (0) target = $region5
  $region4: #{forward.92} parent=0 // pred_region
    _
  $region5: #{forward.92} parent=0 // pred_fallthru
    _
  // Predicated region
  $region6: #{forward.92} parent=0 // pred_check
    _
  $region7: #{forward.92} parent=0 // pred_check_branch
    %11 = sbr.rel (0) target = $region9
  $region8: #{forward.92} parent=0 // pred_region
    _
  $region9: #{forward.92} parent=0 // pred_fallthru
    _
  // Predicated region
  $region10: #{forward.92} parent=0 // pred_check
    _
  $region11: #{forward.92} parent=0 // pred_check_branch
    %13 = sbr.rel (0) target = $region13
  $region12: #{forward.92} parent=0 // pred_region
    _
  $region13: #{forward.92} parent=0 // pred_fallthru
    _
  %v14 = vld [vmem:[%s0] sm:$0xff]
  %v15 = vld [vmem:[%s0 + $0x8] sm:$0xff]
  %v16 = vld [vmem:[%s1] sm:$0xff]
  %v17 = vld [vmem:[%s1 + $0x8] sm:$0xff]
  %v18 = vld [vmem:[%s1 + $0x10] sm:$0xff]
  %v19 = vld [vmem:[%s1 + $0x18] sm:$0xff]
  %v20 = vld [vmem:[%s2] sm:$0x1]
  %v22 = vperm.slane %v20, 0
  %vm24 = vcmask 261120
  %v26 = vsel %vm24, %v14, 0
  %v29 = vsel %vm24, %v15, 0
  %31 = vmatpush.msra.mxu0 0.0
  %32 = vmatpush.msra.mxu0 0.0
  %33 = vmatpush.msra.mxu0 0.0
  %34 = vmatpush.msra.mxu0 0.0
  %35 = vmatpush.msra.mxu0 0.0
  %36 = vmatpush.msra.mxu0 0.0
  %37 = vmatpush.msra.mxu0 0.0
  %38 = vmatpush.msra.mxu0 0.0
  %39 = vmatpush.msra.mxu0 0.0
  %40 = vmatpush.msra.mxu0 0.0
  %41 = vmatpush.msra.mxu0 0.0
  %42 = vmatpush.msra.mxu0 0.0
  %v43 = vand.u32 %v19, 4294901760
  %44 = vmatpush.msra.mxu0 %v43
  %v45 = vand.u32 %v18, 4294901760
  %46 = vmatpush.msra.mxu0 %v45
  %v47 = vand.u32 %v17, 4294901760
  %48 = vmatpush.msra.mxu0 %v47
  %v49 = vand.u32 %v16, 4294901760
  %50 = vmatpush.msra.mxu0 %v49
  %v51 = vand.u32 %v26, 4294901760
  %v52 = vsub.f32 %v26, %v51
  %v53 = vand.u32 %v52, 4294901760
  %v54 = vsub.f32 %v52, %v53
  %v55 = vand.u32 %v54, 4294901760
  %56 = vmatmul.f32.gmra.mxu0 %v55
  %v57 = vpop.f32.mrf.mxu0
  %v58 = vadd.f32 %v22, %v57
  %v59 = vand.u32 %v29, 4294901760
  %v60 = vsub.f32 %v29, %v59
  %v61 = vand.u32 %v60, 4294901760
  %v62 = vsub.f32 %v60, %v61
  %v63 = vand.u32 %v62, 4294901760
  %64 = vmatmul.f32.gmra.mxu0 %v63
  %v65 = vpop.f32.mrf.mxu0
  %v66 = vadd.f32 %v22, %v65
  %67 = vdwg.mxu0
  %68 = vmatpush.msra.mxu0 0.0
  %69 = vmatpush.msra.mxu0 0.0
  %70 = vmatpush.msra.mxu0 0.0
  %71 = vmatpush.msra.mxu0 0.0
  %72 = vmatpush.msra.mxu0 0.0
  %73 = vmatpush.msra.mxu0 0.0
  %74 = vmatpush.msra.mxu0 0.0
  %75 = vmatpush.msra.mxu0 0.0
  %76 = vmatpush.msra.mxu0 0.0
  %77 = vmatpush.msra.mxu0 0.0
  %78 = vmatpush.msra.mxu0 0.0
  %79 = vmatpush.msra.mxu0 0.0
  %v80 = vand.u32 %v19, 4294901760
  %v81 = vsub.f32 %v19, %v80
  %v82 = vand.u32 %v81, 4294901760
  %v83 = vsub.f32 %v81, %v82
  %v84 = vand.u32 %v83, 4294901760
  %85 = vmatpush.msra.mxu0 %v84
  %v86 = vand.u32 %v18, 4294901760
  %v87 = vsub.f32 %v18, %v86
  %v88 = vand.u32 %v87, 4294901760
  %v89 = vsub.f32 %v87, %v88
  %v90 = vand.u32 %v89, 4294901760
  %91 = vmatpush.msra.mxu0 %v90
  %v92 = vand.u32 %v17, 4294901760
  %v93 = vsub.f32 %v17, %v92
  %v94 = vand.u32 %v93, 4294901760
  %v95 = vsub.f32 %v93, %v94
  %v96 = vand.u32 %v95, 4294901760
  %97 = vmatpush.msra.mxu0 %v96
  %v98 = vand.u32 %v16, 4294901760
  %v99 = vsub.f32 %v16, %v98
  %v100 = vand.u32 %v99, 4294901760
  %v101 = vsub.f32 %v99, %v100
  %v102 = vand.u32 %v101, 4294901760
  %103 = vmatpush.msra.mxu0 %v102
  %v104 = vand.u32 %v26, 4294901760
  %105 = vmatmul.f32.gmra.mxu0 %v104
  %v106 = vpop.f32.mrf.mxu0
  %v107 = vadd.f32 %v58, %v106
  %v108 = vand.u32 %v29, 4294901760
  %109 = vmatmul.f32.gmra.mxu0 %v108
  %v110 = vpop.f32.mrf.mxu0
  %v111 = vadd.f32 %v66, %v110
  %112 = vdwg.mxu0
  %113 = vmatpush.msra.mxu0 0.0
  %114 = vmatpush.msra.mxu0 0.0
  %115 = vmatpush.msra.mxu0 0.0
  %116 = vmatpush.msra.mxu0 0.0
  %117 = vmatpush.msra.mxu0 0.0
  %118 = vmatpush.msra.mxu0 0.0
  %119 = vmatpush.msra.mxu0 0.0
  %120 = vmatpush.msra.mxu0 0.0
  %121 = vmatpush.msra.mxu0 0.0
  %122 = vmatpush.msra.mxu0 0.0
  %123 = vmatpush.msra.mxu0 0.0
  %124 = vmatpush.msra.mxu0 0.0
  %v125 = vand.u32 %v19, 4294901760
  %v126 = vsub.f32 %v19, %v125
  %127 = vmatpush.msra.mxu0 %v126
  %v128 = vand.u32 %v18, 4294901760
  %v129 = vsub.f32 %v18, %v128
  %130 = vmatpush.msra.mxu0 %v129
  %v131 = vand.u32 %v17, 4294901760
  %v132 = vsub.f32 %v17, %v131
  %133 = vmatpush.msra.mxu0 %v132
  %v134 = vand.u32 %v16, 4294901760
  %v135 = vsub.f32 %v16, %v134
  %136 = vmatpush.msra.mxu0 %v135
  %v137 = vand.u32 %v26, 4294901760
  %v138 = vsub.f32 %v26, %v137
  %139 = vmatmul.f32.gmra.mxu0 %v138
  %v140 = vpop.f32.mrf.mxu0
  %v141 = vadd.f32 %v107, %v140
  %v142 = vand.u32 %v29, 4294901760
  %v143 = vsub.f32 %v29, %v142
  %144 = vmatmul.f32.gmra.mxu0 %v143
  %v145 = vpop.f32.mrf.mxu0
  %v146 = vadd.f32 %v111, %v145
  %147 = vdwg.mxu0
  %148 = vmatpush.msra.mxu0 0.0
  %149 = vmatpush.msra.mxu0 0.0
  %150 = vmatpush.msra.mxu0 0.0
  %151 = vmatpush.msra.mxu0 0.0
  %152 = vmatpush.msra.mxu0 0.0
  %153 = vmatpush.msra.mxu0 0.0
  %154 = vmatpush.msra.mxu0 0.0
  %155 = vmatpush.msra.mxu0 0.0
  %156 = vmatpush.msra.mxu0 0.0
  %157 = vmatpush.msra.mxu0 0.0
  %158 = vmatpush.msra.mxu0 0.0
  %159 = vmatpush.msra.mxu0 0.0
  %v160 = vand.u32 %v19, 4294901760
  %161 = vmatpush.msra.mxu0 %v160
  %v162 = vand.u32 %v18, 4294901760
  %163 = vmatpush.msra.mxu0 %v162
  %v164 = vand.u32 %v17, 4294901760
  %165 = vmatpush.msra.mxu0 %v164
  %v166 = vand.u32 %v16, 4294901760
  %167 = vmatpush.msra.mxu0 %v166
  %v168 = vand.u32 %v26, 4294901760
  %v169 = vsub.f32 %v26, %v168
  %v170 = vand.u32 %v169, 4294901760
  %171 = vmatmul.f32.gmra.mxu0 %v170
  %v172 = vpop.f32.mrf.mxu0
  %v173 = vadd.f32 %v141, %v172
  %v174 = vand.u32 %v29, 4294901760
  %v175 = vsub.f32 %v29, %v174
  %v176 = vand.u32 %v175, 4294901760
  %177 = vmatmul.f32.gmra.mxu0 %v176
  %v178 = vpop.f32.mrf.mxu0
  %v179 = vadd.f32 %v146, %v178
  %180 = vdwg.mxu0
  %181 = vmatpush.msra.mxu0 0.0
  %182 = vmatpush.msra.mxu0 0.0
  %183 = vmatpush.msra.mxu0 0.0
  %184 = vmatpush.msra.mxu0 0.0
  %185 = vmatpush.msra.mxu0 0.0
  %186 = vmatpush.msra.mxu0 0.0
  %187 = vmatpush.msra.mxu0 0.0
  %188 = vmatpush.msra.mxu0 0.0
  %189 = vmatpush.msra.mxu0 0.0
  %190 = vmatpush.msra.mxu0 0.0
  %191 = vmatpush.msra.mxu0 0.0
  %192 = vmatpush.msra.mxu0 0.0
  %v193 = vand.u32 %v19, 4294901760
  %v194 = vsub.f32 %v19, %v193
  %v195 = vand.u32 %v194, 4294901760
  %196 = vmatpush.msra.mxu0 %v195
  %v197 = vand.u32 %v18, 4294901760
  %v198 = vsub.f32 %v18, %v197
  %v199 = vand.u32 %v198, 4294901760
  %200 = vmatpush.msra.mxu0 %v199
  %v201 = vand.u32 %v17, 4294901760
  %v202 = vsub.f32 %v17, %v201
  %v203 = vand.u32 %v202, 4294901760
  %204 = vmatpush.msra.mxu0 %v203
  %v205 = vand.u32 %v16, 4294901760
  %v206 = vsub.f32 %v16, %v205
  %v207 = vand.u32 %v206, 4294901760
  %208 = vmatpush.msra.mxu0 %v207
  %v209 = vand.u32 %v26, 4294901760
  %210 = vmatmul.f32.gmra.mxu0 %v209
  %v211 = vpop.f32.mrf.mxu0
  %v212 = vadd.f32 %v173, %v211
  %v213 = vand.u32 %v29, 4294901760
  %214 = vmatmul.f32.gmra.mxu0 %v213
  %v215 = vpop.f32.mrf.mxu0
  %v216 = vadd.f32 %v179, %v215
  %217 = vdwg.mxu0
  %218 = vmatpush.msra.mxu0 0.0
  %219 = vmatpush.msra.mxu0 0.0
  %220 = vmatpush.msra.mxu0 0.0
  %221 = vmatpush.msra.mxu0 0.0
  %222 = vmatpush.msra.mxu0 0.0
  %223 = vmatpush.msra.mxu0 0.0
  %224 = vmatpush.msra.mxu0 0.0
  %225 = vmatpush.msra.mxu0 0.0
  %226 = vmatpush.msra.mxu0 0.0
  %227 = vmatpush.msra.mxu0 0.0
  %228 = vmatpush.msra.mxu0 0.0
  %229 = vmatpush.msra.mxu0 0.0
  %v230 = vand.u32 %v19, 4294901760
  %231 = vmatpush.msra.mxu0 %v230
  %v232 = vand.u32 %v18, 4294901760
  %233 = vmatpush.msra.mxu0 %v232
  %v234 = vand.u32 %v17, 4294901760
  %235 = vmatpush.msra.mxu0 %v234
  %v236 = vand.u32 %v16, 4294901760
  %237 = vmatpush.msra.mxu0 %v236
  %v238 = vand.u32 %v26, 4294901760
  %239 = vmatmul.f32.gmra.mxu0 %v238
  %v240 = vpop.f32.mrf.mxu0
  %v241 = vadd.f32 %v212, %v240
  %v242 = vand.u32 %v29, 4294901760
  %243 = vmatmul.f32.gmra.mxu0 %v242
  %v244 = vpop.f32.mrf.mxu0
  %v245 = vadd.f32 %v216, %v244
  %246 = vdwg.mxu0
  %247 = vst.msk [vmem:[%s3] sm:$0xff] %vm24, %v241
  %248 = vst.msk [vmem:[%s3 + $0x8] sm:$0xff] %vm24, %v245
  // Predicated region
  $region14: #{forward.92} parent=0 // pred_check
    _
  $region15: #{forward.92} parent=0 // pred_check_branch
    %250 = sbr.rel (0) target = $region17
  $region16: #{forward.92} parent=0 // pred_region
    _
  $region17: #{forward.92} parent=0 // pred_fallthru
    _
  // Predicated region
  $region18: #{forward.92} parent=0 // pred_check
    _
  $region19: #{forward.92} parent=0 // pred_check_branch
    %252 = sbr.rel (0) target = $region21
  $region20: #{forward.92} parent=0 // pred_region
    _
  $region21: #{forward.92} parent=0 // pred_fallthru
    _

// kernel: forward.97
$region0: #{forward.97}
  #allocation0 [shape = 'u32[]', space=smem, size = 0x4, offset = 0x4, fixed_abs, tag = 'smem constant byte address 0x4 - core index']
  #allocation1 [shape = 'u32[72,128]{1,0:T(1,128)}', space=vmem, size = 0x9000, scoped, tag = 'internal scratch']
  %s0 = inlined_call_operand.vmem [shape: f32[16,32], index: 0, kind: input, shape index: {}]
  %s1 = inlined_call_operand.vmem [shape: f32[16,32], index: 1, kind: input, shape index: {}]
  %s2 = inlined_call_operand.vmem [shape: f32[1,32], index: 2, kind: input, shape index: {}]
  %s3 = inlined_call_operand.vmem [shape: f32[1,32], index: 3, kind: input, shape index: {}]
  %s4 = inlined_call_operand.vmem [shape: f32[16,32], index: 4, kind: output, shape index: {}]
  %s5 = sld [smem:[#allocation0]]
  $region26: #{forward.97} parent=0
    _
  %s7 = ssub.s32 1, %s5
  %s8 = scalar_select 0, %s7, %s5
  // Predicated region
  $region2: #{forward.97} parent=0 // pred_check
    _
  $region3: #{forward.97} parent=0 // pred_check_branch
    %10 = sbr.rel (0) target = $region5
  $region4: #{forward.97} parent=0 // pred_region
    _
  $region5: #{forward.97} parent=0 // pred_fallthru
    _
  // Predicated region
  $region6: #{forward.97} parent=0 // pred_check
    _
  $region7: #{forward.97} parent=0 // pred_check_branch
    %12 = sbr.rel (0) target = $region9
  $region8: #{forward.97} parent=0 // pred_region
    _
  $region9: #{forward.97} parent=0 // pred_fallthru
    _
  // Predicated region
  $region10: #{forward.97} parent=0 // pred_check
    _
  $region11: #{forward.97} parent=0 // pred_check_branch
    %14 = sbr.rel (0) target = $region13
  $region12: #{forward.97} parent=0 // pred_region
    _
  $region13: #{forward.97} parent=0 // pred_fallthru
    _
  // Predicated region
  $region14: #{forward.97} parent=0 // pred_check
    _
  $region15: #{forward.97} parent=0 // pred_check_branch
    %16 = sbr.rel (0) target = $region17
  $region16: #{forward.97} parent=0 // pred_region
    _
  $region17: #{forward.97} parent=0 // pred_fallthru
    _
  %v17 = vld [vmem:[%s0] sm:$0xff]
  %v18 = vld [vmem:[%s0 + $0x8] sm:$0xff]
  %v19 = vld [vmem:[%s1] sm:$0xff]
  %v20 = vld [vmem:[%s1 + $0x8] sm:$0xff]
  %v21 = vadd.f32 %v17, %v19
  %v22 = vadd.f32 %v18, %v20
  %vm23 = vcmask 261120
  %v24 = vsel %vm23, %v21, 0.0
  %25 = vadd.xlane.f32.xlu0 %v24
  %v26 = vpop.xlane.xlu0 %25
  %v27 = vsel %vm23, %v22, 0.0
  %28 = vadd.xlane.f32.xlu0 %v27
  %v29 = vpop.xlane.xlu0 %28
  %v30 = vrcp.pop 32.0
  %v31 = vmul.f32 32.0, %v30
  %v32 = vsub.f32 1.0, %v31
  %v33 = vmul.f32 %v30, %v32
  %v34 = vadd.f32 %v30, %v33
  %vm35 = vweird.f32 %v30
  %v36 = vsel %vm35, %v30, %v34
  %v37 = vmul.f32 %v26, %v36
  %v38 = vmul.f32 %v29, %v36
  %v39 = vsub.f32 %v21, %v37
  %v40 = vsub.f32 %v22, %v38
  %v41 = vmul.f32 %v39, %v39
  %v42 = vmul.f32 %v40, %v40
  %v43 = vsel %vm23, %v41, 0.0
  %44 = vadd.xlane.f32.xlu0 %v43
  %v45 = vpop.xlane.xlu0 %44
  %v46 = vsel %vm23, %v42, 0.0
  %47 = vadd.xlane.f32.xlu0 %v46
  %v48 = vpop.xlane.xlu0 %47
  %v49 = vmul.f32 %v45, %v36
  %v50 = vmul.f32 %v48, %v36
  %v51 = vadd.f32 %v49, 1e-05
  %v52 = vadd.f32 %v50, 1e-05
  %v53 = vrsqrt.pop %v51
  %v54 = vmul.f32 %v53, %v51
  %v55 = vmul.f32 %v54, %v53
  %v56 = vmul.f32 0.5, %v55
  %v57 = vsub.f32 1.5, %v56
  %v58 = vmul.f32 %v53, %v57
  %vm59 = vweird.f32 %v51
  %vm60 = vweird.f32 %v53
  %vm61 = vmor %vm59, %vm60
  %v62 = vsel %vm61, %v53, %v58
  %v63 = vrsqrt.pop %v52
  %v64 = vmul.f32 %v63, %v52
  %v65 = vmul.f32 %v64, %v63
  %v66 = vmul.f32 0.5, %v65
  %v67 = vsub.f32 1.5, %v66
  %v68 = vmul.f32 %v63, %v67
  %vm69 = vweird.f32 %v52
  %vm70 = vweird.f32 %v63
  %vm71 = vmor %vm69, %vm70
  %v72 = vsel %vm71, %v63, %v68
  %v73 = vmul.f32 %v39, %v62
  %v74 = vmul.f32 %v40, %v72
  %v75 = vld [vmem:[%s2] sm:$0x1]
  %v77 = vperm.slane %v75, 0
  %v79 = vmul.f32 %v73, %v77
  %v80 = vmul.f32 %v74, %v77
  %v81 = vld [vmem:[%s3] sm:$0x1]
  %v83 = vperm.slane %v81, 0
  %v85 = vadd.f32 %v79, %v83
  %v86 = vadd.f32 %v80, %v83
  %87 = vst.msk [vmem:[%s4] sm:$0xff] %vm23, %v85
  %88 = vst.msk [vmem:[%s4 + $0x8] sm:$0xff] %vm23, %v86
  // Predicated region
  $region18: #{forward.97} parent=0 // pred_check
    _
  $region19: #{forward.97} parent=0 // pred_check_branch
    %90 = sbr.rel (0) target = $region21
  $region20: #{forward.97} parent=0 // pred_region
    _
  $region21: #{forward.97} parent=0 // pred_fallthru
    _
  // Predicated region
  $region22: #{forward.97} parent=0 // pred_check
    _
  $region23: #{forward.97} parent=0 // pred_check_branch
    %92 = sbr.rel (0) target = $region25
  $region24: #{forward.97} parent=0 // pred_region
    _
  $region25: #{forward.97} parent=0 // pred_fallthru
    _

// kernel: forward.95
$region0: #{forward.95}
  #allocation0 [shape = 'u32[]', space=smem, size = 0x4, offset = 0x4, fixed_abs, tag = 'smem constant byte address 0x4 - core index']
  #allocation1 [shape = 'u32[72,128]{1,0:T(1,128)}', space=vmem, size = 0x9000, scoped, tag = 'internal scratch']
  %s0 = inlined_call_operand.vmem [shape: f32[4,8,16], index: 0, kind: input, shape index: {}]
  %s1 = inlined_call_operand.vmem [shape: f32[4,8,16], index: 1, kind: input, shape index: {}]
  %s2 = inlined_call_operand.vmem [shape: f32[4,8,16], index: 2, kind: input, shape index: {}]
  %s3 = inlined_call_operand.vmem [shape: f32[4,8,16], index: 3, kind: output, shape index: {}]
  %s4 = sld [smem:[#allocation0]]
  $region45: #{forward.95} parent=0
    _
  %s6 = ssub.s32 1, %s4
  %s7 = scalar_select 0, %s6, %s4
  loop: start=0, step=1, limit=6
  $region2: #{forward.95} parent=0 // loop_pre_header
    _
  $region3: #{forward.95} parent=0 // loop_header
    %s9 = sphi 0, %s13
    %p10 = scmp.ge.s32.totalorder %s9, 6
    %s19 = sphi 0, %s21
    %s22 = sphi 0, %s19
    %s23 = sphi 0, %s22
    %s39 = sphi 0, %s23
    %s45 = sphi 0, %s47
    %s48 = sphi 0, %s45
    %s49 = sphi 0, %s48
    %s65 = sphi 0, %s49
    %s71 = sphi 0, %s73
    %s74 = sphi 0, %s71
    %s75 = sphi 0, %s74
    %s91 = sphi 0, %s75
    %s97 = sphi 0, %s99
    %s100 = sphi 0, %s97
    %s101 = sphi 0, %s100
    %s117 = sphi 0, %s101
  $region4: #{forward.95} parent=0 // loop_header_branch
    %12 = sbr.rel (%p10) target = $region8
  $region5: #{forward.95} parent=0 // loop_body
    %s14 = ssub.s32 %s9, 1
    %s15 = ssub.s32 %s9, 2
    %s16 = sadd.s32 %s9, 1
    %s17 = ssub.s32 %s9, %s16
    %p18 = scmp.eq.s32.totalorder %s17, 0
    %s20 = sadd.s32 %s19, 1
    %s21 = scalar_select %p18, %s19, %s20
    %p24 = pneg %p18
    %p25 = scmp.eq.s32.totalorder %s9, 3
    %p26 = por %p24, %p25
    %p27 = scmp.ne.s32.totalorder %s19, %s22
    %p28 = scmp.eq.s32.totalorder %s9, 0
    %p29 = por %p27, %p28
    %p30 = scmp.ne.s32.totalorder %s19, %s22
    %p31 = scmp.eq.s32.totalorder %s14, 3
    %p32 = por %p30, %p31
    %p33 = scmp.ne.s32.totalorder %s22, %s23
    %p34 = scmp.eq.s32.totalorder %s14, 0
    %p35 = por %p33, %p34
    %p36 = scmp.ne.s32.totalorder %s22, %s23
    %p37 = scmp.eq.s32.totalorder %s15, 3
    %p38 = por %p36, %p37
    %p40 = scmp.ne.s32.totalorder %s23, %s39
    %p41 = scmp.eq.s32.totalorder %s15, 0
    %p42 = por %p40, %p41
    %s43 = ssub.s32 %s9, %s16
    %p44 = scmp.eq.s32.totalorder %s43, 0
    %s46 = sadd.s32 %s45, 1
    %s47 = scalar_select %p44, %s45, %s46
    %p50 = pneg %p44
    %p51 = scmp.eq.s32.totalorder %s9, 3
    %p52 = por %p50, %p51
    %p53 = scmp.ne.s32.totalorder %s45, %s48
    %p54 = scmp.eq.s32.totalorder %s9, 0
    %p55 = por %p53, %p54
    %p56 = scmp.ne.s32.totalorder %s45, %s48
    %p57 = scmp.eq.s32.totalorder %s14, 3
    %p58 = por %p56, %p57
    %p59 = scmp.ne.s32.totalorder %s48, %s49
    %p60 = scmp.eq.s32.totalorder %s14, 0
    %p61 = por %p59, %p60
    %p62 = scmp.ne.s32.totalorder %s48, %s49
    %p63 = scmp.eq.s32.totalorder %s15, 3
    %p64 = por %p62, %p63
    %p66 = scmp.ne.s32.totalorder %s49, %s65
    %p67 = scmp.eq.s32.totalorder %s15, 0
    %p68 = por %p66, %p67
    %s69 = ssub.s32 %s9, %s16
    %p70 = scmp.eq.s32.totalorder %s69, 0
    %s72 = sadd.s32 %s71, 1
    %s73 = scalar_select %p70, %s71, %s72
    %p76 = pneg %p70
    %p77 = scmp.eq.s32.totalorder %s9, 3
    %p78 = por %p76, %p77
    %p79 = scmp.ne.s32.totalorder %s71, %s74
    %p80 = scmp.eq.s32.totalorder %s9, 0
    %p81 = por %p79, %p80
    %p82 = scmp.ne.s32.totalorder %s71, %s74
    %p83 = scmp.eq.s32.totalorder %s14, 3
    %p84 = por %p82, %p83
    %p85 = scmp.ne.s32.totalorder %s74, %s75
    %p86 = scmp.eq.s32.totalorder %s14, 0
    %p87 = por %p85, %p86
    %p88 = scmp.ne.s32.totalorder %s74, %s75
    %p89 = scmp.eq.s32.totalorder %s15, 3
    %p90 = por %p88, %p89
    %p92 = scmp.ne.s32.totalorder %s75, %s91
    %p93 = scmp.eq.s32.totalorder %s15, 0
    %p94 = por %p92, %p93
    %s95 = ssub.s32 %s9, %s16
    %p96 = scmp.eq.s32.totalorder %s95, 0
    %s98 = sadd.s32 %s97, 1
    %s99 = scalar_select %p96, %s97, %s98
    %p102 = pneg %p96
    %p103 = scmp.eq.s32.totalorder %s9, 3
    %p104 = por %p102, %p103
    %p105 = scmp.ne.s32.totalorder %s97, %s100
    %p106 = scmp.eq.s32.totalorder %s9, 0
    %p107 = por %p105, %p106
    %p108 = scmp.ne.s32.totalorder %s97, %s100
    %p109 = scmp.eq.s32.totalorder %s14, 3
    %p110 = por %p108, %p109
    %p111 = scmp.ne.s32.totalorder %s100, %s101
    %p112 = scmp.eq.s32.totalorder %s14, 0
    %p113 = por %p111, %p112
    %p114 = scmp.ne.s32.totalorder %s100, %s101
    %p115 = scmp.eq.s32.totalorder %s15, 3
    %p116 = por %p114, %p115
    %p118 = scmp.ne.s32.totalorder %s101, %s117
    %p119 = scmp.eq.s32.totalorder %s15, 0
    %p120 = por %p118, %p119
    %p121 = scmp.le.s32.totalorder 1, %s9
    %p122 = scmp.lt.s32.totalorder %s9, 5
    %p123 = pnand %p121, %p122
    %p124 = pneg %p123
    // Predicated region
    $region9: #{forward.95} parent=5 // pred_check
      _
    $region10: #{forward.95} parent=5 // pred_check_branch
      %126 = sbr.rel (%p123) target = $region12
    $region11: #{forward.95} parent=5 // pred_region
      %s127 = ssub.s32 %s9, 1
    $region12: #{forward.95} parent=5 // pred_fallthru
      _
    %p128 = scmp.lt.s32.totalorder %s9, 4
    // Predicated region
    $region13: #{forward.95} parent=5 // pred_check
      %p129 = pneg %p128
    $region14: #{forward.95} parent=5 // pred_check_branch
      %131 = sbr.rel (%p129) target = $region16
    $region15: #{forward.95} parent=5 // pred_region
      // Predicated region
      $region17: #{forward.95} parent=15 // pred_check
        %p132 = pneg %p29
      $region18: #{forward.95} parent=15 // pred_check_branch
        %134 = sbr.rel (%p132) target = $region20
      $region19: #{forward.95} parent=15 // pred_region
        %p135 = scmp.lt.s32.totalorder %s9, 3
        %s136 = scalar_select %p135, %s9, 3
        %s137 = smul.addr %s136, 8
        %s138 = scalar_lea.vmem %s0, %s137
      $region20: #{forward.95} parent=15 // pred_fallthru
        _
      // Predicated region
      $region21: #{forward.95} parent=15 // pred_check
        %p139 = pneg %p55
      $region22: #{forward.95} parent=15 // pred_check_branch
        %141 = sbr.rel (%p139) target = $region24
      $region23: #{forward.95} parent=15 // pred_region
        %p142 = scmp.lt.s32.totalorder %s9, 3
        %s143 = scalar_select %p142, %s9, 3
        %s144 = smul.addr %s143, 8
        %s145 = scalar_lea.vmem %s1, %s144
      $region24: #{forward.95} parent=15 // pred_fallthru
        _
      // Predicated region
      $region25: #{forward.95} parent=15 // pred_check
        %p146 = pneg %p81
      $region26: #{forward.95} parent=15 // pred_check_branch
        %148 = sbr.rel (%p146) target = $region28
      $region27: #{forward.95} parent=15 // pred_region
        %p149 = scmp.lt.s32.totalorder %s9, 3
        %s150 = scalar_select %p149, %s9, 3
        %s151 = smul.addr %s150, 8
        %s152 = scalar_lea.vmem %s2, %s151
      $region28: #{forward.95} parent=15 // pred_fallthru
        _
    $region16: #{forward.95} parent=5 // pred_fallthru
      _
    %p153 = scmp.le.s32.totalorder 1, %s9
    %p154 = scmp.lt.s32.totalorder %s9, 5
    %p155 = pnand %p153, %p154
    %p156 = pneg %p155
    // Predicated region
    $region29: #{forward.95} parent=5 // pred_check
      _
    $region30: #{forward.95} parent=5 // pred_check_branch
      %158 = sbr.rel (%p155) target = $region32
    $region31: #{forward.95} parent=5 // pred_region
      %s159 = ssub.s32 %s9, 1
      %p160 = scmp.lt.s32.totalorder %s14, 3
      %s161 = scalar_select %p160, %s14, 3
      %s162 = smul.addr %s161, 8
      %s163 = scalar_lea.vmem %s0, %s162
      %p164 = pneg %p35
      %p165 = pneg %p32
      %p166 = scmp.lt.s32.totalorder %s14, 3
      %s167 = scalar_select %p166, %s14, 3
      %s168 = smul.addr %s167, 8
      %s169 = scalar_lea.vmem %s1, %s168
      %p170 = pneg %p61
      %p171 = pneg %p58
      %p172 = scmp.lt.s32.totalorder %s14, 3
      %s173 = scalar_select %p172, %s14, 3
      %s174 = smul.addr %s173, 8
      %s175 = scalar_lea.vmem %s2, %s174
      %p176 = pneg %p87
      %p177 = pneg %p84
      %p178 = pneg %p113
      %p179 = pneg %p110
      %p180 = scmp.lt.s32.totalorder %s14, 3
      %s181 = scalar_select %p180, %s14, 3
      %s182 = smul.addr %s181, 8
      %s183 = scalar_lea.vmem %s3, %s182
      %p184 = scmp.lt.s32.totalorder %s14, 3
      %s185 = scalar_select %p184, %s14, 3
      %s186 = smul.addr %s185, 8
      %s187 = scalar_lea.vmem %s0, %s186
      %p188 = scmp.lt.s32.totalorder %s14, 3
      %s189 = scalar_select %p188, %s14, 3
      %s190 = smul.addr %s189, 8
      %s191 = scalar_lea.vmem %s1, %s190
      %p192 = scmp.lt.s32.totalorder %s14, 3
      %s193 = scalar_select %p192, %s14, 3
      %s194 = smul.addr %s193, 8
      %s195 = scalar_lea.vmem %s2, %s194
      %p196 = scmp.lt.s32.totalorder %s14, 3
      %s197 = scalar_select %p196, %s14, 3
      %s198 = smul.addr %s197, 8
      %s199 = scalar_lea.vmem %s3, %s198
      %v200 = vld [vmem:[%s187] sm:$0xff]
      %v201 = vld [vmem:[%s191] sm:$0xff]
      %v202 = vld [vmem:[%s195] sm:$0xff]
      %vm203 = vcmask 130048
      %v205 = vsel %vm203, %v200, 0
      %v208 = vsel %vm203, %v201, 0
      %210 = vmatpush.xpose.msra.mxu0 0.0
      %211 = vmatpush.xpose.msra.mxu0 0.0
      %212 = vmatpush.xpose.msra.mxu0 0.0
      %213 = vmatpush.xpose.msra.mxu0 0.0
      %214 = vmatpush.xpose.msra.mxu0 0.0
      %215 = vmatpush.xpose.msra.mxu0 0.0
      %216 = vmatpush.xpose.msra.mxu0 0.0
      %217 = vmatpush.xpose.msra.mxu0 0.0
      %218 = vmatpush.xpose.msra.mxu0 0.0
      %219 = vmatpush.xpose.msra.mxu0 0.0
      %220 = vmatpush.xpose.msra.mxu0 0.0
      %221 = vmatpush.xpose.msra.mxu0 0.0
      %222 = vmatpush.xpose.msra.mxu0 0.0
      %223 = vmatpush.xpose.msra.mxu0 0.0
      %224 = vmatpush.xpose.msra.mxu0 0.0
      %v225 = vand.u32 %v208, 4294901760
      %226 = vmatpush.xpose.msra.mxu0 %v225
      %v227 = vand.u32 %v205, 4294901760
      %v228 = vsub.f32 %v205, %v227
      %v229 = vand.u32 %v228, 4294901760
      %v230 = vsub.f32 %v228, %v229
      %v231 = vand.u32 %v230, 4294901760
      %232 = vmatmul.f32.gmra.mxu0 %v231
      %v233 = vpop.f32.mrf.mxu0
      %v234 = vadd.f32 0.0, %v233
      %235 = vdwg.mxu0
      %236 = vmatpush.xpose.msra.mxu0 0.0
      %237 = vmatpush.xpose.msra.mxu0 0.0
      %238 = vmatpush.xpose.msra.mxu0 0.0
      %239 = vmatpush.xpose.msra.mxu0 0.0
      %240 = vmatpush.xpose.msra.mxu0 0.0
      %241 = vmatpush.xpose.msra.mxu0 0.0
      %242 = vmatpush.xpose.msra.mxu0 0.0
      %243 = vmatpush.xpose.msra.mxu0 0.0
      %244 = vmatpush.xpose.msra.mxu0 0.0
      %245 = vmatpush.xpose.msra.mxu0 0.0
      %246 = vmatpush.xpose.msra.mxu0 0.0
      %247 = vmatpush.xpose.msra.mxu0 0.0
      %248 = vmatpush.xpose.msra.mxu0 0.0
      %249 = vmatpush.xpose.msra.mxu0 0.0
      %250 = vmatpush.xpose.msra.mxu0 0.0
      %v251 = vand.u32 %v208, 4294901760
      %v252 = vsub.f32 %v208, %v251
      %v253 = vand.u32 %v252, 4294901760
      %v254 = vsub.f32 %v252, %v253
      %v255 = vand.u32 %v254, 4294901760
      %256 = vmatpush.xpose.msra.mxu0 %v255
      %v257 = vand.u32 %v205, 4294901760
      %258 = vmatmul.f32.gmra.mxu0 %v257
      %v259 = vpop.f32.mrf.mxu0
      %v260 = vadd.f32 %v234, %v259
      %261 = vdwg.mxu0
      %262 = vmatpush.xpose.msra.mxu0 0.0
      %263 = vmatpush.xpose.msra.mxu0 0.0
      %264 = vmatpush.xpose.msra.mxu0 0.0
      %265 = vmatpush.xpose.msra.mxu0 0.0
      %266 = vmatpush.xpose.msra.mxu0 0.0
      %267 = vmatpush.xpose.msra.mxu0 0.0
      %268 = vmatpush.xpose.msra.mxu0 0.0
      %269 = vmatpush.xpose.msra.mxu0 0.0
      %270 = vmatpush.xpose.msra.mxu0 0.0
      %271 = vmatpush.xpose.msra.mxu0 0.0
      %272 = vmatpush.xpose.msra.mxu0 0.0
      %273 = vmatpush.xpose.msra.mxu0 0.0
      %274 = vmatpush.xpose.msra.mxu0 0.0
      %275 = vmatpush.xpose.msra.mxu0 0.0
      %276 = vmatpush.xpose.msra.mxu0 0.0
      %v277 = vand.u32 %v208, 4294901760
      %v278 = vsub.f32 %v208, %v277
      %279 = vmatpush.xpose.msra.mxu0 %v278
      %v280 = vand.u32 %v205, 4294901760
      %v281 = vsub.f32 %v205, %v280
      %282 = vmatmul.f32.gmra.mxu0 %v281
      %v283 = vpop.f32.mrf.mxu0
      %v284 = vadd.f32 %v260, %v283
      %285 = vdwg.mxu0
      %286 = vmatpush.xpose.msra.mxu0 0.0
      %287 = vmatpush.xpose.msra.mxu0 0.0
      %288 = vmatpush.xpose.msra.mxu0 0.0
      %289 = vmatpush.xpose.msra.mxu0 0.0
      %290 = vmatpush.xpose.msra.mxu0 0.0
      %291 = vmatpush.xpose.msra.mxu0 0.0
      %292 = vmatpush.xpose.msra.mxu0 0.0
      %293 = vmatpush.xpose.msra.mxu0 0.0
      %294 = vmatpush.xpose.msra.mxu0 0.0
      %295 = vmatpush.xpose.msra.mxu0 0.0
      %296 = vmatpush.xpose.msra.mxu0 0.0
      %297 = vmatpush.xpose.msra.mxu0 0.0
      %298 = vmatpush.xpose.msra.mxu0 0.0
      %299 = vmatpush.xpose.msra.mxu0 0.0
      %300 = vmatpush.xpose.msra.mxu0 0.0
      %v301 = vand.u32 %v208, 4294901760
      %302 = vmatpush.xpose.msra.mxu0 %v301
      %v303 = vand.u32 %v205, 4294901760
      %v304 = vsub.f32 %v205, %v303
      %v305 = vand.u32 %v304, 4294901760
      %306 = vmatmul.f32.gmra.mxu0 %v305
      %v307 = vpop.f32.mrf.mxu0
      %v308 = vadd.f32 %v284, %v307
      %309 = vdwg.mxu0
      %310 = vmatpush.xpose.msra.mxu0 0.0
      %311 = vmatpush.xpose.msra.mxu0 0.0
      %312 = vmatpush.xpose.msra.mxu0 0.0
      %313 = vmatpush.xpose.msra.mxu0 0.0
      %314 = vmatpush.xpose.msra.mxu0 0.0
      %315 = vmatpush.xpose.msra.mxu0 0.0
      %316 = vmatpush.xpose.msra.mxu0 0.0
      %317 = vmatpush.xpose.msra.mxu0 0.0
      %318 = vmatpush.xpose.msra.mxu0 0.0
      %319 = vmatpush.xpose.msra.mxu0 0.0
      %320 = vmatpush.xpose.msra.mxu0 0.0
      %321 = vmatpush.xpose.msra.mxu0 0.0
      %322 = vmatpush.xpose.msra.mxu0 0.0
      %323 = vmatpush.xpose.msra.mxu0 0.0
      %324 = vmatpush.xpose.msra.mxu0 0.0
      %v325 = vand.u32 %v208, 4294901760
      %v326 = vsub.f32 %v208, %v325
      %v327 = vand.u32 %v326, 4294901760
      %328 = vmatpush.xpose.msra.mxu0 %v327
      %v329 = vand.u32 %v205, 4294901760
      %330 = vmatmul.f32.gmra.mxu0 %v329
      %v331 = vpop.f32.mrf.mxu0
      %v332 = vadd.f32 %v308, %v331
      %333 = vdwg.mxu0
      %334 = vmatpush.xpose.msra.mxu0 0.0
      %335 = vmatpush.xpose.msra.mxu0 0.0
      %336 = vmatpush.xpose.msra.mxu0 0.0
      %337 = vmatpush.xpose.msra.mxu0 0.0
      %338 = vmatpush.xpose.msra.mxu0 0.0
      %339 = vmatpush.xpose.msra.mxu0 0.0
      %340 = vmatpush.xpose.msra.mxu0 0.0
      %341 = vmatpush.xpose.msra.mxu0 0.0
      %342 = vmatpush.xpose.msra.mxu0 0.0
      %343 = vmatpush.xpose.msra.mxu0 0.0
      %344 = vmatpush.xpose.msra.mxu0 0.0
      %345 = vmatpush.xpose.msra.mxu0 0.0
      %346 = vmatpush.xpose.msra.mxu0 0.0
      %347 = vmatpush.xpose.msra.mxu0 0.0
      %348 = vmatpush.xpose.msra.mxu0 0.0
      %v349 = vand.u32 %v208, 4294901760
      %350 = vmatpush.xpose.msra.mxu0 %v349
      %v351 = vand.u32 %v205, 4294901760
      %352 = vmatmul.f32.gmra.mxu0 %v351
      %v353 = vpop.f32.mrf.mxu0
      %v354 = vadd.f32 %v332, %v353
      %355 = vdwg.mxu0
      %v356 = vmul.f32 %v354, 0.25
      %v357 = vlaneseq
      %v358 = vshrl.u32 %v357, 7
      %v359 = vlaneseq
      %v360 = vand.u32 %v359, 127
      %vm361 = vcmp.le.s32.totalorder %v360, %v358
      %v362 = vsel %vm361, %v356, -1e+30
      %vm363 = vcmask 64512
      %v364 = vsel %vm363, %v362, -inf
      %365 = vmax.xlane.f32.xlu0 %v364
      %v366 = vpop.xlane.xlu0 %365
      %v367 = vsub.f32 %v362, %v366
      %v368 = vmul.f32 %v367, 1.442695
      %v369 = vpow.pop %v368
      %v370 = vsel %vm363, %v369, 0.0
      %371 = vadd.xlane.f32.xlu0 %v370
      %v372 = vpop.xlane.xlu0 %371
      %v374 = vsel %vm363, %v369, 0
      %376 = vmatpush.msra.mxu0 0.0
      %377 = vmatpush.msra.mxu0 0.0
      %378 = vmatpush.msra.mxu0 0.0
      %379 = vmatpush.msra.mxu0 0.0
      %380 = vmatpush.msra.mxu0 0.0
      %381 = vmatpush.msra.mxu0 0.0
      %382 = vmatpush.msra.mxu0 0.0
      %383 = vmatpush.msra.mxu0 0.0
      %384 = vmatpush.msra.mxu0 0.0
      %385 = vmatpush.msra.mxu0 0.0
      %386 = vmatpush.msra.mxu0 0.0
      %387 = vmatpush.msra.mxu0 0.0
      %388 = vmatpush.msra.mxu0 0.0
      %389 = vmatpush.msra.mxu0 0.0
      %390 = vmatpush.msra.mxu0 0.0
      %v391 = vand.u32 %v202, 4294901760
      %392 = vmatpush.msra.mxu0 %v391
      %v393 = vand.u32 %v374, 4294901760
      %v394 = vsub.f32 %v374, %v393
      %v395 = vand.u32 %v394, 4294901760
      %v396 = vsub.f32 %v394, %v395
      %v397 = vand.u32 %v396, 4294901760
      %398 = vmatmul.f32.gmra.mxu0 %v397
      %v399 = vpop.f32.mrf.mxu0
      %v400 = vadd.f32 0.0, %v399
      %401 = vdwg.mxu0
      %402 = vmatpush.msra.mxu0 0.0
      %403 = vmatpush.msra.mxu0 0.0
      %404 = vmatpush.msra.mxu0 0.0
      %405 = vmatpush.msra.mxu0 0.0
      %406 = vmatpush.msra.mxu0 0.0
      %407 = vmatpush.msra.mxu0 0.0
      %408 = vmatpush.msra.mxu0 0.0
      %409 = vmatpush.msra.mxu0 0.0
      %410 = vmatpush.msra.mxu0 0.0
      %411 = vmatpush.msra.mxu0 0.0
      %412 = vmatpush.msra.mxu0 0.0
      %413 = vmatpush.msra.mxu0 0.0
      %414 = vmatpush.msra.mxu0 0.0
      %415 = vmatpush.msra.mxu0 0.0
      %416 = vmatpush.msra.mxu0 0.0
      %v417 = vand.u32 %v202, 4294901760
      %v418 = vsub.f32 %v202, %v417
      %v419 = vand.u32 %v418, 4294901760
      %v420 = vsub.f32 %v418, %v419
      %v421 = vand.u32 %v420, 4294901760
      %422 = vmatpush.msra.mxu0 %v421
      %v423 = vand.u32 %v374, 4294901760
      %424 = vmatmul.f32.gmra.mxu0 %v423
      %v425 = vpop.f32.mrf.mxu0
      %v426 = vadd.f32 %v400, %v425
      %427 = vdwg.mxu0
      %428 = vmatpush.msra.mxu0 0.0
      %429 = vmatpush.msra.mxu0 0.0
      %430 = vmatpush.msra.mxu0 0.0
      %431 = vmatpush.msra.mxu0 0.0
      %432 = vmatpush.msra.mxu0 0.0
      %433 = vmatpush.msra.mxu0 0.0
      %434 = vmatpush.msra.mxu0 0.0
      %435 = vmatpush.msra.mxu0 0.0
      %436 = vmatpush.msra.mxu0 0.0
      %437 = vmatpush.msra.mxu0 0.0
      %438 = vmatpush.msra.mxu0 0.0
      %439 = vmatpush.msra.mxu0 0.0
      %440 = vmatpush.msra.mxu0 0.0
      %441 = vmatpush.msra.mxu0 0.0
      %442 = vmatpush.msra.mxu0 0.0
      %v443 = vand.u32 %v202, 4294901760
      %v444 = vsub.f32 %v202, %v443
      %445 = vmatpush.msra.mxu0 %v444
      %v446 = vand.u32 %v374, 4294901760
      %v447 = vsub.f32 %v374, %v446
      %448 = vmatmul.f32.gmra.mxu0 %v447
      %v449 = vpop.f32.mrf.mxu0
      %v450 = vadd.f32 %v426, %v449
      %451 = vdwg.mxu0
      %452 = vmatpush.msra.mxu0 0.0
      %453 = vmatpush.msra.mxu0 0.0
      %454 = vmatpush.msra.mxu0 0.0
      %455 = vmatpush.msra.mxu0 0.0
      %456 = vmatpush.msra.mxu0 0.0
      %457 = vmatpush.msra.mxu0 0.0
      %458 = vmatpush.msra.mxu0 0.0
      %459 = vmatpush.msra.mxu0 0.0
      %460 = vmatpush.msra.mxu0 0.0
      %461 = vmatpush.msra.mxu0 0.0
      %462 = vmatpush.msra.mxu0 0.0
      %463 = vmatpush.msra.mxu0 0.0
      %464 = vmatpush.msra.mxu0 0.0
      %465 = vmatpush.msra.mxu0 0.0
      %466 = vmatpush.msra.mxu0 0.0
      %v467 = vand.u32 %v202, 4294901760
      %468 = vmatpush.msra.mxu0 %v467
      %v469 = vand.u32 %v374, 4294901760
      %v470 = vsub.f32 %v374, %v469
      %v471 = vand.u32 %v470, 4294901760
      %472 = vmatmul.f32.gmra.mxu0 %v471
      %v473 = vpop.f32.mrf.mxu0
      %v474 = vadd.f32 %v450, %v473
      %475 = vdwg.mxu0
      %476 = vmatpush.msra.mxu0 0.0
      %477 = vmatpush.msra.mxu0 0.0
      %478 = vmatpush.msra.mxu0 0.0
      %479 = vmatpush.msra.mxu0 0.0
      %480 = vmatpush.msra.mxu0 0.0
      %481 = vmatpush.msra.mxu0 0.0
      %482 = vmatpush.msra.mxu0 0.0
      %483 = vmatpush.msra.mxu0 0.0
      %484 = vmatpush.msra.mxu0 0.0
      %485 = vmatpush.msra.mxu0 0.0
      %486 = vmatpush.msra.mxu0 0.0
      %487 = vmatpush.msra.mxu0 0.0
      %488 = vmatpush.msra.mxu0 0.0
      %489 = vmatpush.msra.mxu0 0.0
      %490 = vmatpush.msra.mxu0 0.0
      %v491 = vand.u32 %v202, 4294901760
      %v492 = vsub.f32 %v202, %v491
      %v493 = vand.u32 %v492, 4294901760
      %494 = vmatpush.msra.mxu0 %v493
      %v495 = vand.u32 %v374, 4294901760
      %496 = vmatmul.f32.gmra.mxu0 %v495
      %v497 = vpop.f32.mrf.mxu0
      %v498 = vadd.f32 %v474, %v497
      %499 = vdwg.mxu0
      %500 = vmatpush.msra.mxu0 0.0
      %501 = vmatpush.msra.mxu0 0.0
      %502 = vmatpush.msra.mxu0 0.0
      %503 = vmatpush.msra.mxu0 0.0
      %504 = vmatpush.msra.mxu0 0.0
      %505 = vmatpush.msra.mxu0 0.0
      %506 = vmatpush.msra.mxu0 0.0
      %507 = vmatpush.msra.mxu0 0.0
      %508 = vmatpush.msra.mxu0 0.0
      %509 = vmatpush.msra.mxu0 0.0
      %510 = vmatpush.msra.mxu0 0.0
      %511 = vmatpush.msra.mxu0 0.0
      %512 = vmatpush.msra.mxu0 0.0
      %513 = vmatpush.msra.mxu0 0.0
      %514 = vmatpush.msra.mxu0 0.0
      %v515 = vand.u32 %v202, 4294901760
      %516 = vmatpush.msra.mxu0 %v515
      %v517 = vand.u32 %v374, 4294901760
      %518 = vmatmul.f32.gmra.mxu0 %v517
      %v519 = vpop.f32.mrf.mxu0
      %v520 = vadd.f32 %v498, %v519
      %521 = vdwg.mxu0
      %v522 = vrcp.pop %v372
      %v523 = vmul.f32 %v372, %v522
      %v524 = vsub.f32 1.0, %v523
      %v525 = vmul.f32 %v522, %v524
      %v526 = vadd.f32 %v522, %v525
      %vm527 = vweird.f32 %v372
      %vm528 = vweird.f32 %v522
      %vm529 = vmor %vm527, %vm528
      %v530 = vsel %vm529, %v522, %v526
      %v531 = vand.u32 2147483647, %v372
      %vm532 = vcmp.eq.f32.partialorder %v531, 8.507059e+37
      %v533 = vand.u32 %v372, 2147483648
      %v534 = vor.u32 1.1754944e-38, %v533
      %v535 = vsel %vm532, %v534, %v530
      %v536 = vmul.f32 %v520, %v535
      %537 = vst.msk [vmem:[%s199] sm:$0xff] %vm203, %v536
      %p538 = scmp.lt.s32.totalorder %s14, 3
      %s539 = scalar_select %p538, %s14, 3
      %s540 = smul.addr %s539, 8
      %s541 = scalar_lea.vmem %s3, %s540
      // Predicated region
      $region33: #{forward.95} parent=31 // pred_check
        %p542 = pneg %p110
      $region34: #{forward.95} parent=31 // pred_check_branch
        %544 = sbr.rel (%p542) target = $region36
      $region35: #{forward.95} parent=31 // pred_region
        _
      $region36: #{forward.95} parent=31 // pred_fallthru
        _
    $region32: #{forward.95} parent=5 // pred_fallthru
      _
    %p545 = scmp.le.s32.totalorder 2, %s9
    // Predicated region
    $region37: #{forward.95} parent=5 // pred_check
      %p546 = pneg %p545
    $region38: #{forward.95} parent=5 // pred_check_branch
      %548 = sbr.rel (%p546) target = $region40
    $region39: #{forward.95} parent=5 // pred_region
      %s549 = ssub.s32 %s9, 2
      // Predicated region
      $region41: #{forward.95} parent=39 // pred_check
        %p550 = pneg %p116
      $region42: #{forward.95} parent=39 // pred_check_branch
        %552 = sbr.rel (%p550) target = $region44
      $region43: #{forward.95} parent=39 // pred_region
        %p553 = scmp.lt.s32.totalorder %s15, 3
        %s554 = scalar_select %p553, %s15, 3
        %s555 = smul.addr %s554, 8
        %s556 = scalar_lea.vmem %s3, %s555
      $region44: #{forward.95} parent=39 // pred_fallthru
        _
    $region40: #{forward.95} parent=5 // pred_fallthru
      _
  $region6: #{forward.95} parent=0 // loop_footer
    %s13 = sadd.s32 1, %s9
  $region7: #{forward.95} parent=0 // loop_footer_branch
    %8 = sbr.rel target = $region3
  $region8: #{forward.95} parent=0 // loop_exit
    _

// kernel: forward.79
$region0: #{forward.79}
  #allocation0 [shape = 'u32[]', space=smem, size = 0x4, offset = 0x4, fixed_abs, tag = 'smem constant byte address 0x4 - core index']
  #allocation1 [shape = 'u32[72,128]{1,0:T(1,128)}', space=vmem, size = 0x9000, scoped, tag = 'internal scratch']
  %s0 = inlined_call_operand.vmem [shape: f32[16,32], index: 0, kind: input, shape index: {}]
  %s1 = inlined_call_operand.vmem [shape: f32[32,64], index: 1, kind: input, shape index: {}]
  %s2 = inlined_call_operand.vmem [shape: f32[1,64], index: 2, kind: input, shape index: {}]
  %s3 = inlined_call_operand.vmem [shape: f32[16,64], index: 3, kind: output, shape index: {}]
  %s4 = sld [smem:[#allocation0]]
  $region22: #{forward.79} parent=0
    _
  %s6 = ssub.s32 1, %s4
  %s7 = scalar_select 0, %s6, %s4
  // Predicated region
  $region2: #{forward.79} parent=0 // pred_check
    _
  $region3: #{forward.79} parent=0 // pred_check_branch
    %9 = sbr.rel (0) target = $region5
  $region4: #{forward.79} parent=0 // pred_region
    _
  $region5: #{forward.79} parent=0 // pred_fallthru
    _
  // Predicated region
  $region6: #{forward.79} parent=0 // pred_check
    _
  $region7: #{forward.79} parent=0 // pred_check_branch
    %11 = sbr.rel (0) target = $region9
  $region8: #{forward.79} parent=0 // pred_region
    _
  $region9: #{forward.79} parent=0 // pred_fallthru
    _
  // Predicated region
  $region10: #{forward.79} parent=0 // pred_check
    _
  $region11: #{forward.79} parent=0 // pred_check_branch
    %13 = sbr.rel (0) target = $region13
  $region12: #{forward.79} parent=0 // pred_region
    _
  $region13: #{forward.79} parent=0 // pred_fallthru
    _
  %v14 = vld [vmem:[%s0] sm:$0xff]
  %v15 = vld [vmem:[%s0 + $0x8] sm:$0xff]
  %v16 = vld [vmem:[%s1] sm:$0xff]
  %v17 = vld [vmem:[%s1 + $0x8] sm:$0xff]
  %v18 = vld [vmem:[%s1 + $0x10] sm:$0xff]
  %v19 = vld [vmem:[%s1 + $0x18] sm:$0xff]
  %v20 = vld [vmem:[%s2] sm:$0x1]
  %v22 = vperm.slane %v20, 0
  %vm24 = vcmask 261120
  %v26 = vsel %vm24, %v14, 0
  %v29 = vsel %vm24, %v15, 0
  %31 = vmatpush.msra.mxu0 0.0
  %32 = vmatpush.msra.mxu0 0.0
  %33 = vmatpush.msra.mxu0 0.0
  %34 = vmatpush.msra.mxu0 0.0
  %35 = vmatpush.msra.mxu0 0.0
  %36 = vmatpush.msra.mxu0 0.0
  %37 = vmatpush.msra.mxu0 0.0
  %38 = vmatpush.msra.mxu0 0.0
  %39 = vmatpush.msra.mxu0 0.0
  %40 = vmatpush.msra.mxu0 0.0
  %41 = vmatpush.msra.mxu0 0.0
  %42 = vmatpush.msra.mxu0 0.0
  %v43 = vand.u32 %v19, 4294901760
  %44 = vmatpush.msra.mxu0 %v43
  %v45 = vand.u32 %v18, 4294901760
  %46 = vmatpush.msra.mxu0 %v45
  %v47 = vand.u32 %v17, 4294901760
  %48 = vmatpush.msra.mxu0 %v47
  %v49 = vand.u32 %v16, 4294901760
  %50 = vmatpush.msra.mxu0 %v49
  %v51 = vand.u32 %v26, 4294901760
  %v52 = vsub.f32 %v26, %v51
  %v53 = vand.u32 %v52, 4294901760
  %v54 = vsub.f32 %v52, %v53
  %v55 = vand.u32 %v54, 4294901760
  %56 = vmatmul.f32.gmra.mxu0 %v55
  %v57 = vpop.f32.mrf.mxu0
  %v58 = vadd.f32 %v22, %v57
  %v59 = vand.u32 %v29, 4294901760
  %v60 = vsub.f32 %v29, %v59
  %v61 = vand.u32 %v60, 4294901760
  %v62 = vsub.f32 %v60, %v61
  %v63 = vand.u32 %v62, 4294901760
  %64 = vmatmul.f32.gmra.mxu0 %v63
  %v65 = vpop.f32.mrf.mxu0
  %v66 = vadd.f32 %v22, %v65
  %67 = vdwg.mxu0
  %68 = vmatpush.msra.mxu0 0.0
  %69 = vmatpush.msra.mxu0 0.0
  %70 = vmatpush.msra.mxu0 0.0
  %71 = vmatpush.msra.mxu0 0.0
  %72 = vmatpush.msra.mxu0 0.0
  %73 = vmatpush.msra.mxu0 0.0
  %74 = vmatpush.msra.mxu0 0.0
  %75 = vmatpush.msra.mxu0 0.0
  %76 = vmatpush.msra.mxu0 0.0
  %77 = vmatpush.msra.mxu0 0.0
  %78 = vmatpush.msra.mxu0 0.0
  %79 = vmatpush.msra.mxu0 0.0
  %v80 = vand.u32 %v19, 4294901760
  %v81 = vsub.f32 %v19, %v80
  %v82 = vand.u32 %v81, 4294901760
  %v83 = vsub.f32 %v81, %v82
  %v84 = vand.u32 %v83, 4294901760
  %85 = vmatpush.msra.mxu0 %v84
  %v86 = vand.u32 %v18, 4294901760
  %v87 = vsub.f32 %v18, %v86
  %v88 = vand.u32 %v87, 4294901760
  %v89 = vsub.f32 %v87, %v88
  %v90 = vand.u32 %v89, 4294901760
  %91 = vmatpush.msra.mxu0 %v90
  %v92 = vand.u32 %v17, 4294901760
  %v93 = vsub.f32 %v17, %v92
  %v94 = vand.u32 %v93, 4294901760
  %v95 = vsub.f32 %v93, %v94
  %v96 = vand.u32 %v95, 4294901760
  %97 = vmatpush.msra.mxu0 %v96
  %v98 = vand.u32 %v16, 4294901760
  %v99 = vsub.f32 %v16, %v98
  %v100 = vand.u32 %v99, 4294901760
  %v101 = vsub.f32 %v99, %v100
  %v102 = vand.u32 %v101, 4294901760
  %103 = vmatpush.msra.mxu0 %v102
  %v104 = vand.u32 %v26, 4294901760
  %105 = vmatmul.f32.gmra.mxu0 %v104
  %v106 = vpop.f32.mrf.mxu0
  %v107 = vadd.f32 %v58, %v106
  %v108 = vand.u32 %v29, 4294901760
  %109 = vmatmul.f32.gmra.mxu0 %v108
  %v110 = vpop.f32.mrf.mxu0
  %v111 = vadd.f32 %v66, %v110
  %112 = vdwg.mxu0
  %113 = vmatpush.msra.mxu0 0.0
  %114 = vmatpush.msra.mxu0 0.0
  %115 = vmatpush.msra.mxu0 0.0
  %116 = vmatpush.msra.mxu0 0.0
  %117 = vmatpush.msra.mxu0 0.0
  %118 = vmatpush.msra.mxu0 0.0
  %119 = vmatpush.msra.mxu0 0.0
  %120 = vmatpush.msra.mxu0 0.0
  %121 = vmatpush.msra.mxu0 0.0
  %122 = vmatpush.msra.mxu0 0.0
  %123 = vmatpush.msra.mxu0 0.0
  %124 = vmatpush.msra.mxu0 0.0
  %v125 = vand.u32 %v19, 4294901760
  %v126 = vsub.f32 %v19, %v125
  %127 = vmatpush.msra.mxu0 %v126
  %v128 = vand.u32 %v18, 4294901760
  %v129 = vsub.f32 %v18, %v128
  %130 = vmatpush.msra.mxu0 %v129
  %v131 = vand.u32 %v17, 4294901760
  %v132 = vsub.f32 %v17, %v131
  %133 = vmatpush.msra.mxu0 %v132
  %v134 = vand.u32 %v16, 4294901760
  %v135 = vsub.f32 %v16, %v134
  %136 = vmatpush.msra.mxu0 %v135
  %v137 = vand.u32 %v26, 4294901760
  %v138 = vsub.f32 %v26, %v137
  %139 = vmatmul.f32.gmra.mxu0 %v138
  %v140 = vpop.f32.mrf.mxu0
  %v141 = vadd.f32 %v107, %v140
  %v142 = vand.u32 %v29, 4294901760
  %v143 = vsub.f32 %v29, %v142
  %144 = vmatmul.f32.gmra.mxu0 %v143
  %v145 = vpop.f32.mrf.mxu0
  %v146 = vadd.f32 %v111, %v145
  %147 = vdwg.mxu0
  %148 = vmatpush.msra.mxu0 0.0
  %149 = vmatpush.msra.mxu0 0.0
  %150 = vmatpush.msra.mxu0 0.0
  %151 = vmatpush.msra.mxu0 0.0
  %152 = vmatpush.msra.mxu0 0.0
  %153 = vmatpush.msra.mxu0 0.0
  %154 = vmatpush.msra.mxu0 0.0
  %155 = vmatpush.msra.mxu0 0.0
  %156 = vmatpush.msra.mxu0 0.0
  %157 = vmatpush.msra.mxu0 0.0
  %158 = vmatpush.msra.mxu0 0.0
  %159 = vmatpush.msra.mxu0 0.0
  %v160 = vand.u32 %v19, 4294901760
  %161 = vmatpush.msra.mxu0 %v160
  %v162 = vand.u32 %v18, 4294901760
  %163 = vmatpush.msra.mxu0 %v162
  %v164 = vand.u32 %v17, 4294901760
  %165 = vmatpush.msra.mxu0 %v164
  %v166 = vand.u32 %v16, 4294901760
  %167 = vmatpush.msra.mxu0 %v166
  %v168 = vand.u32 %v26, 4294901760
  %v169 = vsub.f32 %v26, %v168
  %v170 = vand.u32 %v169, 4294901760
  %171 = vmatmul.f32.gmra.mxu0 %v170
  %v172 = vpop.f32.mrf.mxu0
  %v173 = vadd.f32 %v141, %v172
  %v174 = vand.u32 %v29, 4294901760
  %v175 = vsub.f32 %v29, %v174
  %v176 = vand.u32 %v175, 4294901760
  %177 = vmatmul.f32.gmra.mxu0 %v176
  %v178 = vpop.f32.mrf.mxu0
  %v179 = vadd.f32 %v146, %v178
  %180 = vdwg.mxu0
  %181 = vmatpush.msra.mxu0 0.0
  %182 = vmatpush.msra.mxu0 0.0
  %183 = vmatpush.msra.mxu0 0.0
  %184 = vmatpush.msra.mxu0 0.0
  %185 = vmatpush.msra.mxu0 0.0
  %186 = vmatpush.msra.mxu0 0.0
  %187 = vmatpush.msra.mxu0 0.0
  %188 = vmatpush.msra.mxu0 0.0
  %189 = vmatpush.msra.mxu0 0.0
  %190 = vmatpush.msra.mxu0 0.0
  %191 = vmatpush.msra.mxu0 0.0
  %192 = vmatpush.msra.mxu0 0.0
  %v193 = vand.u32 %v19, 4294901760
  %v194 = vsub.f32 %v19, %v193
  %v195 = vand.u32 %v194, 4294901760
  %196 = vmatpush.msra.mxu0 %v195
  %v197 = vand.u32 %v18, 4294901760
  %v198 = vsub.f32 %v18, %v197
  %v199 = vand.u32 %v198, 4294901760
  %200 = vmatpush.msra.mxu0 %v199
  %v201 = vand.u32 %v17, 4294901760
  %v202 = vsub.f32 %v17, %v201
  %v203 = vand.u32 %v202, 4294901760
  %204 = vmatpush.msra.mxu0 %v203
  %v205 = vand.u32 %v16, 4294901760
  %v206 = vsub.f32 %v16, %v205
  %v207 = vand.u32 %v206, 4294901760
  %208 = vmatpush.msra.mxu0 %v207
  %v209 = vand.u32 %v26, 4294901760
  %210 = vmatmul.f32.gmra.mxu0 %v209
  %v211 = vpop.f32.mrf.mxu0
  %v212 = vadd.f32 %v173, %v211
  %v213 = vand.u32 %v29, 4294901760
  %214 = vmatmul.f32.gmra.mxu0 %v213
  %v215 = vpop.f32.mrf.mxu0
  %v216 = vadd.f32 %v179, %v215
  %217 = vdwg.mxu0
  %218 = vmatpush.msra.mxu0 0.0
  %219 = vmatpush.msra.mxu0 0.0
  %220 = vmatpush.msra.mxu0 0.0
  %221 = vmatpush.msra.mxu0 0.0
  %222 = vmatpush.msra.mxu0 0.0
  %223 = vmatpush.msra.mxu0 0.0
  %224 = vmatpush.msra.mxu0 0.0
  %225 = vmatpush.msra.mxu0 0.0
  %226 = vmatpush.msra.mxu0 0.0
  %227 = vmatpush.msra.mxu0 0.0
  %228 = vmatpush.msra.mxu0 0.0
  %229 = vmatpush.msra.mxu0 0.0
  %v230 = vand.u32 %v19, 4294901760
  %231 = vmatpush.msra.mxu0 %v230
  %v232 = vand.u32 %v18, 4294901760
  %233 = vmatpush.msra.mxu0 %v232
  %v234 = vand.u32 %v17, 4294901760
  %235 = vmatpush.msra.mxu0 %v234
  %v236 = vand.u32 %v16, 4294901760
  %237 = vmatpush.msra.mxu0 %v236
  %v238 = vand.u32 %v26, 4294901760
  %239 = vmatmul.f32.gmra.mxu0 %v238
  %v240 = vpop.f32.mrf.mxu0
  %v241 = vadd.f32 %v212, %v240
  %v242 = vand.u32 %v29, 4294901760
  %243 = vmatmul.f32.gmra.mxu0 %v242
  %v244 = vpop.f32.mrf.mxu0
  %v245 = vadd.f32 %v216, %v244
  %246 = vdwg.mxu0
  %v247 = vmax.f32 %v241, 0.0
  %v248 = vmax.f32 %v245, 0.0
  %vm249 = vcmask 523264
  %250 = vst.msk [vmem:[%s3] sm:$0xff] %vm249, %v247
  %251 = vst.msk [vmem:[%s3 + $0x8] sm:$0xff] %vm249, %v248
  // Predicated region
  $region14: #{forward.79} parent=0 // pred_check
    _
  $region15: #{forward.79} parent=0 // pred_check_branch
    %253 = sbr.rel (0) target = $region17
  $region16: #{forward.79} parent=0 // pred_region
    _
  $region17: #{forward.79} parent=0 // pred_fallthru
    _
  // Predicated region
  $region18: #{forward.79} parent=0 // pred_check
    _
  $region19: #{forward.79} parent=0 // pred_check_branch
    %255 = sbr.rel (0) target = $region21
  $region20: #{forward.79} parent=0 // pred_region
    _
  $region21: #{forward.79} parent=0 // pred_fallthru
    _

// kernel: forward.63
$region0: #{forward.63}
  #allocation0 [shape = 'u32[]', space=smem, size = 0x4, offset = 0x4, fixed_abs, tag = 'smem constant byte address 0x4 - core index']
  #allocation1 [shape = 'u32[72,128]{1,0:T(1,128)}', space=vmem, size = 0x9000, scoped, tag = 'internal scratch']
  %s0 = inlined_call_operand.vmem [shape: f32[16,8], index: 0, kind: input, shape index: {}]
  %s1 = inlined_call_operand.vmem [shape: f32[8,8], index: 1, kind: input, shape index: {}]
  %s2 = inlined_call_operand.vmem [shape: f32[1,8], index: 2, kind: input, shape index: {}]
  %s3 = inlined_call_operand.vmem [shape: f32[16,8], index: 3, kind: output, shape index: {}]
  %s4 = sld [smem:[#allocation0]]
  $region22: #{forward.63} parent=0
    _
  %s6 = ssub.s32 1, %s4
  %s7 = scalar_select 0, %s6, %s4
  // Predicated region
  $region2: #{forward.63} parent=0 // pred_check
    _
  $region3: #{forward.63} parent=0 // pred_check_branch
    %9 = sbr.rel (0) target = $region5
  $region4: #{forward.63} parent=0 // pred_region
    _
  $region5: #{forward.63} parent=0 // pred_fallthru
    _
  // Predicated region
  $region6: #{forward.63} parent=0 // pred_check
    _
  $region7: #{forward.63} parent=0 // pred_check_branch
    %11 = sbr.rel (0) target = $region9
  $region8: #{forward.63} parent=0 // pred_region
    _
  $region9: #{forward.63} parent=0 // pred_fallthru
    _
  // Predicated region
  $region10: #{forward.63} parent=0 // pred_check
    _
  $region11: #{forward.63} parent=0 // pred_check_branch
    %13 = sbr.rel (0) target = $region13
  $region12: #{forward.63} parent=0 // pred_region
    _
  $region13: #{forward.63} parent=0 // pred_fallthru
    _
  %v14 = vld [vmem:[%s0] sm:$0xff]
  %v15 = vld [vmem:[%s0 + $0x8] sm:$0xff]
  %v16 = vld [vmem:[%s1] sm:$0xff]
  %v17 = vld [vmem:[%s2] sm:$0x1]
  %v19 = vperm.slane %v17, 0
  %vm21 = vcmask 64512
  %v23 = vsel %vm21, %v14, 0
  %v26 = vsel %vm21, %v15, 0
  %28 = vmatpush.msra.mxu0 0.0
  %29 = vmatpush.msra.mxu0 0.0
  %30 = vmatpush.msra.mxu0 0.0
  %31 = vmatpush.msra.mxu0 0.0
  %32 = vmatpush.msra.mxu0 0.0
  %33 = vmatpush.msra.mxu0 0.0
  %34 = vmatpush.msra.mxu0 0.0
  %35 = vmatpush.msra.mxu0 0.0
  %36 = vmatpush.msra.mxu0 0.0
  %37 = vmatpush.msra.mxu0 0.0
  %38 = vmatpush.msra.mxu0 0.0
  %39 = vmatpush.msra.mxu0 0.0
  %40 = vmatpush.msra.mxu0 0.0
  %41 = vmatpush.msra.mxu0 0.0
  %42 = vmatpush.msra.mxu0 0.0
  %v43 = vand.u32 %v16, 4294901760
  %44 = vmatpush.msra.mxu0 %v43
  %v45 = vand.u32 %v23, 4294901760
  %v46 = vsub.f32 %v23, %v45
  %v47 = vand.u32 %v46, 4294901760
  %v48 = vsub.f32 %v46, %v47
  %v49 = vand.u32 %v48, 4294901760
  %50 = vmatmul.f32.gmra.mxu0 %v49
  %v51 = vpop.f32.mrf.mxu0
  %v52 = vadd.f32 %v19, %v51
  %v53 = vand.u32 %v26, 4294901760
  %v54 = vsub.f32 %v26, %v53
  %v55 = vand.u32 %v54, 4294901760
  %v56 = vsub.f32 %v54, %v55
  %v57 = vand.u32 %v56, 4294901760
  %58 = vmatmul.f32.gmra.mxu0 %v57
  %v59 = vpop.f32.mrf.mxu0
  %v60 = vadd.f32 %v19, %v59
  %61 = vdwg.mxu0
  %62 = vmatpush.msra.mxu0 0.0
  %63 = vmatpush.msra.mxu0 0.0
  %64 = vmatpush.msra.mxu0 0.0
  %65 = vmatpush.msra.mxu0 0.0
  %66 = vmatpush.msra.mxu0 0.0
  %67 = vmatpush.msra.mxu0 0.0
  %68 = vmatpush.msra.mxu0 0.0
  %69 = vmatpush.msra.mxu0 0.0
  %70 = vmatpush.msra.mxu0 0.0
  %71 = vmatpush.msra.mxu0 0.0
  %72 = vmatpush.msra.mxu0 0.0
  %73 = vmatpush.msra.mxu0 0.0
  %74 = vmatpush.msra.mxu0 0.0
  %75 = vmatpush.msra.mxu0 0.0
  %76 = vmatpush.msra.mxu0 0.0
  %v77 = vand.u32 %v16, 4294901760
  %v78 = vsub.f32 %v16, %v77
  %v79 = vand.u32 %v78, 4294901760
  %v80 = vsub.f32 %v78, %v79
  %v81 = vand.u32 %v80, 4294901760
  %82 = vmatpush.msra.mxu0 %v81
  %v83 = vand.u32 %v23, 4294901760
  %84 = vmatmul.f32.gmra.mxu0 %v83
  %v85 = vpop.f32.mrf.mxu0
  %v86 = vadd.f32 %v52, %v85
  %v87 = vand.u32 %v26, 4294901760
  %88 = vmatmul.f32.gmra.mxu0 %v87
  %v89 = vpop.f32.mrf.mxu0
  %v90 = vadd.f32 %v60, %v89
  %91 = vdwg.mxu0
  %92 = vmatpush.msra.mxu0 0.0
  %93 = vmatpush.msra.mxu0 0.0
  %94 = vmatpush.msra.mxu0 0.0
  %95 = vmatpush.msra.mxu0 0.0
  %96 = vmatpush.msra.mxu0 0.0
  %97 = vmatpush.msra.mxu0 0.0
  %98 = vmatpush.msra.mxu0 0.0
  %99 = vmatpush.msra.mxu0 0.0
  %100 = vmatpush.msra.mxu0 0.0
  %101 = vmatpush.msra.mxu0 0.0
  %102 = vmatpush.msra.mxu0 0.0
  %103 = vmatpush.msra.mxu0 0.0
  %104 = vmatpush.msra.mxu0 0.0
  %105 = vmatpush.msra.mxu0 0.0
  %106 = vmatpush.msra.mxu0 0.0
  %v107 = vand.u32 %v16, 4294901760
  %v108 = vsub.f32 %v16, %v107
  %109 = vmatpush.msra.mxu0 %v108
  %v110 = vand.u32 %v23, 4294901760
  %v111 = vsub.f32 %v23, %v110
  %112 = vmatmul.f32.gmra.mxu0 %v111
  %v113 = vpop.f32.mrf.mxu0
  %v114 = vadd.f32 %v86, %v113
  %v115 = vand.u32 %v26, 4294901760
  %v116 = vsub.f32 %v26, %v115
  %117 = vmatmul.f32.gmra.mxu0 %v116
  %v118 = vpop.f32.mrf.mxu0
  %v119 = vadd.f32 %v90, %v118
  %120 = vdwg.mxu0
  %121 = vmatpush.msra.mxu0 0.0
  %122 = vmatpush.msra.mxu0 0.0
  %123 = vmatpush.msra.mxu0 0.0
  %124 = vmatpush.msra.mxu0 0.0
  %125 = vmatpush.msra.mxu0 0.0
  %126 = vmatpush.msra.mxu0 0.0
  %127 = vmatpush.msra.mxu0 0.0
  %128 = vmatpush.msra.mxu0 0.0
  %129 = vmatpush.msra.mxu0 0.0
  %130 = vmatpush.msra.mxu0 0.0
  %131 = vmatpush.msra.mxu0 0.0
  %132 = vmatpush.msra.mxu0 0.0
  %133 = vmatpush.msra.mxu0 0.0
  %134 = vmatpush.msra.mxu0 0.0
  %135 = vmatpush.msra.mxu0 0.0
  %v136 = vand.u32 %v16, 4294901760
  %137 = vmatpush.msra.mxu0 %v136
  %v138 = vand.u32 %v23, 4294901760
  %v139 = vsub.f32 %v23, %v138
  %v140 = vand.u32 %v139, 4294901760
  %141 = vmatmul.f32.gmra.mxu0 %v140
  %v142 = vpop.f32.mrf.mxu0
  %v143 = vadd.f32 %v114, %v142
  %v144 = vand.u32 %v26, 4294901760
  %v145 = vsub.f32 %v26, %v144
  %v146 = vand.u32 %v145, 4294901760
  %147 = vmatmul.f32.gmra.mxu0 %v146
  %v148 = vpop.f32.mrf.mxu0
  %v149 = vadd.f32 %v119, %v148
  %150 = vdwg.mxu0
  %151 = vmatpush.msra.mxu0 0.0
  %152 = vmatpush.msra.mxu0 0.0
  %153 = vmatpush.msra.mxu0 0.0
  %154 = vmatpush.msra.mxu0 0.0
  %155 = vmatpush.msra.mxu0 0.0
  %156 = vmatpush.msra.mxu0 0.0
  %157 = vmatpush.msra.mxu0 0.0
  %158 = vmatpush.msra.mxu0 0.0
  %159 = vmatpush.msra.mxu0 0.0
  %160 = vmatpush.msra.mxu0 0.0
  %161 = vmatpush.msra.mxu0 0.0
  %162 = vmatpush.msra.mxu0 0.0
  %163 = vmatpush.msra.mxu0 0.0
  %164 = vmatpush.msra.mxu0 0.0
  %165 = vmatpush.msra.mxu0 0.0
  %v166 = vand.u32 %v16, 4294901760
  %v167 = vsub.f32 %v16, %v166
  %v168 = vand.u32 %v167, 4294901760
  %169 = vmatpush.msra.mxu0 %v168
  %v170 = vand.u32 %v23, 4294901760
  %171 = vmatmul.f32.gmra.mxu0 %v170
  %v172 = vpop.f32.mrf.mxu0
  %v173 = vadd.f32 %v143, %v172
  %v174 = vand.u32 %v26, 4294901760
  %175 = vmatmul.f32.gmra.mxu0 %v174
  %v176 = vpop.f32.mrf.mxu0
  %v177 = vadd.f32 %v149, %v176
  %178 = vdwg.mxu0
  %179 = vmatpush.msra.mxu0 0.0
  %180 = vmatpush.msra.mxu0 0.0
  %181 = vmatpush.msra.mxu0 0.0
  %182 = vmatpush.msra.mxu0 0.0
  %183 = vmatpush.msra.mxu0 0.0
  %184 = vmatpush.msra.mxu0 0.0
  %185 = vmatpush.msra.mxu0 0.0
  %186 = vmatpush.msra.mxu0 0.0
  %187 = vmatpush.msra.mxu0 0.0
  %188 = vmatpush.msra.mxu0 0.0
  %189 = vmatpush.msra.mxu0 0.0
  %190 = vmatpush.msra.mxu0 0.0
  %191 = vmatpush.msra.mxu0 0.0
  %192 = vmatpush.msra.mxu0 0.0
  %193 = vmatpush.msra.mxu0 0.0
  %v194 = vand.u32 %v16, 4294901760
  %195 = vmatpush.msra.mxu0 %v194
  %v196 = vand.u32 %v23, 4294901760
  %197 = vmatmul.f32.gmra.mxu0 %v196
  %v198 = vpop.f32.mrf.mxu0
  %v199 = vadd.f32 %v173, %v198
  %v200 = vand.u32 %v26, 4294901760
  %201 = vmatmul.f32.gmra.mxu0 %v200
  %v202 = vpop.f32.mrf.mxu0
  %v203 = vadd.f32 %v177, %v202
  %204 = vdwg.mxu0
  %v205 = vmax.f32 %v199, 0.0
  %v206 = vmax.f32 %v203, 0.0
  %207 = vst.msk [vmem:[%s3] sm:$0xff] %vm21, %v205
  %208 = vst.msk [vmem:[%s3 + $0x8] sm:$0xff] %vm21, %v206
  // Predicated region
  $region14: #{forward.63} parent=0 // pred_check
    _
  $region15: #{forward.63} parent=0 // pred_check_branch
    %210 = sbr.rel (0) target = $region17
  $region16: #{forward.63} parent=0 // pred_region
    _
  $region17: #{forward.63} parent=0 // pred_fallthru
    _
  // Predicated region
  $region18: #{forward.63} parent=0 // pred_check
    _
  $region19: #{forward.63} parent=0 // pred_check_branch
    %212 = sbr.rel (0) target = $region21
  $region20: #{forward.63} parent=0 // pred_region
    _
  $region21: #{forward.63} parent=0 // pred_fallthru
    _

// kernel: forward.80
$region0: #{forward.80}
  #allocation0 [shape = 'u32[]', space=smem, size = 0x4, offset = 0x4, fixed_abs, tag = 'smem constant byte address 0x4 - core index']
  #allocation1 [shape = 'u32[72,128]{1,0:T(1,128)}', space=vmem, size = 0x9000, scoped, tag = 'internal scratch']
  %s0 = inlined_call_operand.vmem [shape: f32[16,64], index: 0, kind: input, shape index: {}]
  %s1 = inlined_call_operand.vmem [shape: f32[64,32], index: 1, kind: input, shape index: {}]
  %s2 = inlined_call_operand.vmem [shape: f32[1,32], index: 2, kind: input, shape index: {}]
  %s3 = inlined_call_operand.vmem [shape: f32[16,32], index: 3, kind: output, shape index: {}]
  %s4 = sld [smem:[#allocation0]]
  $region22: #{forward.80} parent=0
    _
  %s6 = ssub.s32 1, %s4
  %s7 = scalar_select 0, %s6, %s4
  // Predicated region
  $region2: #{forward.80} parent=0 // pred_check
    _
  $region3: #{forward.80} parent=0 // pred_check_branch
    %9 = sbr.rel (0) target = $region5
  $region4: #{forward.80} parent=0 // pred_region
    _
  $region5: #{forward.80} parent=0 // pred_fallthru
    _
  // Predicated region
  $region6: #{forward.80} parent=0 // pred_check
    _
  $region7: #{forward.80} parent=0 // pred_check_branch
    %11 = sbr.rel (0) target = $region9
  $region8: #{forward.80} parent=0 // pred_region
    _
  $region9: #{forward.80} parent=0 // pred_fallthru
    _
  // Predicated region
  $region10: #{forward.80} parent=0 // pred_check
    _
  $region11: #{forward.80} parent=0 // pred_check_branch
    %13 = sbr.rel (0) target = $region13
  $region12: #{forward.80} parent=0 // pred_region
    _
  $region13: #{forward.80} parent=0 // pred_fallthru
    _
  %v14 = vld [vmem:[%s0] sm:$0xff]
  %v15 = vld [vmem:[%s0 + $0x8] sm:$0xff]
  %v16 = vld [vmem:[%s1] sm:$0xff]
  %v17 = vld [vmem:[%s1 + $0x8] sm:$0xff]
  %v18 = vld [vmem:[%s1 + $0x10] sm:$0xff]
  %v19 = vld [vmem:[%s1 + $0x18] sm:$0xff]
  %v20 = vld [vmem:[%s1 + $0x20] sm:$0xff]
  %v21 = vld [vmem:[%s1 + $0x28] sm:$0xff]
  %v22 = vld [vmem:[%s1 + $0x30] sm:$0xff]
  %v23 = vld [vmem:[%s1 + $0x38] sm:$0xff]
  %v24 = vld [vmem:[%s2] sm:$0x1]
  %v26 = vperm.slane %v24, 0
  %vm28 = vcmask 523264
  %v30 = vsel %vm28, %v14, 0
  %v33 = vsel %vm28, %v15, 0
  %35 = vmatpush.msra.mxu0 0.0
  %36 = vmatpush.msra.mxu0 0.0
  %37 = vmatpush.msra.mxu0 0.0
  %38 = vmatpush.msra.mxu0 0.0
  %39 = vmatpush.msra.mxu0 0.0
  %40 = vmatpush.msra.mxu0 0.0
  %41 = vmatpush.msra.mxu0 0.0
  %42 = vmatpush.msra.mxu0 0.0
  %v43 = vand.u32 %v23, 4294901760
  %44 = vmatpush.msra.mxu0 %v43
  %v45 = vand.u32 %v22, 4294901760
  %46 = vmatpush.msra.mxu0 %v45
  %v47 = vand.u32 %v21, 4294901760
  %48 = vmatpush.msra.mxu0 %v47
  %v49 = vand.u32 %v20, 4294901760
  %50 = vmatpush.msra.mxu0 %v49
  %v51 = vand.u32 %v19, 4294901760
  %52 = vmatpush.msra.mxu0 %v51
  %v53 = vand.u32 %v18, 4294901760
  %54 = vmatpush.msra.mxu0 %v53
  %v55 = vand.u32 %v17, 4294901760
  %56 = vmatpush.msra.mxu0 %v55
  %v57 = vand.u32 %v16, 4294901760
  %58 = vmatpush.msra.mxu0 %v57
  %v59 = vand.u32 %v30, 4294901760
  %v60 = vsub.f32 %v30, %v59
  %v61 = vand.u32 %v60, 4294901760
  %v62 = vsub.f32 %v60, %v61
  %v63 = vand.u32 %v62, 4294901760
  %64 = vmatmul.f32.gmra.mxu0 %v63
  %v65 = vpop.f32.mrf.mxu0
  %v66 = vadd.f32 %v26, %v65
  %v67 = vand.u32 %v33, 4294901760
  %v68 = vsub.f32 %v33, %v67
  %v69 = vand.u32 %v68, 4294901760
  %v70 = vsub.f32 %v68, %v69
  %v71 = vand.u32 %v70, 4294901760
  %72 = vmatmul.f32.gmra.mxu0 %v71
  %v73 = vpop.f32.mrf.mxu0
  %v74 = vadd.f32 %v26, %v73
  %75 = vdwg.mxu0
  %76 = vmatpush.msra.mxu0 0.0
  %77 = vmatpush.msra.mxu0 0.0
  %78 = vmatpush.msra.mxu0 0.0
  %79 = vmatpush.msra.mxu0 0.0
  %80 = vmatpush.msra.mxu0 0.0
  %81 = vmatpush.msra.mxu0 0.0
  %82 = vmatpush.msra.mxu0 0.0
  %83 = vmatpush.msra.mxu0 0.0
  %v84 = vand.u32 %v23, 4294901760
  %v85 = vsub.f32 %v23, %v84
  %v86 = vand.u32 %v85, 4294901760
  %v87 = vsub.f32 %v85, %v86
  %v88 = vand.u32 %v87, 4294901760
  %89 = vmatpush.msra.mxu0 %v88
  %v90 = vand.u32 %v22, 4294901760
  %v91 = vsub.f32 %v22, %v90
  %v92 = vand.u32 %v91, 4294901760
  %v93 = vsub.f32 %v91, %v92
  %v94 = vand.u32 %v93, 4294901760
  %95 = vmatpush.msra.mxu0 %v94
  %v96 = vand.u32 %v21, 4294901760
  %v97 = vsub.f32 %v21, %v96
  %v98 = vand.u32 %v97, 4294901760
  %v99 = vsub.f32 %v97, %v98
  %v100 = vand.u32 %v99, 4294901760
  %101 = vmatpush.msra.mxu0 %v100
  %v102 = vand.u32 %v20, 4294901760
  %v103 = vsub.f32 %v20, %v102
  %v104 = vand.u32 %v103, 4294901760
  %v105 = vsub.f32 %v103, %v104
  %v106 = vand.u32 %v105, 4294901760
  %107 = vmatpush.msra.mxu0 %v106
  %v108 = vand.u32 %v19, 4294901760
  %v109 = vsub.f32 %v19, %v108
  %v110 = vand.u32 %v109, 4294901760
  %v111 = vsub.f32 %v109, %v110
  %v112 = vand.u32 %v111, 4294901760
  %113 = vmatpush.msra.mxu0 %v112
  %v114 = vand.u32 %v18, 4294901760
  %v115 = vsub.f32 %v18, %v114
  %v116 = vand.u32 %v115, 4294901760
  %v117 = vsub.f32 %v115, %v116
  %v118 = vand.u32 %v117, 4294901760
  %119 = vmatpush.msra.mxu0 %v118
  %v120 = vand.u32 %v17, 4294901760
  %v121 = vsub.f32 %v17, %v120
  %v122 = vand.u32 %v121, 4294901760
  %v123 = vsub.f32 %v121, %v122
  %v124 = vand.u32 %v123, 4294901760
  %125 = vmatpush.msra.mxu0 %v124
  %v126 = vand.u32 %v16, 4294901760
  %v127 = vsub.f32 %v16, %v126
  %v128 = vand.u32 %v127, 4294901760
  %v129 = vsub.f32 %v127, %v128
  %v130 = vand.u32 %v129, 4294901760
  %131 = vmatpush.msra.mxu0 %v130
  %v132 = vand.u32 %v30, 4294901760
  %133 = vmatmul.f32.gmra.mxu0 %v132
  %v134 = vpop.f32.mrf.mxu0
  %v135 = vadd.f32 %v66, %v134
  %v136 = vand.u32 %v33, 4294901760
  %137 = vmatmul.f32.gmra.mxu0 %v136
  %v138 = vpop.f32.mrf.mxu0
  %v139 = vadd.f32 %v74, %v138
  %140 = vdwg.mxu0
  %141 = vmatpush.msra.mxu0 0.0
  %142 = vmatpush.msra.mxu0 0.0
  %143 = vmatpush.msra.mxu0 0.0
  %144 = vmatpush.msra.mxu0 0.0
  %145 = vmatpush.msra.mxu0 0.0
  %146 = vmatpush.msra.mxu0 0.0
  %147 = vmatpush.msra.mxu0 0.0
  %148 = vmatpush.msra.mxu0 0.0
  %v149 = vand.u32 %v23, 4294901760
  %v150 = vsub.f32 %v23, %v149
  %151 = vmatpush.msra.mxu0 %v150
  %v152 = vand.u32 %v22, 4294901760
  %v153 = vsub.f32 %v22, %v152
  %154 = vmatpush.msra.mxu0 %v153
  %v155 = vand.u32 %v21, 4294901760
  %v156 = vsub.f32 %v21, %v155
  %157 = vmatpush.msra.mxu0 %v156
  %v158 = vand.u32 %v20, 4294901760
  %v159 = vsub.f32 %v20, %v158
  %160 = vmatpush.msra.mxu0 %v159
  %v161 = vand.u32 %v19, 4294901760
  %v162 = vsub.f32 %v19, %v161
  %163 = vmatpush.msra.mxu0 %v162
  %v164 = vand.u32 %v18, 4294901760
  %v165 = vsub.f32 %v18, %v164
  %166 = vmatpush.msra.mxu0 %v165
  %v167 = vand.u32 %v17, 4294901760
  %v168 = vsub.f32 %v17, %v167
  %169 = vmatpush.msra.mxu0 %v168
  %v170 = vand.u32 %v16, 4294901760
  %v171 = vsub.f32 %v16, %v170
  %172 = vmatpush.msra.mxu0 %v171
  %v173 = vand.u32 %v30, 4294901760
  %v174 = vsub.f32 %v30, %v173
  %175 = vmatmul.f32.gmra.mxu0 %v174
  %v176 = vpop.f32.mrf.mxu0
  %v177 = vadd.f32 %v135, %v176
  %v178 = vand.u32 %v33, 4294901760
  %v179 = vsub.f32 %v33, %v178
  %180 = vmatmul.f32.gmra.mxu0 %v179
  %v181 = vpop.f32.mrf.mxu0
  %v182 = vadd.f32 %v139, %v181
  %183 = vdwg.mxu0
  %184 = vmatpush.msra.mxu0 0.0
  %185 = vmatpush.msra.mxu0 0.0
  %186 = vmatpush.msra.mxu0 0.0
  %187 = vmatpush.msra.mxu0 0.0
  %188 = vmatpush.msra.mxu0 0.0
  %189 = vmatpush.msra.mxu0 0.0
  %190 = vmatpush.msra.mxu0 0.0
  %191 = vmatpush.msra.mxu0 0.0
  %v192 = vand.u32 %v23, 4294901760
  %193 = vmatpush.msra.mxu0 %v192
  %v194 = vand.u32 %v22, 4294901760
  %195 = vmatpush.msra.mxu0 %v194
  %v196 = vand.u32 %v21, 4294901760
  %197 = vmatpush.msra.mxu0 %v196
  %v198 = vand.u32 %v20, 4294901760
  %199 = vmatpush.msra.mxu0 %v198
  %v200 = vand.u32 %v19, 4294901760
  %201 = vmatpush.msra.mxu0 %v200
  %v202 = vand.u32 %v18, 4294901760
  %203 = vmatpush.msra.mxu0 %v202
  %v204 = vand.u32 %v17, 4294901760
  %205 = vmatpush.msra.mxu0 %v204
  %v206 = vand.u32 %v16, 4294901760
  %207 = vmatpush.msra.mxu0 %v206
  %v208 = vand.u32 %v30, 4294901760
  %v209 = vsub.f32 %v30, %v208
  %v210 = vand.u32 %v209, 4294901760
  %211 = vmatmul.f32.gmra.mxu0 %v210
  %v212 = vpop.f32.mrf.mxu0
  %v213 = vadd.f32 %v177, %v212
  %v214 = vand.u32 %v33, 4294901760
  %v215 = vsub.f32 %v33, %v214
  %v216 = vand.u32 %v215, 4294901760
  %217 = vmatmul.f32.gmra.mxu0 %v216
  %v218 = vpop.f32.mrf.mxu0
  %v219 = vadd.f32 %v182, %v218
  %220 = vdwg.mxu0
  %221 = vmatpush.msra.mxu0 0.0
  %222 = vmatpush.msra.mxu0 0.0
  %223 = vmatpush.msra.mxu0 0.0
  %224 = vmatpush.msra.mxu0 0.0
  %225 = vmatpush.msra.mxu0 0.0
  %226 = vmatpush.msra.mxu0 0.0
  %227 = vmatpush.msra.mxu0 0.0
  %228 = vmatpush.msra.mxu0 0.0
  %v229 = vand.u32 %v23, 4294901760
  %v230 = vsub.f32 %v23, %v229
  %v231 = vand.u32 %v230, 4294901760
  %232 = vmatpush.msra.mxu0 %v231
  %v233 = vand.u32 %v22, 4294901760
  %v234 = vsub.f32 %v22, %v233
  %v235 = vand.u32 %v234, 4294901760
  %236 = vmatpush.msra.mxu0 %v235
  %v237 = vand.u32 %v21, 4294901760
  %v238 = vsub.f32 %v21, %v237
  %v239 = vand.u32 %v238, 4294901760
  %240 = vmatpush.msra.mxu0 %v239
  %v241 = vand.u32 %v20, 4294901760
  %v242 = vsub.f32 %v20, %v241
  %v243 = vand.u32 %v242, 4294901760
  %244 = vmatpush.msra.mxu0 %v243
  %v245 = vand.u32 %v19, 4294901760
  %v246 = vsub.f32 %v19, %v245
  %v247 = vand.u32 %v246, 4294901760
  %248 = vmatpush.msra.mxu0 %v247
  %v249 = vand.u32 %v18, 4294901760
  %v250 = vsub.f32 %v18, %v249
  %v251 = vand.u32 %v250, 4294901760
  %252 = vmatpush.msra.mxu0 %v251
  %v253 = vand.u32 %v17, 4294901760
  %v254 = vsub.f32 %v17, %v253
  %v255 = vand.u32 %v254, 4294901760
  %256 = vmatpush.msra.mxu0 %v255
  %v257 = vand.u32 %v16, 4294901760
  %v258 = vsub.f32 %v16, %v257
  %v259 = vand.u32 %v258, 4294901760
  %260 = vmatpush.msra.mxu0 %v259
  %v261 = vand.u32 %v30, 4294901760
  %262 = vmatmul.f32.gmra.mxu0 %v261
  %v263 = vpop.f32.mrf.mxu0
  %v264 = vadd.f32 %v213, %v263
  %v265 = vand.u32 %v33, 4294901760
  %266 = vmatmul.f32.gmra.mxu0 %v265
  %v267 = vpop.f32.mrf.mxu0
  %v268 = vadd.f32 %v219, %v267
  %269 = vdwg.mxu0
  %270 = vmatpush.msra.mxu0 0.0
  %271 = vmatpush.msra.mxu0 0.0
  %272 = vmatpush.msra.mxu0 0.0
  %273 = vmatpush.msra.mxu0 0.0
  %274 = vmatpush.msra.mxu0 0.0
  %275 = vmatpush.msra.mxu0 0.0
  %276 = vmatpush.msra.mxu0 0.0
  %277 = vmatpush.msra.mxu0 0.0
  %v278 = vand.u32 %v23, 4294901760
  %279 = vmatpush.msra.mxu0 %v278
  %v280 = vand.u32 %v22, 4294901760
  %281 = vmatpush.msra.mxu0 %v280
  %v282 = vand.u32 %v21, 4294901760
  %283 = vmatpush.msra.mxu0 %v282
  %v284 = vand.u32 %v20, 4294901760
  %285 = vmatpush.msra.mxu0 %v284
  %v286 = vand.u32 %v19, 4294901760
  %287 = vmatpush.msra.mxu0 %v286
  %v288 = vand.u32 %v18, 4294901760
  %289 = vmatpush.msra.mxu0 %v288
  %v290 = vand.u32 %v17, 4294901760
  %291 = vmatpush.msra.mxu0 %v290
  %v292 = vand.u32 %v16, 4294901760
  %293 = vmatpush.msra.mxu0 %v292
  %v294 = vand.u32 %v30, 4294901760
  %295 = vmatmul.f32.gmra.mxu0 %v294
  %v296 = vpop.f32.mrf.mxu0
  %v297 = vadd.f32 %v264, %v296
  %v298 = vand.u32 %v33, 4294901760
  %299 = vmatmul.f32.gmra.mxu0 %v298
  %v300 = vpop.f32.mrf.mxu0
  %v301 = vadd.f32 %v268, %v300
  %302 = vdwg.mxu0
  %vm303 = vcmask 261120
  %304 = vst.msk [vmem:[%s3] sm:$0xff] %vm303, %v297
  %305 = vst.msk [vmem:[%s3 + $0x8] sm:$0xff] %vm303, %v301
  // Predicated region
  $region14: #{forward.80} parent=0 // pred_check
    _
  $region15: #{forward.80} parent=0 // pred_check_branch
    %307 = sbr.rel (0) target = $region17
  $region16: #{forward.80} parent=0 // pred_region
    _
  $region17: #{forward.80} parent=0 // pred_fallthru
    _
  // Predicated region
  $region18: #{forward.80} parent=0 // pred_check
    _
  $region19: #{forward.80} parent=0 // pred_check_branch
    %309 = sbr.rel (0) target = $region21
  $region20: #{forward.80} parent=0 // pred_region
    _
  $region21: #{forward.80} parent=0 // pred_fallthru
    _

// kernel: forward.123
$region0: #{forward.123}
  #allocation0 [shape = 'u32[]', space=smem, size = 0x4, offset = 0x4, fixed_abs, tag = 'smem constant byte address 0x4 - core index']
  #allocation1 [shape = 'u32[72,128]{1,0:T(1,128)}', space=vmem, size = 0x9000, scoped, tag = 'internal scratch']
  %s0 = inlined_call_operand.vmem [shape: f32[16,32], index: 0, kind: input, shape index: {}]
  %s1 = inlined_call_operand.vmem [shape: f32[32,16], index: 1, kind: input, shape index: {}]
  %s2 = inlined_call_operand.vmem [shape: f32[1,16], index: 2, kind: input, shape index: {}]
  %s3 = inlined_call_operand.vmem [shape: f32[16,16], index: 3, kind: output, shape index: {}]
  %s4 = sld [smem:[#allocation0]]
  $region22: #{forward.123} parent=0
    _
  %s6 = ssub.s32 1, %s4
  %s7 = scalar_select 0, %s6, %s4
  // Predicated region
  $region2: #{forward.123} parent=0 // pred_check
    _
  $region3: #{forward.123} parent=0 // pred_check_branch
    %9 = sbr.rel (0) target = $region5
  $region4: #{forward.123} parent=0 // pred_region
    _
  $region5: #{forward.123} parent=0 // pred_fallthru
    _
  // Predicated region
  $region6: #{forward.123} parent=0 // pred_check
    _
  $region7: #{forward.123} parent=0 // pred_check_branch
    %11 = sbr.rel (0) target = $region9
  $region8: #{forward.123} parent=0 // pred_region
    _
  $region9: #{forward.123} parent=0 // pred_fallthru
    _
  // Predicated region
  $region10: #{forward.123} parent=0 // pred_check
    _
  $region11: #{forward.123} parent=0 // pred_check_branch
    %13 = sbr.rel (0) target = $region13
  $region12: #{forward.123} parent=0 // pred_region
    _
  $region13: #{forward.123} parent=0 // pred_fallthru
    _
  %v14 = vld [vmem:[%s0] sm:$0xff]
  %v15 = vld [vmem:[%s0 + $0x8] sm:$0xff]
  %v16 = vld [vmem:[%s1] sm:$0xff]
  %v17 = vld [vmem:[%s1 + $0x8] sm:$0xff]
  %v18 = vld [vmem:[%s1 + $0x10] sm:$0xff]
  %v19 = vld [vmem:[%s1 + $0x18] sm:$0xff]
  %v20 = vld [vmem:[%s2] sm:$0x1]
  %v22 = vperm.slane %v20, 0
  %vm24 = vcmask 261120
  %v26 = vsel %vm24, %v14, 0
  %v29 = vsel %vm24, %v15, 0
  %31 = vmatpush.msra.mxu0 0.0
  %32 = vmatpush.msra.mxu0 0.0
  %33 = vmatpush.msra.mxu0 0.0
  %34 = vmatpush.msra.mxu0 0.0
  %35 = vmatpush.msra.mxu0 0.0
  %36 = vmatpush.msra.mxu0 0.0
  %37 = vmatpush.msra.mxu0 0.0
  %38 = vmatpush.msra.mxu0 0.0
  %39 = vmatpush.msra.mxu0 0.0
  %40 = vmatpush.msra.mxu0 0.0
  %41 = vmatpush.msra.mxu0 0.0
  %42 = vmatpush.msra.mxu0 0.0
  %v43 = vand.u32 %v19, 4294901760
  %44 = vmatpush.msra.mxu0 %v43
  %v45 = vand.u32 %v18, 4294901760
  %46 = vmatpush.msra.mxu0 %v45
  %v47 = vand.u32 %v17, 4294901760
  %48 = vmatpush.msra.mxu0 %v47
  %v49 = vand.u32 %v16, 4294901760
  %50 = vmatpush.msra.mxu0 %v49
  %v51 = vand.u32 %v26, 4294901760
  %v52 = vsub.f32 %v26, %v51
  %v53 = vand.u32 %v52, 4294901760
  %v54 = vsub.f32 %v52, %v53
  %v55 = vand.u32 %v54, 4294901760
  %56 = vmatmul.f32.gmra.mxu0 %v55
  %v57 = vpop.f32.mrf.mxu0
  %v58 = vadd.f32 %v22, %v57
  %v59 = vand.u32 %v29, 4294901760
  %v60 = vsub.f32 %v29, %v59
  %v61 = vand.u32 %v60, 4294901760
  %v62 = vsub.f32 %v60, %v61
  %v63 = vand.u32 %v62, 4294901760
  %64 = vmatmul.f32.gmra.mxu0 %v63
  %v65 = vpop.f32.mrf.mxu0
  %v66 = vadd.f32 %v22, %v65
  %67 = vdwg.mxu0
  %68 = vmatpush.msra.mxu0 0.0
  %69 = vmatpush.msra.mxu0 0.0
  %70 = vmatpush.msra.mxu0 0.0
  %71 = vmatpush.msra.mxu0 0.0
  %72 = vmatpush.msra.mxu0 0.0
  %73 = vmatpush.msra.mxu0 0.0
  %74 = vmatpush.msra.mxu0 0.0
  %75 = vmatpush.msra.mxu0 0.0
  %76 = vmatpush.msra.mxu0 0.0
  %77 = vmatpush.msra.mxu0 0.0
  %78 = vmatpush.msra.mxu0 0.0
  %79 = vmatpush.msra.mxu0 0.0
  %v80 = vand.u32 %v19, 4294901760
  %v81 = vsub.f32 %v19, %v80
  %v82 = vand.u32 %v81, 4294901760
  %v83 = vsub.f32 %v81, %v82
  %v84 = vand.u32 %v83, 4294901760
  %85 = vmatpush.msra.mxu0 %v84
  %v86 = vand.u32 %v18, 4294901760
  %v87 = vsub.f32 %v18, %v86
  %v88 = vand.u32 %v87, 4294901760
  %v89 = vsub.f32 %v87, %v88
  %v90 = vand.u32 %v89, 4294901760
  %91 = vmatpush.msra.mxu0 %v90
  %v92 = vand.u32 %v17, 4294901760
  %v93 = vsub.f32 %v17, %v92
  %v94 = vand.u32 %v93, 4294901760
  %v95 = vsub.f32 %v93, %v94
  %v96 = vand.u32 %v95, 4294901760
  %97 = vmatpush.msra.mxu0 %v96
  %v98 = vand.u32 %v16, 4294901760
  %v99 = vsub.f32 %v16, %v98
  %v100 = vand.u32 %v99, 4294901760
  %v101 = vsub.f32 %v99, %v100
  %v102 = vand.u32 %v101, 4294901760
  %103 = vmatpush.msra.mxu0 %v102
  %v104 = vand.u32 %v26, 4294901760
  %105 = vmatmul.f32.gmra.mxu0 %v104
  %v106 = vpop.f32.mrf.mxu0
  %v107 = vadd.f32 %v58, %v106
  %v108 = vand.u32 %v29, 4294901760
  %109 = vmatmul.f32.gmra.mxu0 %v108
  %v110 = vpop.f32.mrf.mxu0
  %v111 = vadd.f32 %v66, %v110
  %112 = vdwg.mxu0
  %113 = vmatpush.msra.mxu0 0.0
  %114 = vmatpush.msra.mxu0 0.0
  %115 = vmatpush.msra.mxu0 0.0
  %116 = vmatpush.msra.mxu0 0.0
  %117 = vmatpush.msra.mxu0 0.0
  %118 = vmatpush.msra.mxu0 0.0
  %119 = vmatpush.msra.mxu0 0.0
  %120 = vmatpush.msra.mxu0 0.0
  %121 = vmatpush.msra.mxu0 0.0
  %122 = vmatpush.msra.mxu0 0.0
  %123 = vmatpush.msra.mxu0 0.0
  %124 = vmatpush.msra.mxu0 0.0
  %v125 = vand.u32 %v19, 4294901760
  %v126 = vsub.f32 %v19, %v125
  %127 = vmatpush.msra.mxu0 %v126
  %v128 = vand.u32 %v18, 4294901760
  %v129 = vsub.f32 %v18, %v128
  %130 = vmatpush.msra.mxu0 %v129
  %v131 = vand.u32 %v17, 4294901760
  %v132 = vsub.f32 %v17, %v131
  %133 = vmatpush.msra.mxu0 %v132
  %v134 = vand.u32 %v16, 4294901760
  %v135 = vsub.f32 %v16, %v134
  %136 = vmatpush.msra.mxu0 %v135
  %v137 = vand.u32 %v26, 4294901760
  %v138 = vsub.f32 %v26, %v137
  %139 = vmatmul.f32.gmra.mxu0 %v138
  %v140 = vpop.f32.mrf.mxu0
  %v141 = vadd.f32 %v107, %v140
  %v142 = vand.u32 %v29, 4294901760
  %v143 = vsub.f32 %v29, %v142
  %144 = vmatmul.f32.gmra.mxu0 %v143
  %v145 = vpop.f32.mrf.mxu0
  %v146 = vadd.f32 %v111, %v145
  %147 = vdwg.mxu0
  %148 = vmatpush.msra.mxu0 0.0
  %149 = vmatpush.msra.mxu0 0.0
  %150 = vmatpush.msra.mxu0 0.0
  %151 = vmatpush.msra.mxu0 0.0
  %152 = vmatpush.msra.mxu0 0.0
  %153 = vmatpush.msra.mxu0 0.0
  %154 = vmatpush.msra.mxu0 0.0
  %155 = vmatpush.msra.mxu0 0.0
  %156 = vmatpush.msra.mxu0 0.0
  %157 = vmatpush.msra.mxu0 0.0
  %158 = vmatpush.msra.mxu0 0.0
  %159 = vmatpush.msra.mxu0 0.0
  %v160 = vand.u32 %v19, 4294901760
  %161 = vmatpush.msra.mxu0 %v160
  %v162 = vand.u32 %v18, 4294901760
  %163 = vmatpush.msra.mxu0 %v162
  %v164 = vand.u32 %v17, 4294901760
  %165 = vmatpush.msra.mxu0 %v164
  %v166 = vand.u32 %v16, 4294901760
  %167 = vmatpush.msra.mxu0 %v166
  %v168 = vand.u32 %v26, 4294901760
  %v169 = vsub.f32 %v26, %v168
  %v170 = vand.u32 %v169, 4294901760
  %171 = vmatmul.f32.gmra.mxu0 %v170
  %v172 = vpop.f32.mrf.mxu0
  %v173 = vadd.f32 %v141, %v172
  %v174 = vand.u32 %v29, 4294901760
  %v175 = vsub.f32 %v29, %v174
  %v176 = vand.u32 %v175, 4294901760
  %177 = vmatmul.f32.gmra.mxu0 %v176
  %v178 = vpop.f32.mrf.mxu0
  %v179 = vadd.f32 %v146, %v178
  %180 = vdwg.mxu0
  %181 = vmatpush.msra.mxu0 0.0
  %182 = vmatpush.msra.mxu0 0.0
  %183 = vmatpush.msra.mxu0 0.0
  %184 = vmatpush.msra.mxu0 0.0
  %185 = vmatpush.msra.mxu0 0.0
  %186 = vmatpush.msra.mxu0 0.0
  %187 = vmatpush.msra.mxu0 0.0
  %188 = vmatpush.msra.mxu0 0.0
  %189 = vmatpush.msra.mxu0 0.0
  %190 = vmatpush.msra.mxu0 0.0
  %191 = vmatpush.msra.mxu0 0.0
  %192 = vmatpush.msra.mxu0 0.0
  %v193 = vand.u32 %v19, 4294901760
  %v194 = vsub.f32 %v19, %v193
  %v195 = vand.u32 %v194, 4294901760
  %196 = vmatpush.msra.mxu0 %v195
  %v197 = vand.u32 %v18, 4294901760
  %v198 = vsub.f32 %v18, %v197
  %v199 = vand.u32 %v198, 4294901760
  %200 = vmatpush.msra.mxu0 %v199
  %v201 = vand.u32 %v17, 4294901760
  %v202 = vsub.f32 %v17, %v201
  %v203 = vand.u32 %v202, 4294901760
  %204 = vmatpush.msra.mxu0 %v203
  %v205 = vand.u32 %v16, 4294901760
  %v206 = vsub.f32 %v16, %v205
  %v207 = vand.u32 %v206, 4294901760
  %208 = vmatpush.msra.mxu0 %v207
  %v209 = vand.u32 %v26, 4294901760
  %210 = vmatmul.f32.gmra.mxu0 %v209
  %v211 = vpop.f32.mrf.mxu0
  %v212 = vadd.f32 %v173, %v211
  %v213 = vand.u32 %v29, 4294901760
  %214 = vmatmul.f32.gmra.mxu0 %v213
  %v215 = vpop.f32.mrf.mxu0
  %v216 = vadd.f32 %v179, %v215
  %217 = vdwg.mxu0
  %218 = vmatpush.msra.mxu0 0.0
  %219 = vmatpush.msra.mxu0 0.0
  %220 = vmatpush.msra.mxu0 0.0
  %221 = vmatpush.msra.mxu0 0.0
  %222 = vmatpush.msra.mxu0 0.0
  %223 = vmatpush.msra.mxu0 0.0
  %224 = vmatpush.msra.mxu0 0.0
  %225 = vmatpush.msra.mxu0 0.0
  %226 = vmatpush.msra.mxu0 0.0
  %227 = vmatpush.msra.mxu0 0.0
  %228 = vmatpush.msra.mxu0 0.0
  %229 = vmatpush.msra.mxu0 0.0
  %v230 = vand.u32 %v19, 4294901760
  %231 = vmatpush.msra.mxu0 %v230
  %v232 = vand.u32 %v18, 4294901760
  %233 = vmatpush.msra.mxu0 %v232
  %v234 = vand.u32 %v17, 4294901760
  %235 = vmatpush.msra.mxu0 %v234
  %v236 = vand.u32 %v16, 4294901760
  %237 = vmatpush.msra.mxu0 %v236
  %v238 = vand.u32 %v26, 4294901760
  %239 = vmatmul.f32.gmra.mxu0 %v238
  %v240 = vpop.f32.mrf.mxu0
  %v241 = vadd.f32 %v212, %v240
  %v242 = vand.u32 %v29, 4294901760
  %243 = vmatmul.f32.gmra.mxu0 %v242
  %v244 = vpop.f32.mrf.mxu0
  %v245 = vadd.f32 %v216, %v244
  %246 = vdwg.mxu0
  %vm247 = vcmp.gt.f32.partialorder %v241, 0.0
  %vm248 = vcmp.gt.f32.partialorder %v245, 0.0
  %v249 = vmul.f32 %v241, 0.01
  %v250 = vmul.f32 %v245, 0.01
  %v251 = vsel %vm247, %v241, %v249
  %v252 = vsel %vm248, %v245, %v250
  %vm253 = vcmask 130048
  %254 = vst.msk [vmem:[%s3] sm:$0xff] %vm253, %v251
  %255 = vst.msk [vmem:[%s3 + $0x8] sm:$0xff] %vm253, %v252
  // Predicated region
  $region14: #{forward.123} parent=0 // pred_check
    _
  $region15: #{forward.123} parent=0 // pred_check_branch
    %257 = sbr.rel (0) target = $region17
  $region16: #{forward.123} parent=0 // pred_region
    _
  $region17: #{forward.123} parent=0 // pred_fallthru
    _
  // Predicated region
  $region18: #{forward.123} parent=0 // pred_check
    _
  $region19: #{forward.123} parent=0 // pred_check_branch
    %259 = sbr.rel (0) target = $region21
  $region20: #{forward.123} parent=0 // pred_region
    _
  $region21: #{forward.123} parent=0 // pred_fallthru
    _

// kernel: forward.124
$region0: #{forward.124}
  #allocation0 [shape = 'u32[]', space=smem, size = 0x4, offset = 0x4, fixed_abs, tag = 'smem constant byte address 0x4 - core index']
  #allocation1 [shape = 'u32[72,128]{1,0:T(1,128)}', space=vmem, size = 0x9000, scoped, tag = 'internal scratch']
  %s0 = inlined_call_operand.vmem [shape: f32[16,16], index: 0, kind: input, shape index: {}]
  %s1 = inlined_call_operand.vmem [shape: f32[16,8], index: 1, kind: input, shape index: {}]
  %s2 = inlined_call_operand.vmem [shape: f32[1,8], index: 2, kind: input, shape index: {}]
  %s3 = inlined_call_operand.vmem [shape: f32[16,8], index: 3, kind: output, shape index: {}]
  %s4 = sld [smem:[#allocation0]]
  $region22: #{forward.124} parent=0
    _
  %s6 = ssub.s32 1, %s4
  %s7 = scalar_select 0, %s6, %s4
  // Predicated region
  $region2: #{forward.124} parent=0 // pred_check
    _
  $region3: #{forward.124} parent=0 // pred_check_branch
    %9 = sbr.rel (0) target = $region5
  $region4: #{forward.124} parent=0 // pred_region
    _
  $region5: #{forward.124} parent=0 // pred_fallthru
    _
  // Predicated region
  $region6: #{forward.124} parent=0 // pred_check
    _
  $region7: #{forward.124} parent=0 // pred_check_branch
    %11 = sbr.rel (0) target = $region9
  $region8: #{forward.124} parent=0 // pred_region
    _
  $region9: #{forward.124} parent=0 // pred_fallthru
    _
  // Predicated region
  $region10: #{forward.124} parent=0 // pred_check
    _
  $region11: #{forward.124} parent=0 // pred_check_branch
    %13 = sbr.rel (0) target = $region13
  $region12: #{forward.124} parent=0 // pred_region
    _
  $region13: #{forward.124} parent=0 // pred_fallthru
    _
  %v14 = vld [vmem:[%s0] sm:$0xff]
  %v15 = vld [vmem:[%s0 + $0x8] sm:$0xff]
  %v16 = vld [vmem:[%s1] sm:$0xff]
  %v17 = vld [vmem:[%s1 + $0x8] sm:$0xff]
  %v18 = vld [vmem:[%s2] sm:$0x1]
  %v20 = vperm.slane %v18, 0
  %vm22 = vcmask 130048
  %v24 = vsel %vm22, %v14, 0
  %v27 = vsel %vm22, %v15, 0
  %29 = vmatpush.msra.mxu0 0.0
  %30 = vmatpush.msra.mxu0 0.0
  %31 = vmatpush.msra.mxu0 0.0
  %32 = vmatpush.msra.mxu0 0.0
  %33 = vmatpush.msra.mxu0 0.0
  %34 = vmatpush.msra.mxu0 0.0
  %35 = vmatpush.msra.mxu0 0.0
  %36 = vmatpush.msra.mxu0 0.0
  %37 = vmatpush.msra.mxu0 0.0
  %38 = vmatpush.msra.mxu0 0.0
  %39 = vmatpush.msra.mxu0 0.0
  %40 = vmatpush.msra.mxu0 0.0
  %41 = vmatpush.msra.mxu0 0.0
  %42 = vmatpush.msra.mxu0 0.0
  %v43 = vand.u32 %v17, 4294901760
  %44 = vmatpush.msra.mxu0 %v43
  %v45 = vand.u32 %v16, 4294901760
  %46 = vmatpush.msra.mxu0 %v45
  %v47 = vand.u32 %v24, 4294901760
  %v48 = vsub.f32 %v24, %v47
  %v49 = vand.u32 %v48, 4294901760
  %v50 = vsub.f32 %v48, %v49
  %v51 = vand.u32 %v50, 4294901760
  %52 = vmatmul.f32.gmra.mxu0 %v51
  %v53 = vpop.f32.mrf.mxu0
  %v54 = vadd.f32 %v20, %v53
  %v55 = vand.u32 %v27, 4294901760
  %v56 = vsub.f32 %v27, %v55
  %v57 = vand.u32 %v56, 4294901760
  %v58 = vsub.f32 %v56, %v57
  %v59 = vand.u32 %v58, 4294901760
  %60 = vmatmul.f32.gmra.mxu0 %v59
  %v61 = vpop.f32.mrf.mxu0
  %v62 = vadd.f32 %v20, %v61
  %63 = vdwg.mxu0
  %64 = vmatpush.msra.mxu0 0.0
  %65 = vmatpush.msra.mxu0 0.0
  %66 = vmatpush.msra.mxu0 0.0
  %67 = vmatpush.msra.mxu0 0.0
  %68 = vmatpush.msra.mxu0 0.0
  %69 = vmatpush.msra.mxu0 0.0
  %70 = vmatpush.msra.mxu0 0.0
  %71 = vmatpush.msra.mxu0 0.0
  %72 = vmatpush.msra.mxu0 0.0
  %73 = vmatpush.msra.mxu0 0.0
  %74 = vmatpush.msra.mxu0 0.0
  %75 = vmatpush.msra.mxu0 0.0
  %76 = vmatpush.msra.mxu0 0.0
  %77 = vmatpush.msra.mxu0 0.0
  %v78 = vand.u32 %v17, 4294901760
  %v79 = vsub.f32 %v17, %v78
  %v80 = vand.u32 %v79, 4294901760
  %v81 = vsub.f32 %v79, %v80
  %v82 = vand.u32 %v81, 4294901760
  %83 = vmatpush.msra.mxu0 %v82
  %v84 = vand.u32 %v16, 4294901760
  %v85 = vsub.f32 %v16, %v84
  %v86 = vand.u32 %v85, 4294901760
  %v87 = vsub.f32 %v85, %v86
  %v88 = vand.u32 %v87, 4294901760
  %89 = vmatpush.msra.mxu0 %v88
  %v90 = vand.u32 %v24, 4294901760
  %91 = vmatmul.f32.gmra.mxu0 %v90
  %v92 = vpop.f32.mrf.mxu0
  %v93 = vadd.f32 %v54, %v92
  %v94 = vand.u32 %v27, 4294901760
  %95 = vmatmul.f32.gmra.mxu0 %v94
  %v96 = vpop.f32.mrf.mxu0
  %v97 = vadd.f32 %v62, %v96
  %98 = vdwg.mxu0
  %99 = vmatpush.msra.mxu0 0.0
  %100 = vmatpush.msra.mxu0 0.0
  %101 = vmatpush.msra.mxu0 0.0
  %102 = vmatpush.msra.mxu0 0.0
  %103 = vmatpush.msra.mxu0 0.0
  %104 = vmatpush.msra.mxu0 0.0
  %105 = vmatpush.msra.mxu0 0.0
  %106 = vmatpush.msra.mxu0 0.0
  %107 = vmatpush.msra.mxu0 0.0
  %108 = vmatpush.msra.mxu0 0.0
  %109 = vmatpush.msra.mxu0 0.0
  %110 = vmatpush.msra.mxu0 0.0
  %111 = vmatpush.msra.mxu0 0.0
  %112 = vmatpush.msra.mxu0 0.0
  %v113 = vand.u32 %v17, 4294901760
  %v114 = vsub.f32 %v17, %v113
  %115 = vmatpush.msra.mxu0 %v114
  %v116 = vand.u32 %v16, 4294901760
  %v117 = vsub.f32 %v16, %v116
  %118 = vmatpush.msra.mxu0 %v117
  %v119 = vand.u32 %v24, 4294901760
  %v120 = vsub.f32 %v24, %v119
  %121 = vmatmul.f32.gmra.mxu0 %v120
  %v122 = vpop.f32.mrf.mxu0
  %v123 = vadd.f32 %v93, %v122
  %v124 = vand.u32 %v27, 4294901760
  %v125 = vsub.f32 %v27, %v124
  %126 = vmatmul.f32.gmra.mxu0 %v125
  %v127 = vpop.f32.mrf.mxu0
  %v128 = vadd.f32 %v97, %v127
  %129 = vdwg.mxu0
  %130 = vmatpush.msra.mxu0 0.0
  %131 = vmatpush.msra.mxu0 0.0
  %132 = vmatpush.msra.mxu0 0.0
  %133 = vmatpush.msra.mxu0 0.0
  %134 = vmatpush.msra.mxu0 0.0
  %135 = vmatpush.msra.mxu0 0.0
  %136 = vmatpush.msra.mxu0 0.0
  %137 = vmatpush.msra.mxu0 0.0
  %138 = vmatpush.msra.mxu0 0.0
  %139 = vmatpush.msra.mxu0 0.0
  %140 = vmatpush.msra.mxu0 0.0
  %141 = vmatpush.msra.mxu0 0.0
  %142 = vmatpush.msra.mxu0 0.0
  %143 = vmatpush.msra.mxu0 0.0
  %v144 = vand.u32 %v17, 4294901760
  %145 = vmatpush.msra.mxu0 %v144
  %v146 = vand.u32 %v16, 4294901760
  %147 = vmatpush.msra.mxu0 %v146
  %v148 = vand.u32 %v24, 4294901760
  %v149 = vsub.f32 %v24, %v148
  %v150 = vand.u32 %v149, 4294901760
  %151 = vmatmul.f32.gmra.mxu0 %v150
  %v152 = vpop.f32.mrf.mxu0
  %v153 = vadd.f32 %v123, %v152
  %v154 = vand.u32 %v27, 4294901760
  %v155 = vsub.f32 %v27, %v154
  %v156 = vand.u32 %v155, 4294901760
  %157 = vmatmul.f32.gmra.mxu0 %v156
  %v158 = vpop.f32.mrf.mxu0
  %v159 = vadd.f32 %v128, %v158
  %160 = vdwg.mxu0
  %161 = vmatpush.msra.mxu0 0.0
  %162 = vmatpush.msra.mxu0 0.0
  %163 = vmatpush.msra.mxu0 0.0
  %164 = vmatpush.msra.mxu0 0.0
  %165 = vmatpush.msra.mxu0 0.0
  %166 = vmatpush.msra.mxu0 0.0
  %167 = vmatpush.msra.mxu0 0.0
  %168 = vmatpush.msra.mxu0 0.0
  %169 = vmatpush.msra.mxu0 0.0
  %170 = vmatpush.msra.mxu0 0.0
  %171 = vmatpush.msra.mxu0 0.0
  %172 = vmatpush.msra.mxu0 0.0
  %173 = vmatpush.msra.mxu0 0.0
  %174 = vmatpush.msra.mxu0 0.0
  %v175 = vand.u32 %v17, 4294901760
  %v176 = vsub.f32 %v17, %v175
  %v177 = vand.u32 %v176, 4294901760
  %178 = vmatpush.msra.mxu0 %v177
  %v179 = vand.u32 %v16, 4294901760
  %v180 = vsub.f32 %v16, %v179
  %v181 = vand.u32 %v180, 4294901760
  %182 = vmatpush.msra.mxu0 %v181
  %v183 = vand.u32 %v24, 4294901760
  %184 = vmatmul.f32.gmra.mxu0 %v183
  %v185 = vpop.f32.mrf.mxu0
  %v186 = vadd.f32 %v153, %v185
  %v187 = vand.u32 %v27, 4294901760
  %188 = vmatmul.f32.gmra.mxu0 %v187
  %v189 = vpop.f32.mrf.mxu0
  %v190 = vadd.f32 %v159, %v189
  %191 = vdwg.mxu0
  %192 = vmatpush.msra.mxu0 0.0
  %193 = vmatpush.msra.mxu0 0.0
  %194 = vmatpush.msra.mxu0 0.0
  %195 = vmatpush.msra.mxu0 0.0
  %196 = vmatpush.msra.mxu0 0.0
  %197 = vmatpush.msra.mxu0 0.0
  %198 = vmatpush.msra.mxu0 0.0
  %199 = vmatpush.msra.mxu0 0.0
  %200 = vmatpush.msra.mxu0 0.0
  %201 = vmatpush.msra.mxu0 0.0
  %202 = vmatpush.msra.mxu0 0.0
  %203 = vmatpush.msra.mxu0 0.0
  %204 = vmatpush.msra.mxu0 0.0
  %205 = vmatpush.msra.mxu0 0.0
  %v206 = vand.u32 %v17, 4294901760
  %207 = vmatpush.msra.mxu0 %v206
  %v208 = vand.u32 %v16, 4294901760
  %209 = vmatpush.msra.mxu0 %v208
  %v210 = vand.u32 %v24, 4294901760
  %211 = vmatmul.f32.gmra.mxu0 %v210
  %v212 = vpop.f32.mrf.mxu0
  %v213 = vadd.f32 %v186, %v212
  %v214 = vand.u32 %v27, 4294901760
  %215 = vmatmul.f32.gmra.mxu0 %v214
  %v216 = vpop.f32.mrf.mxu0
  %v217 = vadd.f32 %v190, %v216
  %218 = vdwg.mxu0
  %vm219 = vcmask 64512
  %220 = vst.msk [vmem:[%s3] sm:$0xff] %vm219, %v213
  %221 = vst.msk [vmem:[%s3 + $0x8] sm:$0xff] %vm219, %v217
  // Predicated region
  $region14: #{forward.124} parent=0 // pred_check
    _
  $region15: #{forward.124} parent=0 // pred_check_branch
    %223 = sbr.rel (0) target = $region17
  $region16: #{forward.124} parent=0 // pred_region
    _
  $region17: #{forward.124} parent=0 // pred_fallthru
    _
  // Predicated region
  $region18: #{forward.124} parent=0 // pred_check
    _
  $region19: #{forward.124} parent=0 // pred_check_branch
    %225 = sbr.rel (0) target = $region21
  $region20: #{forward.124} parent=0 // pred_region
    _
  $region21: #{forward.124} parent=0 // pred_fallthru
    _

// kernel: forward.125
$region0: #{forward.125}
  #allocation0 [shape = 'u32[]', space=smem, size = 0x4, offset = 0x4, fixed_abs, tag = 'smem constant byte address 0x4 - core index']
  #allocation1 [shape = 'u32[72,128]{1,0:T(1,128)}', space=vmem, size = 0x9000, scoped, tag = 'internal scratch']
  %s0 = inlined_call_operand.vmem [shape: f32[16,8], index: 0, kind: input, shape index: {}]
  %s1 = inlined_call_operand.vmem [shape: f32[1,8], index: 1, kind: input, shape index: {}]
  %s2 = inlined_call_operand.vmem [shape: f32[1,8], index: 2, kind: input, shape index: {}]
  %s3 = inlined_call_operand.vmem [shape: f32[16,8], index: 3, kind: output, shape index: {}]
  %s4 = sld [smem:[#allocation0]]
  $region22: #{forward.125} parent=0
    _
  %s6 = ssub.s32 1, %s4
  %s7 = scalar_select 0, %s6, %s4
  // Predicated region
  $region2: #{forward.125} parent=0 // pred_check
    _
  $region3: #{forward.125} parent=0 // pred_check_branch
    %9 = sbr.rel (0) target = $region5
  $region4: #{forward.125} parent=0 // pred_region
    _
  $region5: #{forward.125} parent=0 // pred_fallthru
    _
  // Predicated region
  $region6: #{forward.125} parent=0 // pred_check
    _
  $region7: #{forward.125} parent=0 // pred_check_branch
    %11 = sbr.rel (0) target = $region9
  $region8: #{forward.125} parent=0 // pred_region
    _
  $region9: #{forward.125} parent=0 // pred_fallthru
    _
  // Predicated region
  $region10: #{forward.125} parent=0 // pred_check
    _
  $region11: #{forward.125} parent=0 // pred_check_branch
    %13 = sbr.rel (0) target = $region13
  $region12: #{forward.125} parent=0 // pred_region
    _
  $region13: #{forward.125} parent=0 // pred_fallthru
    _
  %v14 = vld [vmem:[%s0] sm:$0xff]
  %v15 = vld [vmem:[%s0 + $0x8] sm:$0xff]
  %vm16 = vcmask 64512
  %v17 = vsel %vm16, %v14, 0.0
  %18 = vadd.xlane.f32.xlu0 %v17
  %v19 = vpop.xlane.xlu0 %18
  %v20 = vsel %vm16, %v15, 0.0
  %21 = vadd.xlane.f32.xlu0 %v20
  %v22 = vpop.xlane.xlu0 %21
  %v23 = vrcp.pop 8.0
  %v24 = vmul.f32 8.0, %v23
  %v25 = vsub.f32 1.0, %v24
  %v26 = vmul.f32 %v23, %v25
  %v27 = vadd.f32 %v23, %v26
  %vm28 = vweird.f32 %v23
  %v29 = vsel %vm28, %v23, %v27
  %v30 = vmul.f32 %v19, %v29
  %v31 = vmul.f32 %v22, %v29
  %v32 = vsub.f32 %v14, %v30
  %v33 = vsub.f32 %v15, %v31
  %v34 = vmul.f32 %v32, %v32
  %v35 = vmul.f32 %v33, %v33
  %v36 = vsel %vm16, %v34, 0.0
  %37 = vadd.xlane.f32.xlu0 %v36
  %v38 = vpop.xlane.xlu0 %37
  %v39 = vsel %vm16, %v35, 0.0
  %40 = vadd.xlane.f32.xlu0 %v39
  %v41 = vpop.xlane.xlu0 %40
  %v42 = vmul.f32 %v38, %v29
  %v43 = vmul.f32 %v41, %v29
  %v44 = vadd.f32 %v42, 1e-05
  %v45 = vadd.f32 %v43, 1e-05
  %v46 = vrsqrt.pop %v44
  %v47 = vmul.f32 %v46, %v44
  %v48 = vmul.f32 %v47, %v46
  %v49 = vmul.f32 0.5, %v48
  %v50 = vsub.f32 1.5, %v49
  %v51 = vmul.f32 %v46, %v50
  %vm52 = vweird.f32 %v44
  %vm53 = vweird.f32 %v46
  %vm54 = vmor %vm52, %vm53
  %v55 = vsel %vm54, %v46, %v51
  %v56 = vrsqrt.pop %v45
  %v57 = vmul.f32 %v56, %v45
  %v58 = vmul.f32 %v57, %v56
  %v59 = vmul.f32 0.5, %v58
  %v60 = vsub.f32 1.5, %v59
  %v61 = vmul.f32 %v56, %v60
  %vm62 = vweird.f32 %v45
  %vm63 = vweird.f32 %v56
  %vm64 = vmor %vm62, %vm63
  %v65 = vsel %vm64, %v56, %v61
  %v66 = vmul.f32 %v32, %v55
  %v67 = vmul.f32 %v33, %v65
  %v68 = vld [vmem:[%s1] sm:$0x1]
  %v70 = vperm.slane %v68, 0
  %v72 = vmul.f32 %v66, %v70
  %v73 = vmul.f32 %v67, %v70
  %v74 = vld [vmem:[%s2] sm:$0x1]
  %v76 = vperm.slane %v74, 0
  %v78 = vadd.f32 %v72, %v76
  %v79 = vadd.f32 %v73, %v76
  %80 = vst.msk [vmem:[%s3] sm:$0xff] %vm16, %v78
  %81 = vst.msk [vmem:[%s3 + $0x8] sm:$0xff] %vm16, %v79
  // Predicated region
  $region14: #{forward.125} parent=0 // pred_check
    _
  $region15: #{forward.125} parent=0 // pred_check_branch
    %83 = sbr.rel (0) target = $region17
  $region16: #{forward.125} parent=0 // pred_region
    _
  $region17: #{forward.125} parent=0 // pred_fallthru
    _
  // Predicated region
  $region18: #{forward.125} parent=0 // pred_check
    _
  $region19: #{forward.125} parent=0 // pred_check_branch
    %85 = sbr.rel (0) target = $region21
  $region20: #{forward.125} parent=0 // pred_region
    _
  $region21: #{forward.125} parent=0 // pred_fallthru
    _

</llo_original>
